<compile_context>
chip_gen: v6e
topology: v6e:2x2x1
jax: 0.10.0
libtpu: 0.0.40
codegen_flags: <defaults>
</compile_context>

<pallas_src>
import jax
import jax.numpy as jnp
from jax import lax
from jax.experimental import pallas as pl
from jax.experimental.pallas import tpu as pltpu

KSIZE = 3
EPS = 1e-5      # PyTorch BatchNorm3d default
LANES = 128


def _pick_tile(total, target):
    """Largest multiple-of-8 divisor of `total` that is <= target (fallback: total)."""
    hi = min(target, total)
    for cand in range(hi - hi % 8, 0, -8):
        if total % cand == 0:
            return cand
    return total


def _conv_stats_kernel(x_ref, w_ref, b_ref, stats_ref):
    """Conv (single MXU matmul over the folded 27*Cin contraction) + bias, then emit
    per-channel partial sum / sum-of-squares for this row tile.

      x_ref     : (TR, Kp)    bf16 im2col rows
      w_ref     : (Kp, Cp)    bf16 folded weights
      b_ref     : (1, Cp)     f32 conv bias
      stats_ref : (1, 8, Cp)  f32  -- row 0 = sum, row 1 = sum of squares
    """
    acc = jnp.dot(x_ref[...], w_ref[...], preferred_element_type=jnp.float32)
    acc = acc + b_ref[...]
    ssum = jnp.sum(acc, axis=0, keepdims=True)
    ssq = jnp.sum(acc * acc, axis=0, keepdims=True)
    pad = jnp.zeros((6, acc.shape[1]), jnp.float32)
    stats_ref[...] = jnp.concatenate([ssum, ssq, pad], axis=0)[None]


def _conv_bn_relu_pool_kernel(x_ref, w_ref, b_ref, scale_ref, shift_ref, o_ref):
    """Conv + bias recompute, folded BatchNorm affine (y*scale + shift), ReLU, and the
    2x2x2 maxpool fused as a max over groups of 8 consecutive (window-major) rows.

      x_ref : (8*TP, Kp) bf16,  o_ref : (TP, Cp) f32
    """
    acc = jnp.dot(x_ref[...], w_ref[...], preferred_element_type=jnp.float32)
    acc = acc + b_ref[...]
    y = jnp.maximum(acc * scale_ref[...] + shift_ref[...], 0.0)
    tp, cp = o_ref.shape
    o_ref[...] = jnp.max(y.reshape(tp, 8, cp), axis=1)


def conv_layer_forward(x_ncdhw, w_oidhw, b, gamma, beta):
    """ConvLayer.forward: conv -> batchnorm(train) -> relu -> drop(identity) -> maxpool."""
    N, Cin, D, H, W = x_ncdhw.shape
    Cout = w_oidhw.shape[0]
    # TODO(synk): MaxPool3d ceil_mode=True only differs from floor for odd spatial dims;
    # the odd-dim padding path is not implemented (demo dims are even).
    assert D % 2 == 0 and H % 2 == 0 and W % 2 == 0
    Do, Ho, Wo = D // 2, H // 2, W // 2
    Kdim = KSIZE ** 3 * Cin
    Kp = LANES * pl.cdiv(Kdim, LANES)          # contraction padded to lane multiple
    Cp = LANES * pl.cdiv(Cout, LANES)          # channels padded to lane multiple

    # glue: NCDHW -> NDHWC (channels-last), zero-pad spatial by 1, bf16 matmul operand.
    x = jnp.transpose(x_ncdhw, (0, 2, 3, 4, 1)).astype(jnp.bfloat16)
    xp = jnp.pad(x, ((0, 0), (1, 1), (1, 1), (1, 1), (0, 0)))

    # im2col with the 27 taps folded onto the contraction axis: (R, 27*Cin).
    # TODO(synk): form the taps in-kernel from a halo'd input block to remove this
    # wrapper-side 27x patch materialization entirely (it is at least streamed
    # block-by-block by the row grid and built in bf16 to halve its HBM footprint).
    taps = []
    for kd in range(KSIZE):
        for kh in range(KSIZE):
            for kw in range(KSIZE):
                taps.append(xp[:, kd:kd + D, kh:kh + H, kw:kw + W, :])
    xcol = jnp.stack(taps, axis=4).reshape(N, D, H, W, Kdim)
    # Permute rows to pooling-window-major order (n, do, ho, wo, dd, dh, dw) so the
    # 2x2x2 pool is a max over 8 consecutive rows inside the pass-2 kernel.
    xcol = xcol.reshape(N, Do, 2, Ho, 2, Wo, 2, Kdim)
    xcol = jnp.transpose(xcol, (0, 1, 3, 5, 2, 4, 6, 7))
    R = N * D * H * W
    xcol = xcol.reshape(R, Kdim)
    xcol = jnp.pad(xcol, ((0, 0), (0, Kp - Kdim)))          # lane-dense contraction

    # Folded weights (Kp, Cp); bias / BN params padded to the lane-dense channel dim.
    wmat = jnp.transpose(w_oidhw, (2, 3, 4, 1, 0)).reshape(Kdim, Cout)
    wmat = jnp.pad(wmat, ((0, Kp - Kdim), (0, Cp - Cout))).astype(jnp.bfloat16)
    b_p = jnp.pad(b.astype(jnp.float32), (0, Cp - Cout)).reshape(1, Cp)
    gamma_p = jnp.pad(gamma.astype(jnp.float32), (0, Cp - Cout))
    beta_p = jnp.pad(beta.astype(jnp.float32), (0, Cp - Cout))

    # ---- pass 1: conv + bias -> per-tile per-channel sum / sumsq ---------------------
    TR = _pick_tile(R, 512)
    nt1 = R // TR
    stats = pl.pallas_call(
        _conv_stats_kernel,
        out_shape=jax.ShapeDtypeStruct((nt1, 8, Cp), jnp.float32),
        grid=(nt1,),
        in_specs=[pl.BlockSpec((TR, Kp), lambda i: (i, 0)),
                  pl.BlockSpec((Kp, Cp), lambda i: (0, 0)),
                  pl.BlockSpec((1, Cp), lambda i: (0, 0))],
        out_specs=pl.BlockSpec((1, 8, Cp), lambda i: (i, 0, 0)),
        compiler_params=pltpu.CompilerParams(dimension_semantics=("parallel",)),
    )(xcol, wmat, b_p)

    # Finalize BatchNorm3d training-mode stats (biased variance) and fold them into a
    # per-channel affine y*scale + shift.  Tiny (Cp,) math -> plain JAX.
    tot = jnp.sum(stats[:, 0, :], axis=0)
    totsq = jnp.sum(stats[:, 1, :], axis=0)
    mean = tot / R
    var = jnp.maximum(totsq / R - mean * mean, 0.0)
    scale = (gamma_p * lax.rsqrt(var + EPS)).reshape(1, Cp)
    shift = (beta_p - mean * scale[0]).reshape(1, Cp)

    # ---- pass 2: conv + BN affine + ReLU + fused 2x2x2 maxpool -----------------------
    P = R // 8                                  # pooled rows = N*Do*Ho*Wo
    TP = _pick_tile(P, 512)
    nt2 = P // TP
    pooled = pl.pallas_call(
        _conv_bn_relu_pool_kernel,
        out_shape=jax.ShapeDtypeStruct((P, Cp), jnp.float32),
        grid=(nt2,),
        in_specs=[pl.BlockSpec((8 * TP, Kp), lambda i: (i, 0)),
                  pl.BlockSpec((Kp, Cp), lambda i: (0, 0)),
                  pl.BlockSpec((1, Cp), lambda i: (0, 0)),
                  pl.BlockSpec((1, Cp), lambda i: (0, 0)),
                  pl.BlockSpec((1, Cp), lambda i: (0, 0))],
        out_specs=pl.BlockSpec((TP, Cp), lambda i: (i, 0)),
        compiler_params=pltpu.CompilerParams(dimension_semantics=("parallel",)),
    )(xcol, wmat, b_p, scale, shift)

    # Dropout3d(p=0.0) is nn.Identity -> no-op.

    out = pooled[:, :Cout].reshape(N, Do, Ho, Wo, Cout)
    return jnp.transpose(out, (0, 4, 1, 2, 3))              # back to NCDHW


def reference_forward(x, w, b, gamma, beta):
    """Pure-JAX reference with PyTorch semantics (training-mode BatchNorm).  Inputs are
    rounded to bf16 exactly like the kernel's MXU operands (accumulation stays f32 in
    both paths), so the comparison isolates kernel correctness."""
    xq = x.astype(jnp.bfloat16).astype(jnp.float32)
    wq = w.astype(jnp.bfloat16).astype(jnp.float32)
    y = lax.conv_general_dilated(
        xq, wq, window_strides=(1, 1, 1), padding=((1, 1), (1, 1), (1, 1)),
        dimension_numbers=('NCDHW', 'OIDHW', 'NCDHW'))
    y = y + b[None, :, None, None, None]
    mean = jnp.mean(y, axis=(0, 2, 3, 4), keepdims=True)
    var = jnp.mean(jnp.square(y - mean), axis=(0, 2, 3, 4), keepdims=True)
    y = (y - mean) * lax.rsqrt(var + EPS)
    y = y * gamma[None, :, None, None, None] + beta[None, :, None, None, None]
    y = jnp.maximum(y, 0.0)
    N, C, D, H, W = y.shape
    y = y.reshape(N, C, D // 2, 2, H // 2, 2, W // 2, 2)
    return jnp.max(y, axis=(3, 5, 7))


if __name__ == "__main__":
    key = jax.random.PRNGKey(0)
    kx, kw, kb, kg, kbt = jax.random.split(key, 5)

    N, Cin, Cout, D, H, W = 2, 4, 8, 8, 8, 8
    x = jax.random.normal(kx, (N, Cin, D, H, W), jnp.float32)

    # Deterministic synthetic parameters (shapes from nn.Conv3d(4, 8, 3) / BatchNorm3d(8)).
    fan_in = Cin * KSIZE ** 3
    w = jax.random.normal(kw, (Cout, Cin, KSIZE, KSIZE, KSIZE), jnp.float32) / jnp.sqrt(fan_in)
    b = 0.1 * jax.random.normal(kb, (Cout,), jnp.float32)
    gamma = 1.0 + 0.1 * jax.random.normal(kg, (Cout,), jnp.float32)
    beta = 0.1 * jax.random.normal(kbt, (Cout,), jnp.float32)

    out = jax.jit(conv_layer_forward)(x, w, b, gamma, beta)
    out = jax.block_until_ready(out)

    ref = reference_forward(x, w, b, gamma, beta)
    assert out.shape == (N, Cout, D // 2, H // 2, W // 2), out.shape
    err = float(jnp.max(jnp.abs(out - ref)))
    assert jnp.allclose(out, ref, atol=1e-3, rtol=1e-3), err
    print("KERNEL_OK")
</pallas_src>

<mosaic_0001>
module attributes {stable_mosaic.version = 11 : i64} {
  func.func @_conv_stats_kernel(%arg0: i32, %arg1: memref<512x128xbf16, #tpu.memory_space<vmem>>, %arg2: memref<128x128xbf16, #tpu.memory_space<vmem>>, %arg3: memref<1x128xf32, #tpu.memory_space<vmem>>, %arg4: memref<1x8x128xf32, #tpu.memory_space<vmem>>) attributes {dimension_semantics = [#tpu.dimension_semantics<parallel>], iteration_bounds = array<i64: 2>, scalar_prefetch = 0 : i64, scratch_operands = 0 : i64, tpu.core_type = #tpu.core_type<tc>, window_params = [{transform_indices = @transform_0, window_bounds = array<i64: 512, 128>}, {pipeline_mode = #tpu.pipeline_mode<synchronous>, transform_indices = @transform_1, window_bounds = array<i64: 128, 128>}, {pipeline_mode = #tpu.pipeline_mode<synchronous>, transform_indices = @transform_2, window_bounds = array<i64: 1, 128>}, {transform_indices = @transform_3, window_bounds = array<i64: 1, 8, 128>}]} {
    %c0 = arith.constant 0 : index
    %c0_0 = arith.constant 0 : index
    %0 = vector.load %arg1[%c0, %c0_0] : memref<512x128xbf16, #tpu.memory_space<vmem>>, vector<512x128xbf16>
    %c0_1 = arith.constant 0 : index
    %c0_2 = arith.constant 0 : index
    %1 = vector.load %arg2[%c0_1, %c0_2] : memref<128x128xbf16, #tpu.memory_space<vmem>>, vector<128x128xbf16>
    %cst = arith.constant dense<0.000000e+00> : vector<512x128xf32>
    %2 = tpu.matmul %0, %1, %cst {dimension_numbers = #tpu.dot_dimension_numbers<[1], [0], [0], [1], [0, 0, 1, 1], [], []>} : vector<512x128xbf16>, vector<128x128xbf16>, vector<512x128xf32> -> vector<512x128xf32>
    %c0_3 = arith.constant 0 : index
    %c0_4 = arith.constant 0 : index
    %3 = vector.load %arg3[%c0_3, %c0_4] : memref<1x128xf32, #tpu.memory_space<vmem>>, vector<1x128xf32>
    %4 = vector.broadcast %3 : vector<1x128xf32> to vector<512x128xf32>
    %5 = arith.addf %2, %4 : vector<512x128xf32>
    %cst_5 = arith.constant dense<0.000000e+00> : vector<128xf32>
    %6 = vector.multi_reduction <add>, %5, %cst_5 [0] : vector<512x128xf32> to vector<128xf32>
    %7 = vector.shape_cast %6 : vector<128xf32> to vector<1x128xf32>
    %8 = arith.mulf %5, %5 : vector<512x128xf32>
    %cst_6 = arith.constant dense<0.000000e+00> : vector<128xf32>
    %9 = vector.multi_reduction <add>, %8, %cst_6 [0] : vector<512x128xf32> to vector<128xf32>
    %10 = vector.shape_cast %9 : vector<128xf32> to vector<1x128xf32>
    %cst_7 = arith.constant 0.000000e+00 : f32
    %11 = vector.broadcast %cst_7 : f32 to vector<6x128xf32>
    %12 = tpu.concatenate %7, %10, %11 in 0 : vector<1x128xf32>, vector<1x128xf32>, vector<6x128xf32> -> vector<8x128xf32>
    %13 = vector.shape_cast %12 : vector<8x128xf32> to vector<1x8x128xf32>
    %c0_8 = arith.constant 0 : index
    %c0_9 = arith.constant 0 : index
    %c0_10 = arith.constant 0 : index
    %14 = vector.load %arg4[%c0_8, %c0_9, %c0_10] : memref<1x8x128xf32, #tpu.memory_space<vmem>>, vector<1x8x128xf32>
    tpu.vector_store %arg4[%c0_8, %c0_9, %c0_10], %13 {strides = array<i32>} : memref<1x8x128xf32, #tpu.memory_space<vmem>>, vector<1x8x128xf32>,
    return
  }
  func.func @transform_0(%arg0: i32) -> (i32, i32) {
    %c0_i32 = arith.constant 0 : i32
    %c0_i32_0 = arith.constant 0 : i32
    return %arg0, %c0_i32 : i32, i32
  }
  func.func @transform_1(%arg0: i32) -> (i32, i32) {
    %c0_i32 = arith.constant 0 : i32
    %c0_i32_0 = arith.constant 0 : i32
    %c0_i32_1 = arith.constant 0 : i32
    return %c0_i32, %c0_i32_0 : i32, i32
  }
  func.func @transform_2(%arg0: i32) -> (i32, i32) {
    %c0_i32 = arith.constant 0 : i32
    %c0_i32_0 = arith.constant 0 : i32
    %c0_i32_1 = arith.constant 0 : i32
    return %c0_i32, %c0_i32_0 : i32, i32
  }
  func.func @transform_3(%arg0: i32) -> (i32, i32, i32) {
    %c0_i32 = arith.constant 0 : i32
    %c0_i32_0 = arith.constant 0 : i32
    %c0_i32_1 = arith.constant 0 : i32
    return %arg0, %c0_i32, %c0_i32_0 : i32, i32, i32
  }
}

module attributes {stable_mosaic.version = 11 : i64} {
  func.func @_conv_bn_relu_pool_kernel(%arg0: i32, %arg1: memref<1024x128xbf16, #tpu.memory_space<vmem>>, %arg2: memref<128x128xbf16, #tpu.memory_space<vmem>>, %arg3: memref<1x128xf32, #tpu.memory_space<vmem>>, %arg4: memref<1x128xf32, #tpu.memory_space<vmem>>, %arg5: memref<1x128xf32, #tpu.memory_space<vmem>>, %arg6: memref<128x128xf32, #tpu.memory_space<vmem>>) attributes {dimension_semantics = [#tpu.dimension_semantics<parallel>], iteration_bounds = array<i64: 1>, scalar_prefetch = 0 : i64, scratch_operands = 0 : i64, tpu.core_type = #tpu.core_type<tc>, window_params = [{transform_indices = @transform_0, window_bounds = array<i64: 1024, 128>}, {pipeline_mode = #tpu.pipeline_mode<synchronous>, transform_indices = @transform_1, window_bounds = array<i64: 128, 128>}, {pipeline_mode = #tpu.pipeline_mode<synchronous>, transform_indices = @transform_2, window_bounds = array<i64: 1, 128>}, {pipeline_mode = #tpu.pipeline_mode<synchronous>, transform_indices = @transform_3, window_bounds = array<i64: 1, 128>}, {pipeline_mode = #tpu.pipeline_mode<synchronous>, transform_indices = @transform_4, window_bounds = array<i64: 1, 128>}, {transform_indices = @transform_5, window_bounds = array<i64: 128, 128>}]} {
    %c0 = arith.constant 0 : index
    %c0_0 = arith.constant 0 : index
    %0 = vector.load %arg1[%c0, %c0_0] : memref<1024x128xbf16, #tpu.memory_space<vmem>>, vector<1024x128xbf16>
    %c0_1 = arith.constant 0 : index
    %c0_2 = arith.constant 0 : index
    %1 = vector.load %arg2[%c0_1, %c0_2] : memref<128x128xbf16, #tpu.memory_space<vmem>>, vector<128x128xbf16>
    %cst = arith.constant dense<0.000000e+00> : vector<1024x128xf32>
    %2 = tpu.matmul %0, %1, %cst {dimension_numbers = #tpu.dot_dimension_numbers<[1], [0], [0], [1], [0, 0, 1, 1], [], []>} : vector<1024x128xbf16>, vector<128x128xbf16>, vector<1024x128xf32> -> vector<1024x128xf32>
    %c0_3 = arith.constant 0 : index
    %c0_4 = arith.constant 0 : index
    %3 = vector.load %arg3[%c0_3, %c0_4] : memref<1x128xf32, #tpu.memory_space<vmem>>, vector<1x128xf32>
    %4 = vector.broadcast %3 : vector<1x128xf32> to vector<1024x128xf32>
    %5 = arith.addf %2, %4 : vector<1024x128xf32>
    %c0_5 = arith.constant 0 : index
    %c0_6 = arith.constant 0 : index
    %6 = vector.load %arg4[%c0_5, %c0_6] : memref<1x128xf32, #tpu.memory_space<vmem>>, vector<1x128xf32>
    %7 = vector.broadcast %6 : vector<1x128xf32> to vector<1024x128xf32>
    %8 = arith.mulf %5, %7 : vector<1024x128xf32>
    %c0_7 = arith.constant 0 : index
    %c0_8 = arith.constant 0 : index
    %9 = vector.load %arg5[%c0_7, %c0_8] : memref<1x128xf32, #tpu.memory_space<vmem>>, vector<1x128xf32>
    %10 = vector.broadcast %9 : vector<1x128xf32> to vector<1024x128xf32>
    %11 = arith.addf %8, %10 : vector<1024x128xf32>
    %cst_9 = arith.constant 0.000000e+00 : f32
    %12 = vector.broadcast %cst_9 : f32 to vector<1024x128xf32>
    %13 = arith.maximumf %11, %12 : vector<1024x128xf32>
    %14 = vector.shape_cast %13 : vector<1024x128xf32> to vector<128x8x128xf32>
    %cst_10 = arith.constant dense<0xFF800000> : vector<128x128xf32>
    %15 = vector.multi_reduction <maximumf>, %14, %cst_10 [1] : vector<128x8x128xf32> to vector<128x128xf32>
    %c0_11 = arith.constant 0 : index
    %c0_12 = arith.constant 0 : index
    %16 = vector.load %arg6[%c0_11, %c0_12] : memref<128x128xf32, #tpu.memory_space<vmem>>, vector<128x128xf32>
    tpu.vector_store %arg6[%c0_11, %c0_12], %15 {strides = array<i32>} : memref<128x128xf32, #tpu.memory_space<vmem>>, vector<128x128xf32>,
    return
  }
  func.func @transform_0(%arg0: i32) -> (i32, i32) {
    %c0_i32 = arith.constant 0 : i32
    %c0_i32_0 = arith.constant 0 : i32
    return %arg0, %c0_i32 : i32, i32
  }
  func.func @transform_1(%arg0: i32) -> (i32, i32) {
    %c0_i32 = arith.constant 0 : i32
    %c0_i32_0 = arith.constant 0 : i32
    %c0_i32_1 = arith.constant 0 : i32
    return %c0_i32, %c0_i32_0 : i32, i32
  }
  func.func @transform_2(%arg0: i32) -> (i32, i32) {
    %c0_i32 = arith.constant 0 : i32
    %c0_i32_0 = arith.constant 0 : i32
    %c0_i32_1 = arith.constant 0 : i32
    return %c0_i32, %c0_i32_0 : i32, i32
  }
  func.func @transform_3(%arg0: i32) -> (i32, i32) {
    %c0_i32 = arith.constant 0 : i32
    %c0_i32_0 = arith.constant 0 : i32
    %c0_i32_1 = arith.constant 0 : i32
    return %c0_i32, %c0_i32_0 : i32, i32
  }
  func.func @transform_4(%arg0: i32) -> (i32, i32) {
    %c0_i32 = arith.constant 0 : i32
    %c0_i32_0 = arith.constant 0 : i32
    %c0_i32_1 = arith.constant 0 : i32
    return %c0_i32, %c0_i32_0 : i32, i32
  }
  func.func @transform_5(%arg0: i32) -> (i32, i32) {
    %c0_i32 = arith.constant 0 : i32
    %c0_i32_0 = arith.constant 0 : i32
    return %arg0, %c0_i32 : i32, i32
  }
}

</mosaic_0001>

<llo_original>
// kernel: conv_layer_forward.2
$region0: #{conv_layer_forward.2}
  #allocation0 [shape = 'u32[]', space=smem, size = 0x4, offset = 0x4, fixed_abs, tag = 'smem constant byte address 0x4 - core index']
  #allocation1 [shape = 'u32[144,128]{1,0:T(1,128)}', space=vmem, size = 0x12000, scoped, tag = 'internal scratch']
  %s0 = inlined_call_operand.vmem [shape: bf16[1024,128], index: 0, kind: input, shape index: {}]
  %s1 = inlined_call_operand.vmem [shape: bf16[128,128], index: 1, kind: input, shape index: {}]
  %s2 = inlined_call_operand.vmem [shape: f32[1,128], index: 2, kind: input, shape index: {}]
  %s3 = inlined_call_operand.vmem [shape: f32[2,8,128], index: 3, kind: output, shape index: {}]
  %s4 = sld [smem:[#allocation0]]
  $region45: #{conv_layer_forward.2} parent=0
    _
  %s6 = ssub.s32 1, %s4
  %s7 = scalar_select 0, %s6, %s4
  loop: start=0, step=1, limit=4
  $region2: #{conv_layer_forward.2} parent=0 // loop_pre_header
    _
  $region3: #{conv_layer_forward.2} parent=0 // loop_header
    %s9 = sphi 0, %s13
    %p10 = scmp.ge.s32.totalorder %s9, 4
    %s19 = sphi 0, %s21
    %s22 = sphi 0, %s19
    %s23 = sphi 0, %s22
    %s39 = sphi 0, %s23
    %s43 = sphi 0, %s43
    %s45 = sphi 0, %s43
    %s46 = sphi 0, %s45
    %s60 = sphi 0, %s46
    %s64 = sphi 0, %s64
    %s66 = sphi 0, %s64
    %s67 = sphi 0, %s66
    %s81 = sphi 0, %s67
    %s87 = sphi 0, %s89
    %s90 = sphi 0, %s87
    %s91 = sphi 0, %s90
    %s107 = sphi 0, %s91
  $region4: #{conv_layer_forward.2} parent=0 // loop_header_branch
    %12 = sbr.rel (%p10) target = $region8
  $region5: #{conv_layer_forward.2} parent=0 // loop_body
    %s14 = ssub.s32 %s9, 1
    %s15 = ssub.s32 %s9, 2
    %s16 = sadd.s32 %s9, 1
    %s17 = ssub.s32 %s9, %s16
    %p18 = scmp.eq.s32.totalorder %s17, 0
    %s20 = sadd.s32 %s19, 1
    %s21 = scalar_select %p18, %s19, %s20
    %p24 = pneg %p18
    %p25 = scmp.eq.s32.totalorder %s9, 1
    %p26 = por %p24, %p25
    %p27 = scmp.ne.s32.totalorder %s19, %s22
    %p28 = scmp.eq.s32.totalorder %s9, 0
    %p29 = por %p27, %p28
    %p30 = scmp.ne.s32.totalorder %s19, %s22
    %p31 = scmp.eq.s32.totalorder %s14, 1
    %p32 = por %p30, %p31
    %p33 = scmp.ne.s32.totalorder %s22, %s23
    %p34 = scmp.eq.s32.totalorder %s14, 0
    %p35 = por %p33, %p34
    %p36 = scmp.ne.s32.totalorder %s22, %s23
    %p37 = scmp.eq.s32.totalorder %s15, 1
    %p38 = por %p36, %p37
    %p40 = scmp.ne.s32.totalorder %s23, %s39
    %p41 = scmp.eq.s32.totalorder %s15, 0
    %p42 = por %p40, %p41
    %s44 = sadd.s32 %s43, 1
    %p47 = scmp.eq.s32.totalorder %s9, 1
    %p48 = scmp.ne.s32.totalorder %s43, %s45
    %p49 = scmp.eq.s32.totalorder %s9, 0
    %p50 = por %p48, %p49
    %p51 = scmp.ne.s32.totalorder %s43, %s45
    %p52 = scmp.eq.s32.totalorder %s14, 1
    %p53 = por %p51, %p52
    %p54 = scmp.ne.s32.totalorder %s45, %s46
    %p55 = scmp.eq.s32.totalorder %s14, 0
    %p56 = por %p54, %p55
    %p57 = scmp.ne.s32.totalorder %s45, %s46
    %p58 = scmp.eq.s32.totalorder %s15, 1
    %p59 = por %p57, %p58
    %p61 = scmp.ne.s32.totalorder %s46, %s60
    %p62 = scmp.eq.s32.totalorder %s15, 0
    %p63 = por %p61, %p62
    %s65 = sadd.s32 %s64, 1
    %p68 = scmp.eq.s32.totalorder %s9, 1
    %p69 = scmp.ne.s32.totalorder %s64, %s66
    %p70 = scmp.eq.s32.totalorder %s9, 0
    %p71 = por %p69, %p70
    %p72 = scmp.ne.s32.totalorder %s64, %s66
    %p73 = scmp.eq.s32.totalorder %s14, 1
    %p74 = por %p72, %p73
    %p75 = scmp.ne.s32.totalorder %s66, %s67
    %p76 = scmp.eq.s32.totalorder %s14, 0
    %p77 = por %p75, %p76
    %p78 = scmp.ne.s32.totalorder %s66, %s67
    %p79 = scmp.eq.s32.totalorder %s15, 1
    %p80 = por %p78, %p79
    %p82 = scmp.ne.s32.totalorder %s67, %s81
    %p83 = scmp.eq.s32.totalorder %s15, 0
    %p84 = por %p82, %p83
    %s85 = ssub.s32 %s9, %s16
    %p86 = scmp.eq.s32.totalorder %s85, 0
    %s88 = sadd.s32 %s87, 1
    %s89 = scalar_select %p86, %s87, %s88
    %p92 = pneg %p86
    %p93 = scmp.eq.s32.totalorder %s9, 1
    %p94 = por %p92, %p93
    %p95 = scmp.ne.s32.totalorder %s87, %s90
    %p96 = scmp.eq.s32.totalorder %s9, 0
    %p97 = por %p95, %p96
    %p98 = scmp.ne.s32.totalorder %s87, %s90
    %p99 = scmp.eq.s32.totalorder %s14, 1
    %p100 = por %p98, %p99
    %p101 = scmp.ne.s32.totalorder %s90, %s91
    %p102 = scmp.eq.s32.totalorder %s14, 0
    %p103 = por %p101, %p102
    %p104 = scmp.ne.s32.totalorder %s90, %s91
    %p105 = scmp.eq.s32.totalorder %s15, 1
    %p106 = por %p104, %p105
    %p108 = scmp.ne.s32.totalorder %s91, %s107
    %p109 = scmp.eq.s32.totalorder %s15, 0
    %p110 = por %p108, %p109
    %p111 = scmp.le.s32.totalorder 1, %s9
    %p112 = scmp.lt.s32.totalorder %s9, 3
    %p113 = pnand %p111, %p112
    %p114 = pneg %p113
    // Predicated region
    $region9: #{conv_layer_forward.2} parent=5 // pred_check
      _
    $region10: #{conv_layer_forward.2} parent=5 // pred_check_branch
      %116 = sbr.rel (%p113) target = $region12
    $region11: #{conv_layer_forward.2} parent=5 // pred_region
      %s117 = ssub.s32 %s9, 1
      // Predicated region
      $region13: #{conv_layer_forward.2} parent=11 // pred_check
        %p118 = pneg %p56
      $region14: #{conv_layer_forward.2} parent=11 // pred_check_branch
        %120 = sbr.rel (%p118) target = $region16
      $region15: #{conv_layer_forward.2} parent=11 // pred_region
        _
      $region16: #{conv_layer_forward.2} parent=11 // pred_fallthru
        _
      // Predicated region
      $region17: #{conv_layer_forward.2} parent=11 // pred_check
        %p121 = pneg %p77
      $region18: #{conv_layer_forward.2} parent=11 // pred_check_branch
        %123 = sbr.rel (%p121) target = $region20
      $region19: #{conv_layer_forward.2} parent=11 // pred_region
        _
      $region20: #{conv_layer_forward.2} parent=11 // pred_fallthru
        _
    $region12: #{conv_layer_forward.2} parent=5 // pred_fallthru
      _
    %p124 = scmp.lt.s32.totalorder %s9, 2
    // Predicated region
    $region21: #{conv_layer_forward.2} parent=5 // pred_check
      %p125 = pneg %p124
    $region22: #{conv_layer_forward.2} parent=5 // pred_check_branch
      %127 = sbr.rel (%p125) target = $region24
    $region23: #{conv_layer_forward.2} parent=5 // pred_region
      // Predicated region
      $region25: #{conv_layer_forward.2} parent=23 // pred_check
        %p128 = pneg %p29
      $region26: #{conv_layer_forward.2} parent=23 // pred_check_branch
        %130 = sbr.rel (%p128) target = $region28
      $region27: #{conv_layer_forward.2} parent=23 // pred_region
        %s131 = smul.u32 64, %s9
        %p132 = scmp.lt.s32.totalorder %s131, 127
        %s133 = scalar_select %p132, %s131, 127
        %s134 = smul.addr %s133, 4
        %s135 = scalar_lea.vmem %s0, %s134
        %s136 = smul.u32 64, %s9
      $region28: #{conv_layer_forward.2} parent=23 // pred_fallthru
        _
    $region24: #{conv_layer_forward.2} parent=5 // pred_fallthru
      _
    %p137 = scmp.le.s32.totalorder 1, %s9
    %p138 = scmp.lt.s32.totalorder %s9, 3
    %p139 = pnand %p137, %p138
    %p140 = pneg %p139
    // Predicated region
    $region29: #{conv_layer_forward.2} parent=5 // pred_check
      _
    $region30: #{conv_layer_forward.2} parent=5 // pred_check_branch
      %142 = sbr.rel (%p139) target = $region32
    $region31: #{conv_layer_forward.2} parent=5 // pred_region
      %s143 = ssub.s32 %s9, 1
      %s144 = smul.u32 64, %s14
      %p145 = scmp.lt.s32.totalorder %s144, 127
      %s146 = scalar_select %p145, %s144, 127
      %s147 = smul.addr %s146, 4
      %s148 = scalar_lea.vmem %s0, %s147
      %p149 = pneg %p35
      %p150 = pneg %p32
      %p151 = pneg %p56
      %p152 = pneg %p53
      %p153 = pneg %p77
      %p154 = pneg %p74
      %p155 = pneg %p103
      %p156 = pneg %p100
      %p157 = scmp.lt.s32.totalorder %s14, 1
      %s158 = scalar_select %p157, %s14, 1
      %s159 = smul.addr %s158, 8
      %s160 = scalar_lea.vmem %s3, %s159
      %s161 = smul.u32 64, %s14
      %p162 = scmp.lt.s32.totalorder %s161, 127
      %s163 = scalar_select %p162, %s161, 127
      %s164 = smul.addr %s163, 4
      %s165 = scalar_lea.vmem %s0, %s164
      %s166 = smul.u32 64, %s14
      %p167 = scmp.lt.s32.totalorder %s14, 1
      %s168 = scalar_select %p167, %s14, 1
      %s169 = smul.addr %s168, 8
      %s170 = scalar_lea.vmem %s3, %s169
      %v172 = vld [vmem:[%s165] sm:$0xf]
      %v173 = vld [vmem:[%s165 + $0x4] sm:$0xf]
      %v174 = vld [vmem:[%s165 + $0x8] sm:$0xf]
      %v175 = vld [vmem:[%s165 + $0xc] sm:$0xf]
      %v176 = vld [vmem:[%s165 + $0x10] sm:$0xf]
      %v177 = vld [vmem:[%s165 + $0x14] sm:$0xf]
      %v178 = vld [vmem:[%s165 + $0x18] sm:$0xf]
      %v179 = vld [vmem:[%s165 + $0x1c] sm:$0xf]
      %v180 = vld [vmem:[%s165 + $0x20] sm:$0xf]
      %v181 = vld [vmem:[%s165 + $0x24] sm:$0xf]
      %v182 = vld [vmem:[%s165 + $0x28] sm:$0xf]
      %v183 = vld [vmem:[%s165 + $0x2c] sm:$0xf]
      %v184 = vld [vmem:[%s165 + $0x30] sm:$0xf]
      %v185 = vld [vmem:[%s165 + $0x34] sm:$0xf]
      %v186 = vld [vmem:[%s165 + $0x38] sm:$0xf]
      %v187 = vld [vmem:[%s165 + $0x3c] sm:$0xf]
      %v188 = vld [vmem:[%s165 + $0x40] sm:$0xf]
      %v189 = vld [vmem:[%s165 + $0x44] sm:$0xf]
      %v190 = vld [vmem:[%s165 + $0x48] sm:$0xf]
      %v191 = vld [vmem:[%s165 + $0x4c] sm:$0xf]
      %v192 = vld [vmem:[%s165 + $0x50] sm:$0xf]
      %v193 = vld [vmem:[%s165 + $0x54] sm:$0xf]
      %v194 = vld [vmem:[%s165 + $0x58] sm:$0xf]
      %v195 = vld [vmem:[%s165 + $0x5c] sm:$0xf]
      %v196 = vld [vmem:[%s165 + $0x60] sm:$0xf]
      %v197 = vld [vmem:[%s165 + $0x64] sm:$0xf]
      %v198 = vld [vmem:[%s165 + $0x68] sm:$0xf]
      %v199 = vld [vmem:[%s165 + $0x6c] sm:$0xf]
      %v200 = vld [vmem:[%s165 + $0x70] sm:$0xf]
      %v201 = vld [vmem:[%s165 + $0x74] sm:$0xf]
      %v202 = vld [vmem:[%s165 + $0x78] sm:$0xf]
      %v203 = vld [vmem:[%s165 + $0x7c] sm:$0xf]
      %v204 = vld [vmem:[%s165 + $0x80] sm:$0xf]
      %v205 = vld [vmem:[%s165 + $0x84] sm:$0xf]
      %v206 = vld [vmem:[%s165 + $0x88] sm:$0xf]
      %v207 = vld [vmem:[%s165 + $0x8c] sm:$0xf]
      %v208 = vld [vmem:[%s165 + $0x90] sm:$0xf]
      %v209 = vld [vmem:[%s165 + $0x94] sm:$0xf]
      %v210 = vld [vmem:[%s165 + $0x98] sm:$0xf]
      %v211 = vld [vmem:[%s165 + $0x9c] sm:$0xf]
      %v212 = vld [vmem:[%s165 + $0xa0] sm:$0xf]
      %v213 = vld [vmem:[%s165 + $0xa4] sm:$0xf]
      %v214 = vld [vmem:[%s165 + $0xa8] sm:$0xf]
      %v215 = vld [vmem:[%s165 + $0xac] sm:$0xf]
      %v216 = vld [vmem:[%s165 + $0xb0] sm:$0xf]
      %v217 = vld [vmem:[%s165 + $0xb4] sm:$0xf]
      %v218 = vld [vmem:[%s165 + $0xb8] sm:$0xf]
      %v219 = vld [vmem:[%s165 + $0xbc] sm:$0xf]
      %v220 = vld [vmem:[%s165 + $0xc0] sm:$0xf]
      %v221 = vld [vmem:[%s165 + $0xc4] sm:$0xf]
      %v222 = vld [vmem:[%s165 + $0xc8] sm:$0xf]
      %v223 = vld [vmem:[%s165 + $0xcc] sm:$0xf]
      %v224 = vld [vmem:[%s165 + $0xd0] sm:$0xf]
      %v225 = vld [vmem:[%s165 + $0xd4] sm:$0xf]
      %v226 = vld [vmem:[%s165 + $0xd8] sm:$0xf]
      %v227 = vld [vmem:[%s165 + $0xdc] sm:$0xf]
      %v228 = vld [vmem:[%s165 + $0xe0] sm:$0xf]
      %v229 = vld [vmem:[%s165 + $0xe4] sm:$0xf]
      %v230 = vld [vmem:[%s165 + $0xe8] sm:$0xf]
      %v231 = vld [vmem:[%s165 + $0xec] sm:$0xf]
      %v232 = vld [vmem:[%s165 + $0xf0] sm:$0xf]
      %v233 = vld [vmem:[%s165 + $0xf4] sm:$0xf]
      %v234 = vld [vmem:[%s165 + $0xf8] sm:$0xf]
      %v235 = vld [vmem:[%s165 + $0xfc] sm:$0xf]
      %v236 = vld [vmem:[%s1] sm:$0xf]
      %v237 = vld [vmem:[%s1 + $0x4] sm:$0xf]
      %v238 = vld [vmem:[%s1 + $0x8] sm:$0xf]
      %v239 = vld [vmem:[%s1 + $0xc] sm:$0xf]
      %v240 = vld [vmem:[%s1 + $0x10] sm:$0xf]
      %v241 = vld [vmem:[%s1 + $0x14] sm:$0xf]
      %v242 = vld [vmem:[%s1 + $0x18] sm:$0xf]
      %v243 = vld [vmem:[%s1 + $0x1c] sm:$0xf]
      %v244 = vld [vmem:[%s1 + $0x20] sm:$0xf]
      %v245 = vld [vmem:[%s1 + $0x24] sm:$0xf]
      %v246 = vld [vmem:[%s1 + $0x28] sm:$0xf]
      %v247 = vld [vmem:[%s1 + $0x2c] sm:$0xf]
      %v248 = vld [vmem:[%s1 + $0x30] sm:$0xf]
      %v249 = vld [vmem:[%s1 + $0x34] sm:$0xf]
      %v250 = vld [vmem:[%s1 + $0x38] sm:$0xf]
      %v251 = vld [vmem:[%s1 + $0x3c] sm:$0xf]
      %v252 = vld [vmem:[%s2] sm:$0x1]
      %v254 = vlaneseq
      %v255 = vshrl.u32 %v254, 7
      %v256 = vsub.s32 0, %v255
      %v257 = vrot.slane %v252, %v256
      %v323 = vunpack.c.l.b16 %v172
      %v324 = vunpack.c.l.b16 %v173
      %v325 = vunpack.c.l.b16 %v174
      %v326 = vunpack.c.l.b16 %v175
      %v327 = vunpack.c.l.b16 %v176
      %v328 = vunpack.c.l.b16 %v177
      %v329 = vunpack.c.l.b16 %v178
      %v330 = vunpack.c.l.b16 %v179
      %v331 = vunpack.c.l.b16 %v180
      %v332 = vunpack.c.l.b16 %v181
      %v333 = vunpack.c.l.b16 %v182
      %v334 = vunpack.c.l.b16 %v183
      %v335 = vunpack.c.l.b16 %v184
      %v336 = vunpack.c.l.b16 %v185
      %v337 = vunpack.c.l.b16 %v186
      %v338 = vunpack.c.l.b16 %v187
      %v339 = vunpack.c.l.b16 %v188
      %v340 = vunpack.c.l.b16 %v189
      %v341 = vunpack.c.l.b16 %v190
      %v342 = vunpack.c.l.b16 %v191
      %v343 = vunpack.c.l.b16 %v192
      %v344 = vunpack.c.l.b16 %v193
      %v345 = vunpack.c.l.b16 %v194
      %v346 = vunpack.c.l.b16 %v195
      %v347 = vunpack.c.l.b16 %v196
      %v348 = vunpack.c.l.b16 %v197
      %v349 = vunpack.c.l.b16 %v198
      %v350 = vunpack.c.l.b16 %v199
      %v351 = vunpack.c.l.b16 %v200
      %v352 = vunpack.c.l.b16 %v201
      %v353 = vunpack.c.l.b16 %v202
      %v354 = vunpack.c.l.b16 %v203
      %v355 = vunpack.c.l.b16 %v204
      %v356 = vunpack.c.l.b16 %v205
      %v357 = vunpack.c.l.b16 %v206
      %v358 = vunpack.c.l.b16 %v207
      %v359 = vunpack.c.l.b16 %v208
      %v360 = vunpack.c.l.b16 %v209
      %v361 = vunpack.c.l.b16 %v210
      %v362 = vunpack.c.l.b16 %v211
      %v363 = vunpack.c.l.b16 %v212
      %v364 = vunpack.c.l.b16 %v213
      %v365 = vunpack.c.l.b16 %v214
      %v366 = vunpack.c.l.b16 %v215
      %v367 = vunpack.c.l.b16 %v216
      %v368 = vunpack.c.l.b16 %v217
      %v369 = vunpack.c.l.b16 %v218
      %v370 = vunpack.c.l.b16 %v219
      %v371 = vunpack.c.l.b16 %v220
      %v372 = vunpack.c.l.b16 %v221
      %v373 = vunpack.c.l.b16 %v222
      %v374 = vunpack.c.l.b16 %v223
      %v375 = vunpack.c.l.b16 %v224
      %v376 = vunpack.c.l.b16 %v225
      %v377 = vunpack.c.l.b16 %v226
      %v378 = vunpack.c.l.b16 %v227
      %v379 = vunpack.c.l.b16 %v228
      %v380 = vunpack.c.l.b16 %v229
      %v381 = vunpack.c.l.b16 %v230
      %v382 = vunpack.c.l.b16 %v231
      %v383 = vunpack.c.l.b16 %v232
      %v384 = vunpack.c.l.b16 %v233
      %v385 = vunpack.c.l.b16 %v234
      %v386 = vunpack.c.l.b16 %v235
      %v387 = vpack.c.b16 %v324, %v323
      %v388 = vpack.c.b16 %v326, %v325
      %v389 = vpack.c.b16 %v328, %v327
      %v390 = vpack.c.b16 %v330, %v329
      %v391 = vpack.c.b16 %v332, %v331
      %v392 = vpack.c.b16 %v334, %v333
      %v393 = vpack.c.b16 %v336, %v335
      %v394 = vpack.c.b16 %v338, %v337
      %v395 = vpack.c.b16 %v340, %v339
      %v396 = vpack.c.b16 %v342, %v341
      %v397 = vpack.c.b16 %v344, %v343
      %v398 = vpack.c.b16 %v346, %v345
      %v399 = vpack.c.b16 %v348, %v347
      %v400 = vpack.c.b16 %v350, %v349
      %v401 = vpack.c.b16 %v352, %v351
      %v402 = vpack.c.b16 %v354, %v353
      %v403 = vpack.c.b16 %v356, %v355
      %v404 = vpack.c.b16 %v358, %v357
      %v405 = vpack.c.b16 %v360, %v359
      %v406 = vpack.c.b16 %v362, %v361
      %v407 = vpack.c.b16 %v364, %v363
      %v408 = vpack.c.b16 %v366, %v365
      %v409 = vpack.c.b16 %v368, %v367
      %v410 = vpack.c.b16 %v370, %v369
      %v411 = vpack.c.b16 %v372, %v371
      %v412 = vpack.c.b16 %v374, %v373
      %v413 = vpack.c.b16 %v376, %v375
      %v414 = vpack.c.b16 %v378, %v377
      %v415 = vpack.c.b16 %v380, %v379
      %v416 = vpack.c.b16 %v382, %v381
      %v417 = vpack.c.b16 %v384, %v383
      %v418 = vpack.c.b16 %v386, %v385
      %v467 = vunpack.c.l.b16 %v236
      %v468 = vunpack.c.l.b16 %v237
      %v469 = vunpack.c.l.b16 %v238
      %v470 = vunpack.c.l.b16 %v239
      %v471 = vunpack.c.l.b16 %v240
      %v472 = vunpack.c.l.b16 %v241
      %v473 = vunpack.c.l.b16 %v242
      %v474 = vunpack.c.l.b16 %v243
      %v475 = vunpack.c.l.b16 %v244
      %v476 = vunpack.c.l.b16 %v245
      %v477 = vunpack.c.l.b16 %v246
      %v478 = vunpack.c.l.b16 %v247
      %v479 = vunpack.c.l.b16 %v248
      %v480 = vunpack.c.l.b16 %v249
      %v481 = vunpack.c.l.b16 %v250
      %v482 = vunpack.c.l.b16 %v251
      %v483 = vpack.c.b16 %v468, %v467
      %v484 = vpack.c.b16 %v470, %v469
      %v485 = vpack.c.b16 %v472, %v471
      %v486 = vpack.c.b16 %v474, %v473
      %v487 = vpack.c.b16 %v476, %v475
      %v488 = vpack.c.b16 %v478, %v477
      %v489 = vpack.c.b16 %v480, %v479
      %v490 = vpack.c.b16 %v482, %v481
      %499 = vmatprep.subr.bf16.mxu0 0
      %500 = vmatpush1.bf16.msra.mxu0 %v490
      %501 = vmatprep.subr.bf16.mxu0 0
      %502 = vmatpush1.bf16.msra.mxu0 %v489
      %503 = vmatprep.subr.bf16.mxu0 0
      %504 = vmatpush1.bf16.msra.mxu0 %v488
      %505 = vmatprep.subr.bf16.mxu0 0
      %506 = vmatpush1.bf16.msra.mxu0 %v487
      %507 = vmatprep.subr.bf16.mxu0 0
      %508 = vmatpush1.bf16.msra.mxu0 %v486
      %509 = vmatprep.subr.bf16.mxu0 0
      %510 = vmatpush1.bf16.msra.mxu0 %v485
      %511 = vmatprep.subr.bf16.mxu0 0
      %512 = vmatpush1.bf16.msra.mxu0 %v484
      %513 = vmatprep.subr.bf16.mxu0 0
      %514 = vmatpush1.bf16.msra.mxu0 %v483
      %515 = vmatprep.subr.bf16.mxu0 0
      %516 = vmatpush2.bf16.msra.mxu0 0
      %517 = vmatprep.subr.bf16.mxu0 0
      %518 = vmatpush2.bf16.msra.mxu0 0
      %519 = vmatprep.subr.bf16.mxu0 0
      %520 = vmatpush2.bf16.msra.mxu0 0
      %521 = vmatprep.subr.bf16.mxu0 0
      %522 = vmatpush2.bf16.msra.mxu0 0
      %523 = vmatprep.subr.bf16.mxu0 0
      %524 = vmatpush2.bf16.msra.mxu0 0
      %525 = vmatprep.subr.bf16.mxu0 0
      %526 = vmatpush2.bf16.msra.mxu0 0
      %527 = vmatprep.subr.bf16.mxu0 0
      %528 = vmatpush2.bf16.msra.mxu0 0
      %529 = vmatprep.subr.bf16.mxu0 0
      %530 = vmatpush2.bf16.msra.mxu0 0
      %531 = vmatprep.mubr.bf16.mxu0 0
      %532 = vmatmul.mubr.bf16.gmra.mxu0 %v387
      %v533 = vpop.f32.mrf.mxu0
      %v534 = vadd.f32 %v257, %v533
      %v535 = vpop.f32.mrf.mxu0
      %v536 = vpop.f32.mrf.mxu0
      %v537 = vadd.f32 %v257, %v536
      %v538 = vpop.f32.mrf.mxu0
      %539 = vmatprep.mubr.bf16.mxu0 0
      %540 = vmatmul.mubr.bf16.gmra.mxu0 %v388
      %v541 = vpop.f32.mrf.mxu0
      %v542 = vadd.f32 %v257, %v541
      %v543 = vpop.f32.mrf.mxu0
      %v544 = vpop.f32.mrf.mxu0
      %v545 = vadd.f32 %v257, %v544
      %v546 = vpop.f32.mrf.mxu0
      %547 = vmatprep.mubr.bf16.mxu0 0
      %548 = vmatmul.mubr.bf16.gmra.mxu0 %v389
      %v549 = vpop.f32.mrf.mxu0
      %v550 = vadd.f32 %v257, %v549
      %v551 = vpop.f32.mrf.mxu0
      %v552 = vpop.f32.mrf.mxu0
      %v553 = vadd.f32 %v257, %v552
      %v554 = vpop.f32.mrf.mxu0
      %555 = vmatprep.mubr.bf16.mxu0 0
      %556 = vmatmul.mubr.bf16.gmra.mxu0 %v390
      %v557 = vpop.f32.mrf.mxu0
      %v558 = vadd.f32 %v257, %v557
      %v559 = vpop.f32.mrf.mxu0
      %v560 = vpop.f32.mrf.mxu0
      %v561 = vadd.f32 %v257, %v560
      %v562 = vpop.f32.mrf.mxu0
      %563 = vmatprep.mubr.bf16.mxu0 0
      %564 = vmatmul.mubr.bf16.gmra.mxu0 %v391
      %v565 = vpop.f32.mrf.mxu0
      %v566 = vadd.f32 %v257, %v565
      %v567 = vpop.f32.mrf.mxu0
      %v568 = vpop.f32.mrf.mxu0
      %v569 = vadd.f32 %v257, %v568
      %v570 = vpop.f32.mrf.mxu0
      %571 = vmatprep.mubr.bf16.mxu0 0
      %572 = vmatmul.mubr.bf16.gmra.mxu0 %v392
      %v573 = vpop.f32.mrf.mxu0
      %v574 = vadd.f32 %v257, %v573
      %v575 = vpop.f32.mrf.mxu0
      %v576 = vpop.f32.mrf.mxu0
      %v577 = vadd.f32 %v257, %v576
      %v578 = vpop.f32.mrf.mxu0
      %579 = vmatprep.mubr.bf16.mxu0 0
      %580 = vmatmul.mubr.bf16.gmra.mxu0 %v393
      %v581 = vpop.f32.mrf.mxu0
      %v582 = vadd.f32 %v257, %v581
      %v583 = vpop.f32.mrf.mxu0
      %v584 = vpop.f32.mrf.mxu0
      %v585 = vadd.f32 %v257, %v584
      %v586 = vpop.f32.mrf.mxu0
      %587 = vmatprep.mubr.bf16.mxu0 0
      %588 = vmatmul.mubr.bf16.gmra.mxu0 %v394
      %v589 = vpop.f32.mrf.mxu0
      %v590 = vadd.f32 %v257, %v589
      %v591 = vpop.f32.mrf.mxu0
      %v592 = vpop.f32.mrf.mxu0
      %v593 = vadd.f32 %v257, %v592
      %v594 = vpop.f32.mrf.mxu0
      %595 = vmatprep.mubr.bf16.mxu0 0
      %596 = vmatmul.mubr.bf16.gmra.mxu0 %v395
      %v597 = vpop.f32.mrf.mxu0
      %v598 = vadd.f32 %v257, %v597
      %v599 = vpop.f32.mrf.mxu0
      %v600 = vpop.f32.mrf.mxu0
      %v601 = vadd.f32 %v257, %v600
      %v602 = vpop.f32.mrf.mxu0
      %603 = vmatprep.mubr.bf16.mxu0 0
      %604 = vmatmul.mubr.bf16.gmra.mxu0 %v396
      %v605 = vpop.f32.mrf.mxu0
      %v606 = vadd.f32 %v257, %v605
      %v607 = vpop.f32.mrf.mxu0
      %v608 = vpop.f32.mrf.mxu0
      %v609 = vadd.f32 %v257, %v608
      %v610 = vpop.f32.mrf.mxu0
      %611 = vmatprep.mubr.bf16.mxu0 0
      %612 = vmatmul.mubr.bf16.gmra.mxu0 %v397
      %v613 = vpop.f32.mrf.mxu0
      %v614 = vadd.f32 %v257, %v613
      %v615 = vpop.f32.mrf.mxu0
      %v616 = vpop.f32.mrf.mxu0
      %v617 = vadd.f32 %v257, %v616
      %v618 = vpop.f32.mrf.mxu0
      %619 = vmatprep.mubr.bf16.mxu0 0
      %620 = vmatmul.mubr.bf16.gmra.mxu0 %v398
      %v621 = vpop.f32.mrf.mxu0
      %v622 = vadd.f32 %v257, %v621
      %v623 = vpop.f32.mrf.mxu0
      %v624 = vpop.f32.mrf.mxu0
      %v625 = vadd.f32 %v257, %v624
      %v626 = vpop.f32.mrf.mxu0
      %627 = vmatprep.mubr.bf16.mxu0 0
      %628 = vmatmul.mubr.bf16.gmra.mxu0 %v399
      %v629 = vpop.f32.mrf.mxu0
      %v630 = vadd.f32 %v257, %v629
      %v631 = vpop.f32.mrf.mxu0
      %v632 = vpop.f32.mrf.mxu0
      %v633 = vadd.f32 %v257, %v632
      %v634 = vpop.f32.mrf.mxu0
      %635 = vmatprep.mubr.bf16.mxu0 0
      %636 = vmatmul.mubr.bf16.gmra.mxu0 %v400
      %v637 = vpop.f32.mrf.mxu0
      %v638 = vadd.f32 %v257, %v637
      %v639 = vpop.f32.mrf.mxu0
      %v640 = vpop.f32.mrf.mxu0
      %v641 = vadd.f32 %v257, %v640
      %v642 = vpop.f32.mrf.mxu0
      %643 = vmatprep.mubr.bf16.mxu0 0
      %644 = vmatmul.mubr.bf16.gmra.mxu0 %v401
      %v645 = vpop.f32.mrf.mxu0
      %v646 = vadd.f32 %v257, %v645
      %v647 = vpop.f32.mrf.mxu0
      %v648 = vpop.f32.mrf.mxu0
      %v649 = vadd.f32 %v257, %v648
      %v650 = vpop.f32.mrf.mxu0
      %651 = vmatprep.mubr.bf16.mxu0 0
      %652 = vmatmul.mubr.bf16.gmra.mxu0 %v402
      %v653 = vpop.f32.mrf.mxu0
      %v654 = vadd.f32 %v257, %v653
      %v655 = vpop.f32.mrf.mxu0
      %v656 = vpop.f32.mrf.mxu0
      %v657 = vadd.f32 %v257, %v656
      %v658 = vpop.f32.mrf.mxu0
      %659 = vmatprep.mubr.bf16.mxu0 0
      %660 = vmatmul.mubr.bf16.gmra.mxu0 %v403
      %v661 = vpop.f32.mrf.mxu0
      %v662 = vadd.f32 %v257, %v661
      %v663 = vpop.f32.mrf.mxu0
      %v664 = vpop.f32.mrf.mxu0
      %v665 = vadd.f32 %v257, %v664
      %v666 = vpop.f32.mrf.mxu0
      %667 = vmatprep.mubr.bf16.mxu0 0
      %668 = vmatmul.mubr.bf16.gmra.mxu0 %v404
      %v669 = vpop.f32.mrf.mxu0
      %v670 = vadd.f32 %v257, %v669
      %v671 = vpop.f32.mrf.mxu0
      %v672 = vpop.f32.mrf.mxu0
      %v673 = vadd.f32 %v257, %v672
      %v674 = vpop.f32.mrf.mxu0
      %675 = vmatprep.mubr.bf16.mxu0 0
      %676 = vmatmul.mubr.bf16.gmra.mxu0 %v405
      %v677 = vpop.f32.mrf.mxu0
      %v678 = vadd.f32 %v257, %v677
      %v679 = vpop.f32.mrf.mxu0
      %v680 = vpop.f32.mrf.mxu0
      %v681 = vadd.f32 %v257, %v680
      %v682 = vpop.f32.mrf.mxu0
      %683 = vmatprep.mubr.bf16.mxu0 0
      %684 = vmatmul.mubr.bf16.gmra.mxu0 %v406
      %v685 = vpop.f32.mrf.mxu0
      %v686 = vadd.f32 %v257, %v685
      %v687 = vpop.f32.mrf.mxu0
      %v688 = vpop.f32.mrf.mxu0
      %v689 = vadd.f32 %v257, %v688
      %v690 = vpop.f32.mrf.mxu0
      %691 = vmatprep.mubr.bf16.mxu0 0
      %692 = vmatmul.mubr.bf16.gmra.mxu0 %v407
      %v693 = vpop.f32.mrf.mxu0
      %v694 = vadd.f32 %v257, %v693
      %v695 = vpop.f32.mrf.mxu0
      %v696 = vpop.f32.mrf.mxu0
      %v697 = vadd.f32 %v257, %v696
      %v698 = vpop.f32.mrf.mxu0
      %699 = vmatprep.mubr.bf16.mxu0 0
      %700 = vmatmul.mubr.bf16.gmra.mxu0 %v408
      %v701 = vpop.f32.mrf.mxu0
      %v702 = vadd.f32 %v257, %v701
      %v703 = vpop.f32.mrf.mxu0
      %v704 = vpop.f32.mrf.mxu0
      %v705 = vadd.f32 %v257, %v704
      %v706 = vpop.f32.mrf.mxu0
      %707 = vmatprep.mubr.bf16.mxu0 0
      %708 = vmatmul.mubr.bf16.gmra.mxu0 %v409
      %v709 = vpop.f32.mrf.mxu0
      %v710 = vadd.f32 %v257, %v709
      %v711 = vpop.f32.mrf.mxu0
      %v712 = vpop.f32.mrf.mxu0
      %v713 = vadd.f32 %v257, %v712
      %v714 = vpop.f32.mrf.mxu0
      %715 = vmatprep.mubr.bf16.mxu0 0
      %716 = vmatmul.mubr.bf16.gmra.mxu0 %v410
      %v717 = vpop.f32.mrf.mxu0
      %v718 = vadd.f32 %v257, %v717
      %v719 = vpop.f32.mrf.mxu0
      %v720 = vpop.f32.mrf.mxu0
      %v721 = vadd.f32 %v257, %v720
      %v722 = vpop.f32.mrf.mxu0
      %723 = vmatprep.mubr.bf16.mxu0 0
      %724 = vmatmul.mubr.bf16.gmra.mxu0 %v411
      %v725 = vpop.f32.mrf.mxu0
      %v726 = vadd.f32 %v257, %v725
      %v727 = vpop.f32.mrf.mxu0
      %v728 = vpop.f32.mrf.mxu0
      %v729 = vadd.f32 %v257, %v728
      %v730 = vpop.f32.mrf.mxu0
      %731 = vmatprep.mubr.bf16.mxu0 0
      %732 = vmatmul.mubr.bf16.gmra.mxu0 %v412
      %v733 = vpop.f32.mrf.mxu0
      %v734 = vadd.f32 %v257, %v733
      %v735 = vpop.f32.mrf.mxu0
      %v736 = vpop.f32.mrf.mxu0
      %v737 = vadd.f32 %v257, %v736
      %v738 = vpop.f32.mrf.mxu0
      %739 = vmatprep.mubr.bf16.mxu0 0
      %740 = vmatmul.mubr.bf16.gmra.mxu0 %v413
      %v741 = vpop.f32.mrf.mxu0
      %v742 = vadd.f32 %v257, %v741
      %v743 = vpop.f32.mrf.mxu0
      %v744 = vpop.f32.mrf.mxu0
      %v745 = vadd.f32 %v257, %v744
      %v746 = vpop.f32.mrf.mxu0
      %747 = vmatprep.mubr.bf16.mxu0 0
      %748 = vmatmul.mubr.bf16.gmra.mxu0 %v414
      %v749 = vpop.f32.mrf.mxu0
      %v750 = vadd.f32 %v257, %v749
      %v751 = vpop.f32.mrf.mxu0
      %v752 = vpop.f32.mrf.mxu0
      %v753 = vadd.f32 %v257, %v752
      %v754 = vpop.f32.mrf.mxu0
      %755 = vmatprep.mubr.bf16.mxu0 0
      %756 = vmatmul.mubr.bf16.gmra.mxu0 %v415
      %v757 = vpop.f32.mrf.mxu0
      %v758 = vadd.f32 %v257, %v757
      %v759 = vpop.f32.mrf.mxu0
      %v760 = vpop.f32.mrf.mxu0
      %v761 = vadd.f32 %v257, %v760
      %v762 = vpop.f32.mrf.mxu0
      %763 = vmatprep.mubr.bf16.mxu0 0
      %764 = vmatmul.mubr.bf16.gmra.mxu0 %v416
      %v765 = vpop.f32.mrf.mxu0
      %v766 = vadd.f32 %v257, %v765
      %v767 = vpop.f32.mrf.mxu0
      %v768 = vpop.f32.mrf.mxu0
      %v769 = vadd.f32 %v257, %v768
      %v770 = vpop.f32.mrf.mxu0
      %771 = vmatprep.mubr.bf16.mxu0 0
      %772 = vmatmul.mubr.bf16.gmra.mxu0 %v417
      %v773 = vpop.f32.mrf.mxu0
      %v774 = vadd.f32 %v257, %v773
      %v775 = vpop.f32.mrf.mxu0
      %v776 = vpop.f32.mrf.mxu0
      %v777 = vadd.f32 %v257, %v776
      %v778 = vpop.f32.mrf.mxu0
      %779 = vmatprep.mubr.bf16.mxu0 0
      %780 = vmatmul.mubr.bf16.gmra.mxu0 %v418
      %v781 = vpop.f32.mrf.mxu0
      %v782 = vadd.f32 %v257, %v781
      %v783 = vpop.f32.mrf.mxu0
      %v784 = vpop.f32.mrf.mxu0
      %v785 = vadd.f32 %v257, %v784
      %v786 = vpop.f32.mrf.mxu0
      %787 = vdwg.mxu0
      %v788 = vadd.f32 %v534, %v537
      %v789 = vadd.f32 %v788, %v542
      %v790 = vadd.f32 %v789, %v545
      %v791 = vadd.f32 %v790, %v550
      %v792 = vadd.f32 %v791, %v553
      %v793 = vadd.f32 %v792, %v558
      %v794 = vadd.f32 %v793, %v561
      %v795 = vadd.f32 %v794, %v566
      %v796 = vadd.f32 %v795, %v569
      %v797 = vadd.f32 %v796, %v574
      %v798 = vadd.f32 %v797, %v577
      %v799 = vadd.f32 %v798, %v582
      %v800 = vadd.f32 %v799, %v585
      %v801 = vadd.f32 %v800, %v590
      %v802 = vadd.f32 %v801, %v593
      %v803 = vadd.f32 %v802, %v598
      %v804 = vadd.f32 %v803, %v601
      %v805 = vadd.f32 %v804, %v606
      %v806 = vadd.f32 %v805, %v609
      %v807 = vadd.f32 %v806, %v614
      %v808 = vadd.f32 %v807, %v617
      %v809 = vadd.f32 %v808, %v622
      %v810 = vadd.f32 %v809, %v625
      %v811 = vadd.f32 %v810, %v630
      %v812 = vadd.f32 %v811, %v633
      %v813 = vadd.f32 %v812, %v638
      %v814 = vadd.f32 %v813, %v641
      %v815 = vadd.f32 %v814, %v646
      %v816 = vadd.f32 %v815, %v649
      %v817 = vadd.f32 %v816, %v654
      %v818 = vadd.f32 %v817, %v657
      %v819 = vadd.f32 %v818, %v662
      %v820 = vadd.f32 %v819, %v665
      %v821 = vadd.f32 %v820, %v670
      %v822 = vadd.f32 %v821, %v673
      %v823 = vadd.f32 %v822, %v678
      %v824 = vadd.f32 %v823, %v681
      %v825 = vadd.f32 %v824, %v686
      %v826 = vadd.f32 %v825, %v689
      %v827 = vadd.f32 %v826, %v694
      %v828 = vadd.f32 %v827, %v697
      %v829 = vadd.f32 %v828, %v702
      %v830 = vadd.f32 %v829, %v705
      %v831 = vadd.f32 %v830, %v710
      %v832 = vadd.f32 %v831, %v713
      %v833 = vadd.f32 %v832, %v718
      %v834 = vadd.f32 %v833, %v721
      %v835 = vadd.f32 %v834, %v726
      %v836 = vadd.f32 %v835, %v729
      %v837 = vadd.f32 %v836, %v734
      %v838 = vadd.f32 %v837, %v737
      %v839 = vadd.f32 %v838, %v742
      %v840 = vadd.f32 %v839, %v745
      %v841 = vadd.f32 %v840, %v750
      %v842 = vadd.f32 %v841, %v753
      %v843 = vadd.f32 %v842, %v758
      %v844 = vadd.f32 %v843, %v761
      %v845 = vadd.f32 %v844, %v766
      %v846 = vadd.f32 %v845, %v769
      %v847 = vadd.f32 %v846, %v774
      %v848 = vadd.f32 %v847, %v777
      %v849 = vadd.f32 %v848, %v782
      %v850 = vadd.f32 %v849, %v785
      %v851 = vrot.slane %v850, 4
      %v852 = vadd.f32 %v850, %v851
      %v853 = vrot.slane %v852, 2
      %v854 = vadd.f32 %v852, %v853
      %v855 = vrot.slane %v854, 1
      %v856 = vadd.f32 %v854, %v855
      %v857 = vmul.f32 %v534, %v534
      %v858 = vmul.f32 %v537, %v537
      %v859 = vmul.f32 %v542, %v542
      %v860 = vmul.f32 %v545, %v545
      %v861 = vmul.f32 %v550, %v550
      %v862 = vmul.f32 %v553, %v553
      %v863 = vmul.f32 %v558, %v558
      %v864 = vmul.f32 %v561, %v561
      %v865 = vmul.f32 %v566, %v566
      %v866 = vmul.f32 %v569, %v569
      %v867 = vmul.f32 %v574, %v574
      %v868 = vmul.f32 %v577, %v577
      %v869 = vmul.f32 %v582, %v582
      %v870 = vmul.f32 %v585, %v585
      %v871 = vmul.f32 %v590, %v590
      %v872 = vmul.f32 %v593, %v593
      %v873 = vmul.f32 %v598, %v598
      %v874 = vmul.f32 %v601, %v601
      %v875 = vmul.f32 %v606, %v606
      %v876 = vmul.f32 %v609, %v609
      %v877 = vmul.f32 %v614, %v614
      %v878 = vmul.f32 %v617, %v617
      %v879 = vmul.f32 %v622, %v622
      %v880 = vmul.f32 %v625, %v625
      %v881 = vmul.f32 %v630, %v630
      %v882 = vmul.f32 %v633, %v633
      %v883 = vmul.f32 %v638, %v638
      %v884 = vmul.f32 %v641, %v641
      %v885 = vmul.f32 %v646, %v646
      %v886 = vmul.f32 %v649, %v649
      %v887 = vmul.f32 %v654, %v654
      %v888 = vmul.f32 %v657, %v657
      %v889 = vmul.f32 %v662, %v662
      %v890 = vmul.f32 %v665, %v665
      %v891 = vmul.f32 %v670, %v670
      %v892 = vmul.f32 %v673, %v673
      %v893 = vmul.f32 %v678, %v678
      %v894 = vmul.f32 %v681, %v681
      %v895 = vmul.f32 %v686, %v686
      %v896 = vmul.f32 %v689, %v689
      %v897 = vmul.f32 %v694, %v694
      %v898 = vmul.f32 %v697, %v697
      %v899 = vmul.f32 %v702, %v702
      %v900 = vmul.f32 %v705, %v705
      %v901 = vmul.f32 %v710, %v710
      %v902 = vmul.f32 %v713, %v713
      %v903 = vmul.f32 %v718, %v718
      %v904 = vmul.f32 %v721, %v721
      %v905 = vmul.f32 %v726, %v726
      %v906 = vmul.f32 %v729, %v729
      %v907 = vmul.f32 %v734, %v734
      %v908 = vmul.f32 %v737, %v737
      %v909 = vmul.f32 %v742, %v742
      %v910 = vmul.f32 %v745, %v745
      %v911 = vmul.f32 %v750, %v750
      %v912 = vmul.f32 %v753, %v753
      %v913 = vmul.f32 %v758, %v758
      %v914 = vmul.f32 %v761, %v761
      %v915 = vmul.f32 %v766, %v766
      %v916 = vmul.f32 %v769, %v769
      %v917 = vmul.f32 %v774, %v774
      %v918 = vmul.f32 %v777, %v777
      %v919 = vmul.f32 %v782, %v782
      %v920 = vmul.f32 %v785, %v785
      %v921 = vadd.f32 %v857, %v858
      %v922 = vadd.f32 %v921, %v859
      %v923 = vadd.f32 %v922, %v860
      %v924 = vadd.f32 %v923, %v861
      %v925 = vadd.f32 %v924, %v862
      %v926 = vadd.f32 %v925, %v863
      %v927 = vadd.f32 %v926, %v864
      %v928 = vadd.f32 %v927, %v865
      %v929 = vadd.f32 %v928, %v866
      %v930 = vadd.f32 %v929, %v867
      %v931 = vadd.f32 %v930, %v868
      %v932 = vadd.f32 %v931, %v869
      %v933 = vadd.f32 %v932, %v870
      %v934 = vadd.f32 %v933, %v871
      %v935 = vadd.f32 %v934, %v872
      %v936 = vadd.f32 %v935, %v873
      %v937 = vadd.f32 %v936, %v874
      %v938 = vadd.f32 %v937, %v875
      %v939 = vadd.f32 %v938, %v876
      %v940 = vadd.f32 %v939, %v877
      %v941 = vadd.f32 %v940, %v878
      %v942 = vadd.f32 %v941, %v879
      %v943 = vadd.f32 %v942, %v880
      %v944 = vadd.f32 %v943, %v881
      %v945 = vadd.f32 %v944, %v882
      %v946 = vadd.f32 %v945, %v883
      %v947 = vadd.f32 %v946, %v884
      %v948 = vadd.f32 %v947, %v885
      %v949 = vadd.f32 %v948, %v886
      %v950 = vadd.f32 %v949, %v887
      %v951 = vadd.f32 %v950, %v888
      %v952 = vadd.f32 %v951, %v889
      %v953 = vadd.f32 %v952, %v890
      %v954 = vadd.f32 %v953, %v891
      %v955 = vadd.f32 %v954, %v892
      %v956 = vadd.f32 %v955, %v893
      %v957 = vadd.f32 %v956, %v894
      %v958 = vadd.f32 %v957, %v895
      %v959 = vadd.f32 %v958, %v896
      %v960 = vadd.f32 %v959, %v897
      %v961 = vadd.f32 %v960, %v898
      %v962 = vadd.f32 %v961, %v899
      %v963 = vadd.f32 %v962, %v900
      %v964 = vadd.f32 %v963, %v901
      %v965 = vadd.f32 %v964, %v902
      %v966 = vadd.f32 %v965, %v903
      %v967 = vadd.f32 %v966, %v904
      %v968 = vadd.f32 %v967, %v905
      %v969 = vadd.f32 %v968, %v906
      %v970 = vadd.f32 %v969, %v907
      %v971 = vadd.f32 %v970, %v908
      %v972 = vadd.f32 %v971, %v909
      %v973 = vadd.f32 %v972, %v910
      %v974 = vadd.f32 %v973, %v911
      %v975 = vadd.f32 %v974, %v912
      %v976 = vadd.f32 %v975, %v913
      %v977 = vadd.f32 %v976, %v914
      %v978 = vadd.f32 %v977, %v915
      %v979 = vadd.f32 %v978, %v916
      %v980 = vadd.f32 %v979, %v917
      %v981 = vadd.f32 %v980, %v918
      %v982 = vadd.f32 %v981, %v919
      %v983 = vadd.f32 %v982, %v920
      %v984 = vrot.slane %v983, 4
      %v985 = vadd.f32 %v983, %v984
      %v986 = vrot.slane %v985, 2
      %v987 = vadd.f32 %v985, %v986
      %v988 = vrot.slane %v987, 1
      %v989 = vadd.f32 %v987, %v988
      %vm990 = vcmask 1040384
      %v991 = vsel %vm990, %v856, %v989
      %vm992 = vcmask 1041408
      %v993 = vsel %vm992, %v991, 0.0
      %994 = vst [vmem:[%s170] sm:$0xff] %v993
      %p995 = scmp.lt.s32.totalorder %s14, 1
      %s996 = scalar_select %p995, %s14, 1
      %s997 = smul.addr %s996, 8
      %s998 = scalar_lea.vmem %s3, %s997
      // Predicated region
      $region33: #{conv_layer_forward.2} parent=31 // pred_check
        %p999 = pneg %p100
      $region34: #{conv_layer_forward.2} parent=31 // pred_check_branch
        %1001 = sbr.rel (%p999) target = $region36
      $region35: #{conv_layer_forward.2} parent=31 // pred_region
        _
      $region36: #{conv_layer_forward.2} parent=31 // pred_fallthru
        _
    $region32: #{conv_layer_forward.2} parent=5 // pred_fallthru
      _
    %p1002 = scmp.le.s32.totalorder 2, %s9
    // Predicated region
    $region37: #{conv_layer_forward.2} parent=5 // pred_check
      %p1003 = pneg %p1002
    $region38: #{conv_layer_forward.2} parent=5 // pred_check_branch
      %1005 = sbr.rel (%p1003) target = $region40
    $region39: #{conv_layer_forward.2} parent=5 // pred_region
      %s1006 = ssub.s32 %s9, 2
      // Predicated region
      $region41: #{conv_layer_forward.2} parent=39 // pred_check
        %p1007 = pneg %p106
      $region42: #{conv_layer_forward.2} parent=39 // pred_check_branch
        %1009 = sbr.rel (%p1007) target = $region44
      $region43: #{conv_layer_forward.2} parent=39 // pred_region
        %p1010 = scmp.lt.s32.totalorder %s15, 1
        %s1011 = scalar_select %p1010, %s15, 1
        %s1012 = smul.addr %s1011, 8
        %s1013 = scalar_lea.vmem %s3, %s1012
      $region44: #{conv_layer_forward.2} parent=39 // pred_fallthru
        _
    $region40: #{conv_layer_forward.2} parent=5 // pred_fallthru
      _
  $region6: #{conv_layer_forward.2} parent=0 // loop_footer
    %s13 = sadd.s32 1, %s9
  $region7: #{conv_layer_forward.2} parent=0 // loop_footer_branch
    %8 = sbr.rel target = $region3
  $region8: #{conv_layer_forward.2} parent=0 // loop_exit
    _

// kernel: conv_layer_forward.3
$region0: #{conv_layer_forward.3}
  #allocation0 [shape = 'u32[]', space=smem, size = 0x4, offset = 0x4, fixed_abs, tag = 'smem constant byte address 0x4 - core index']
  #allocation1 [shape = 'u32[144,128]{1,0:T(1,128)}', space=vmem, size = 0x12000, scoped, tag = 'internal scratch']
  %s0 = inlined_call_operand.vmem [shape: bf16[1024,128], index: 0, kind: input, shape index: {}]
  %s1 = inlined_call_operand.vmem [shape: bf16[128,128], index: 1, kind: input, shape index: {}]
  %s2 = inlined_call_operand.vmem [shape: f32[1,128], index: 2, kind: input, shape index: {}]
  %s3 = inlined_call_operand.vmem [shape: f32[1,128], index: 3, kind: input, shape index: {}]
  %s4 = inlined_call_operand.vmem [shape: f32[1,128], index: 4, kind: input, shape index: {}]
  %s5 = inlined_call_operand.hbm [shape: f32[128,128], index: 5, kind: output, shape index: {}]
  %s6 = sld [smem:[#allocation0]]
  $region30: #{conv_layer_forward.3} parent=0
    _
  %s8 = ssub.s32 1, %s6
  %s9 = scalar_select 0, %s8, %s6
  $region1: #{conv_layer_forward.3} parent=0
    #allocation2 [shape = 'u8[65536]{0}', space=vmem, size = 0x10000, scoped, tag = 'output window, operand 0, single buffered']
    #allocation3 [shape = 's32[1]{0}', space=sflag, size = 0x4, scoped, tag = 'scoped memory for conv_layer_forward.3']
    %10 = vsyncpa [#allocation3], 0
    // Predicated region
    $region2: #{conv_layer_forward.3} parent=1 // pred_check
      _
    $region3: #{conv_layer_forward.3} parent=1 // pred_check_branch
      %12 = sbr.rel (0) target = $region5
    $region4: #{conv_layer_forward.3} parent=1 // pred_region
      _
    $region5: #{conv_layer_forward.3} parent=1 // pred_fallthru
      _
    // Predicated region
    $region6: #{conv_layer_forward.3} parent=1 // pred_check
      _
    $region7: #{conv_layer_forward.3} parent=1 // pred_check_branch
      %14 = sbr.rel (0) target = $region9
    $region8: #{conv_layer_forward.3} parent=1 // pred_region
      _
    $region9: #{conv_layer_forward.3} parent=1 // pred_fallthru
      _
    // Predicated region
    $region10: #{conv_layer_forward.3} parent=1 // pred_check
      _
    $region11: #{conv_layer_forward.3} parent=1 // pred_check_branch
      %16 = sbr.rel (0) target = $region13
    $region12: #{conv_layer_forward.3} parent=1 // pred_region
      _
    $region13: #{conv_layer_forward.3} parent=1 // pred_fallthru
      _
    // Predicated region
    $region14: #{conv_layer_forward.3} parent=1 // pred_check
      _
    $region15: #{conv_layer_forward.3} parent=1 // pred_check_branch
      %18 = sbr.rel (0) target = $region17
    $region16: #{conv_layer_forward.3} parent=1 // pred_region
      _
    $region17: #{conv_layer_forward.3} parent=1 // pred_fallthru
      _
    // Predicated region
    $region18: #{conv_layer_forward.3} parent=1 // pred_check
      _
    $region19: #{conv_layer_forward.3} parent=1 // pred_check_branch
      %20 = sbr.rel (0) target = $region21
    $region20: #{conv_layer_forward.3} parent=1 // pred_region
      _
    $region21: #{conv_layer_forward.3} parent=1 // pred_fallthru
      _
    %v22 = vld [vmem:[%s0] sm:$0xf]
    %v23 = vld [vmem:[%s0 + $0x4] sm:$0xf]
    %v24 = vld [vmem:[%s0 + $0x8] sm:$0xf]
    %v25 = vld [vmem:[%s0 + $0xc] sm:$0xf]
    %v26 = vld [vmem:[%s0 + $0x10] sm:$0xf]
    %v27 = vld [vmem:[%s0 + $0x14] sm:$0xf]
    %v28 = vld [vmem:[%s0 + $0x18] sm:$0xf]
    %v29 = vld [vmem:[%s0 + $0x1c] sm:$0xf]
    %v30 = vld [vmem:[%s0 + $0x20] sm:$0xf]
    %v31 = vld [vmem:[%s0 + $0x24] sm:$0xf]
    %v32 = vld [vmem:[%s0 + $0x28] sm:$0xf]
    %v33 = vld [vmem:[%s0 + $0x2c] sm:$0xf]
    %v34 = vld [vmem:[%s0 + $0x30] sm:$0xf]
    %v35 = vld [vmem:[%s0 + $0x34] sm:$0xf]
    %v36 = vld [vmem:[%s0 + $0x38] sm:$0xf]
    %v37 = vld [vmem:[%s0 + $0x3c] sm:$0xf]
    %v38 = vld [vmem:[%s0 + $0x40] sm:$0xf]
    %v39 = vld [vmem:[%s0 + $0x44] sm:$0xf]
    %v40 = vld [vmem:[%s0 + $0x48] sm:$0xf]
    %v41 = vld [vmem:[%s0 + $0x4c] sm:$0xf]
    %v42 = vld [vmem:[%s0 + $0x50] sm:$0xf]
    %v43 = vld [vmem:[%s0 + $0x54] sm:$0xf]
    %v44 = vld [vmem:[%s0 + $0x58] sm:$0xf]
    %v45 = vld [vmem:[%s0 + $0x5c] sm:$0xf]
    %v46 = vld [vmem:[%s0 + $0x60] sm:$0xf]
    %v47 = vld [vmem:[%s0 + $0x64] sm:$0xf]
    %v48 = vld [vmem:[%s0 + $0x68] sm:$0xf]
    %v49 = vld [vmem:[%s0 + $0x6c] sm:$0xf]
    %v50 = vld [vmem:[%s0 + $0x70] sm:$0xf]
    %v51 = vld [vmem:[%s0 + $0x74] sm:$0xf]
    %v52 = vld [vmem:[%s0 + $0x78] sm:$0xf]
    %v53 = vld [vmem:[%s0 + $0x7c] sm:$0xf]
    %v54 = vld [vmem:[%s0 + $0x80] sm:$0xf]
    %v55 = vld [vmem:[%s0 + $0x84] sm:$0xf]
    %v56 = vld [vmem:[%s0 + $0x88] sm:$0xf]
    %v57 = vld [vmem:[%s0 + $0x8c] sm:$0xf]
    %v58 = vld [vmem:[%s0 + $0x90] sm:$0xf]
    %v59 = vld [vmem:[%s0 + $0x94] sm:$0xf]
    %v60 = vld [vmem:[%s0 + $0x98] sm:$0xf]
    %v61 = vld [vmem:[%s0 + $0x9c] sm:$0xf]
    %v62 = vld [vmem:[%s0 + $0xa0] sm:$0xf]
    %v63 = vld [vmem:[%s0 + $0xa4] sm:$0xf]
    %v64 = vld [vmem:[%s0 + $0xa8] sm:$0xf]
    %v65 = vld [vmem:[%s0 + $0xac] sm:$0xf]
    %v66 = vld [vmem:[%s0 + $0xb0] sm:$0xf]
    %v67 = vld [vmem:[%s0 + $0xb4] sm:$0xf]
    %v68 = vld [vmem:[%s0 + $0xb8] sm:$0xf]
    %v69 = vld [vmem:[%s0 + $0xbc] sm:$0xf]
    %v70 = vld [vmem:[%s0 + $0xc0] sm:$0xf]
    %v71 = vld [vmem:[%s0 + $0xc4] sm:$0xf]
    %v72 = vld [vmem:[%s0 + $0xc8] sm:$0xf]
    %v73 = vld [vmem:[%s0 + $0xcc] sm:$0xf]
    %v74 = vld [vmem:[%s0 + $0xd0] sm:$0xf]
    %v75 = vld [vmem:[%s0 + $0xd4] sm:$0xf]
    %v76 = vld [vmem:[%s0 + $0xd8] sm:$0xf]
    %v77 = vld [vmem:[%s0 + $0xdc] sm:$0xf]
    %v78 = vld [vmem:[%s0 + $0xe0] sm:$0xf]
    %v79 = vld [vmem:[%s0 + $0xe4] sm:$0xf]
    %v80 = vld [vmem:[%s0 + $0xe8] sm:$0xf]
    %v81 = vld [vmem:[%s0 + $0xec] sm:$0xf]
    %v82 = vld [vmem:[%s0 + $0xf0] sm:$0xf]
    %v83 = vld [vmem:[%s0 + $0xf4] sm:$0xf]
    %v84 = vld [vmem:[%s0 + $0xf8] sm:$0xf]
    %v85 = vld [vmem:[%s0 + $0xfc] sm:$0xf]
    %v86 = vld [vmem:[%s0 + $0x100] sm:$0xf]
    %v87 = vld [vmem:[%s0 + $0x104] sm:$0xf]
    %v88 = vld [vmem:[%s0 + $0x108] sm:$0xf]
    %v89 = vld [vmem:[%s0 + $0x10c] sm:$0xf]
    %v90 = vld [vmem:[%s0 + $0x110] sm:$0xf]
    %v91 = vld [vmem:[%s0 + $0x114] sm:$0xf]
    %v92 = vld [vmem:[%s0 + $0x118] sm:$0xf]
    %v93 = vld [vmem:[%s0 + $0x11c] sm:$0xf]
    %v94 = vld [vmem:[%s0 + $0x120] sm:$0xf]
    %v95 = vld [vmem:[%s0 + $0x124] sm:$0xf]
    %v96 = vld [vmem:[%s0 + $0x128] sm:$0xf]
    %v97 = vld [vmem:[%s0 + $0x12c] sm:$0xf]
    %v98 = vld [vmem:[%s0 + $0x130] sm:$0xf]
    %v99 = vld [vmem:[%s0 + $0x134] sm:$0xf]
    %v100 = vld [vmem:[%s0 + $0x138] sm:$0xf]
    %v101 = vld [vmem:[%s0 + $0x13c] sm:$0xf]
    %v102 = vld [vmem:[%s0 + $0x140] sm:$0xf]
    %v103 = vld [vmem:[%s0 + $0x144] sm:$0xf]
    %v104 = vld [vmem:[%s0 + $0x148] sm:$0xf]
    %v105 = vld [vmem:[%s0 + $0x14c] sm:$0xf]
    %v106 = vld [vmem:[%s0 + $0x150] sm:$0xf]
    %v107 = vld [vmem:[%s0 + $0x154] sm:$0xf]
    %v108 = vld [vmem:[%s0 + $0x158] sm:$0xf]
    %v109 = vld [vmem:[%s0 + $0x15c] sm:$0xf]
    %v110 = vld [vmem:[%s0 + $0x160] sm:$0xf]
    %v111 = vld [vmem:[%s0 + $0x164] sm:$0xf]
    %v112 = vld [vmem:[%s0 + $0x168] sm:$0xf]
    %v113 = vld [vmem:[%s0 + $0x16c] sm:$0xf]
    %v114 = vld [vmem:[%s0 + $0x170] sm:$0xf]
    %v115 = vld [vmem:[%s0 + $0x174] sm:$0xf]
    %v116 = vld [vmem:[%s0 + $0x178] sm:$0xf]
    %v117 = vld [vmem:[%s0 + $0x17c] sm:$0xf]
    %v118 = vld [vmem:[%s0 + $0x180] sm:$0xf]
    %v119 = vld [vmem:[%s0 + $0x184] sm:$0xf]
    %v120 = vld [vmem:[%s0 + $0x188] sm:$0xf]
    %v121 = vld [vmem:[%s0 + $0x18c] sm:$0xf]
    %v122 = vld [vmem:[%s0 + $0x190] sm:$0xf]
    %v123 = vld [vmem:[%s0 + $0x194] sm:$0xf]
    %v124 = vld [vmem:[%s0 + $0x198] sm:$0xf]
    %v125 = vld [vmem:[%s0 + $0x19c] sm:$0xf]
    %v126 = vld [vmem:[%s0 + $0x1a0] sm:$0xf]
    %v127 = vld [vmem:[%s0 + $0x1a4] sm:$0xf]
    %v128 = vld [vmem:[%s0 + $0x1a8] sm:$0xf]
    %v129 = vld [vmem:[%s0 + $0x1ac] sm:$0xf]
    %v130 = vld [vmem:[%s0 + $0x1b0] sm:$0xf]
    %v131 = vld [vmem:[%s0 + $0x1b4] sm:$0xf]
    %v132 = vld [vmem:[%s0 + $0x1b8] sm:$0xf]
    %v133 = vld [vmem:[%s0 + $0x1bc] sm:$0xf]
    %v134 = vld [vmem:[%s0 + $0x1c0] sm:$0xf]
    %v135 = vld [vmem:[%s0 + $0x1c4] sm:$0xf]
    %v136 = vld [vmem:[%s0 + $0x1c8] sm:$0xf]
    %v137 = vld [vmem:[%s0 + $0x1cc] sm:$0xf]
    %v138 = vld [vmem:[%s0 + $0x1d0] sm:$0xf]
    %v139 = vld [vmem:[%s0 + $0x1d4] sm:$0xf]
    %v140 = vld [vmem:[%s0 + $0x1d8] sm:$0xf]
    %v141 = vld [vmem:[%s0 + $0x1dc] sm:$0xf]
    %v142 = vld [vmem:[%s0 + $0x1e0] sm:$0xf]
    %v143 = vld [vmem:[%s0 + $0x1e4] sm:$0xf]
    %v144 = vld [vmem:[%s0 + $0x1e8] sm:$0xf]
    %v145 = vld [vmem:[%s0 + $0x1ec] sm:$0xf]
    %v146 = vld [vmem:[%s0 + $0x1f0] sm:$0xf]
    %v147 = vld [vmem:[%s0 + $0x1f4] sm:$0xf]
    %v148 = vld [vmem:[%s0 + $0x1f8] sm:$0xf]
    %v149 = vld [vmem:[%s0 + $0x1fc] sm:$0xf]
    %v150 = vld [vmem:[%s1] sm:$0xf]
    %v151 = vld [vmem:[%s1 + $0x4] sm:$0xf]
    %v152 = vld [vmem:[%s1 + $0x8] sm:$0xf]
    %v153 = vld [vmem:[%s1 + $0xc] sm:$0xf]
    %v154 = vld [vmem:[%s1 + $0x10] sm:$0xf]
    %v155 = vld [vmem:[%s1 + $0x14] sm:$0xf]
    %v156 = vld [vmem:[%s1 + $0x18] sm:$0xf]
    %v157 = vld [vmem:[%s1 + $0x1c] sm:$0xf]
    %v158 = vld [vmem:[%s1 + $0x20] sm:$0xf]
    %v159 = vld [vmem:[%s1 + $0x24] sm:$0xf]
    %v160 = vld [vmem:[%s1 + $0x28] sm:$0xf]
    %v161 = vld [vmem:[%s1 + $0x2c] sm:$0xf]
    %v162 = vld [vmem:[%s1 + $0x30] sm:$0xf]
    %v163 = vld [vmem:[%s1 + $0x34] sm:$0xf]
    %v164 = vld [vmem:[%s1 + $0x38] sm:$0xf]
    %v165 = vld [vmem:[%s1 + $0x3c] sm:$0xf]
    %v166 = vld [vmem:[%s2] sm:$0x1]
    %v168 = vlaneseq
    %v169 = vshrl.u32 %v168, 7
    %v170 = vsub.s32 0, %v169
    %v171 = vrot.slane %v166, %v170
    %v301 = vunpack.c.l.b16 %v22
    %v302 = vunpack.c.l.b16 %v23
    %v303 = vunpack.c.l.b16 %v24
    %v304 = vunpack.c.l.b16 %v25
    %v305 = vunpack.c.l.b16 %v26
    %v306 = vunpack.c.l.b16 %v27
    %v307 = vunpack.c.l.b16 %v28
    %v308 = vunpack.c.l.b16 %v29
    %v309 = vunpack.c.l.b16 %v30
    %v310 = vunpack.c.l.b16 %v31
    %v311 = vunpack.c.l.b16 %v32
    %v312 = vunpack.c.l.b16 %v33
    %v313 = vunpack.c.l.b16 %v34
    %v314 = vunpack.c.l.b16 %v35
    %v315 = vunpack.c.l.b16 %v36
    %v316 = vunpack.c.l.b16 %v37
    %v317 = vunpack.c.l.b16 %v38
    %v318 = vunpack.c.l.b16 %v39
    %v319 = vunpack.c.l.b16 %v40
    %v320 = vunpack.c.l.b16 %v41
    %v321 = vunpack.c.l.b16 %v42
    %v322 = vunpack.c.l.b16 %v43
    %v323 = vunpack.c.l.b16 %v44
    %v324 = vunpack.c.l.b16 %v45
    %v325 = vunpack.c.l.b16 %v46
    %v326 = vunpack.c.l.b16 %v47
    %v327 = vunpack.c.l.b16 %v48
    %v328 = vunpack.c.l.b16 %v49
    %v329 = vunpack.c.l.b16 %v50
    %v330 = vunpack.c.l.b16 %v51
    %v331 = vunpack.c.l.b16 %v52
    %v332 = vunpack.c.l.b16 %v53
    %v333 = vunpack.c.l.b16 %v54
    %v334 = vunpack.c.l.b16 %v55
    %v335 = vunpack.c.l.b16 %v56
    %v336 = vunpack.c.l.b16 %v57
    %v337 = vunpack.c.l.b16 %v58
    %v338 = vunpack.c.l.b16 %v59
    %v339 = vunpack.c.l.b16 %v60
    %v340 = vunpack.c.l.b16 %v61
    %v341 = vunpack.c.l.b16 %v62
    %v342 = vunpack.c.l.b16 %v63
    %v343 = vunpack.c.l.b16 %v64
    %v344 = vunpack.c.l.b16 %v65
    %v345 = vunpack.c.l.b16 %v66
    %v346 = vunpack.c.l.b16 %v67
    %v347 = vunpack.c.l.b16 %v68
    %v348 = vunpack.c.l.b16 %v69
    %v349 = vunpack.c.l.b16 %v70
    %v350 = vunpack.c.l.b16 %v71
    %v351 = vunpack.c.l.b16 %v72
    %v352 = vunpack.c.l.b16 %v73
    %v353 = vunpack.c.l.b16 %v74
    %v354 = vunpack.c.l.b16 %v75
    %v355 = vunpack.c.l.b16 %v76
    %v356 = vunpack.c.l.b16 %v77
    %v357 = vunpack.c.l.b16 %v78
    %v358 = vunpack.c.l.b16 %v79
    %v359 = vunpack.c.l.b16 %v80
    %v360 = vunpack.c.l.b16 %v81
    %v361 = vunpack.c.l.b16 %v82
    %v362 = vunpack.c.l.b16 %v83
    %v363 = vunpack.c.l.b16 %v84
    %v364 = vunpack.c.l.b16 %v85
    %v365 = vunpack.c.l.b16 %v86
    %v366 = vunpack.c.l.b16 %v87
    %v367 = vunpack.c.l.b16 %v88
    %v368 = vunpack.c.l.b16 %v89
    %v369 = vunpack.c.l.b16 %v90
    %v370 = vunpack.c.l.b16 %v91
    %v371 = vunpack.c.l.b16 %v92
    %v372 = vunpack.c.l.b16 %v93
    %v373 = vunpack.c.l.b16 %v94
    %v374 = vunpack.c.l.b16 %v95
    %v375 = vunpack.c.l.b16 %v96
    %v376 = vunpack.c.l.b16 %v97
    %v377 = vunpack.c.l.b16 %v98
    %v378 = vunpack.c.l.b16 %v99
    %v379 = vunpack.c.l.b16 %v100
    %v380 = vunpack.c.l.b16 %v101
    %v381 = vunpack.c.l.b16 %v102
    %v382 = vunpack.c.l.b16 %v103
    %v383 = vunpack.c.l.b16 %v104
    %v384 = vunpack.c.l.b16 %v105
    %v385 = vunpack.c.l.b16 %v106
    %v386 = vunpack.c.l.b16 %v107
    %v387 = vunpack.c.l.b16 %v108
    %v388 = vunpack.c.l.b16 %v109
    %v389 = vunpack.c.l.b16 %v110
    %v390 = vunpack.c.l.b16 %v111
    %v391 = vunpack.c.l.b16 %v112
    %v392 = vunpack.c.l.b16 %v113
    %v393 = vunpack.c.l.b16 %v114
    %v394 = vunpack.c.l.b16 %v115
    %v395 = vunpack.c.l.b16 %v116
    %v396 = vunpack.c.l.b16 %v117
    %v397 = vunpack.c.l.b16 %v118
    %v398 = vunpack.c.l.b16 %v119
    %v399 = vunpack.c.l.b16 %v120
    %v400 = vunpack.c.l.b16 %v121
    %v401 = vunpack.c.l.b16 %v122
    %v402 = vunpack.c.l.b16 %v123
    %v403 = vunpack.c.l.b16 %v124
    %v404 = vunpack.c.l.b16 %v125
    %v405 = vunpack.c.l.b16 %v126
    %v406 = vunpack.c.l.b16 %v127
    %v407 = vunpack.c.l.b16 %v128
    %v408 = vunpack.c.l.b16 %v129
    %v409 = vunpack.c.l.b16 %v130
    %v410 = vunpack.c.l.b16 %v131
    %v411 = vunpack.c.l.b16 %v132
    %v412 = vunpack.c.l.b16 %v133
    %v413 = vunpack.c.l.b16 %v134
    %v414 = vunpack.c.l.b16 %v135
    %v415 = vunpack.c.l.b16 %v136
    %v416 = vunpack.c.l.b16 %v137
    %v417 = vunpack.c.l.b16 %v138
    %v418 = vunpack.c.l.b16 %v139
    %v419 = vunpack.c.l.b16 %v140
    %v420 = vunpack.c.l.b16 %v141
    %v421 = vunpack.c.l.b16 %v142
    %v422 = vunpack.c.l.b16 %v143
    %v423 = vunpack.c.l.b16 %v144
    %v424 = vunpack.c.l.b16 %v145
    %v425 = vunpack.c.l.b16 %v146
    %v426 = vunpack.c.l.b16 %v147
    %v427 = vunpack.c.l.b16 %v148
    %v428 = vunpack.c.l.b16 %v149
    %v429 = vpack.c.b16 %v302, %v301
    %v430 = vpack.c.b16 %v304, %v303
    %v431 = vpack.c.b16 %v306, %v305
    %v432 = vpack.c.b16 %v308, %v307
    %v433 = vpack.c.b16 %v310, %v309
    %v434 = vpack.c.b16 %v312, %v311
    %v435 = vpack.c.b16 %v314, %v313
    %v436 = vpack.c.b16 %v316, %v315
    %v437 = vpack.c.b16 %v318, %v317
    %v438 = vpack.c.b16 %v320, %v319
    %v439 = vpack.c.b16 %v322, %v321
    %v440 = vpack.c.b16 %v324, %v323
    %v441 = vpack.c.b16 %v326, %v325
    %v442 = vpack.c.b16 %v328, %v327
    %v443 = vpack.c.b16 %v330, %v329
    %v444 = vpack.c.b16 %v332, %v331
    %v445 = vpack.c.b16 %v334, %v333
    %v446 = vpack.c.b16 %v336, %v335
    %v447 = vpack.c.b16 %v338, %v337
    %v448 = vpack.c.b16 %v340, %v339
    %v449 = vpack.c.b16 %v342, %v341
    %v450 = vpack.c.b16 %v344, %v343
    %v451 = vpack.c.b16 %v346, %v345
    %v452 = vpack.c.b16 %v348, %v347
    %v453 = vpack.c.b16 %v350, %v349
    %v454 = vpack.c.b16 %v352, %v351
    %v455 = vpack.c.b16 %v354, %v353
    %v456 = vpack.c.b16 %v356, %v355
    %v457 = vpack.c.b16 %v358, %v357
    %v458 = vpack.c.b16 %v360, %v359
    %v459 = vpack.c.b16 %v362, %v361
    %v460 = vpack.c.b16 %v364, %v363
    %v461 = vpack.c.b16 %v366, %v365
    %v462 = vpack.c.b16 %v368, %v367
    %v463 = vpack.c.b16 %v370, %v369
    %v464 = vpack.c.b16 %v372, %v371
    %v465 = vpack.c.b16 %v374, %v373
    %v466 = vpack.c.b16 %v376, %v375
    %v467 = vpack.c.b16 %v378, %v377
    %v468 = vpack.c.b16 %v380, %v379
    %v469 = vpack.c.b16 %v382, %v381
    %v470 = vpack.c.b16 %v384, %v383
    %v471 = vpack.c.b16 %v386, %v385
    %v472 = vpack.c.b16 %v388, %v387
    %v473 = vpack.c.b16 %v390, %v389
    %v474 = vpack.c.b16 %v392, %v391
    %v475 = vpack.c.b16 %v394, %v393
    %v476 = vpack.c.b16 %v396, %v395
    %v477 = vpack.c.b16 %v398, %v397
    %v478 = vpack.c.b16 %v400, %v399
    %v479 = vpack.c.b16 %v402, %v401
    %v480 = vpack.c.b16 %v404, %v403
    %v481 = vpack.c.b16 %v406, %v405
    %v482 = vpack.c.b16 %v408, %v407
    %v483 = vpack.c.b16 %v410, %v409
    %v484 = vpack.c.b16 %v412, %v411
    %v485 = vpack.c.b16 %v414, %v413
    %v486 = vpack.c.b16 %v416, %v415
    %v487 = vpack.c.b16 %v418, %v417
    %v488 = vpack.c.b16 %v420, %v419
    %v489 = vpack.c.b16 %v422, %v421
    %v490 = vpack.c.b16 %v424, %v423
    %v491 = vpack.c.b16 %v426, %v425
    %v492 = vpack.c.b16 %v428, %v427
    %v573 = vunpack.c.l.b16 %v150
    %v574 = vunpack.c.l.b16 %v151
    %v575 = vunpack.c.l.b16 %v152
    %v576 = vunpack.c.l.b16 %v153
    %v577 = vunpack.c.l.b16 %v154
    %v578 = vunpack.c.l.b16 %v155
    %v579 = vunpack.c.l.b16 %v156
    %v580 = vunpack.c.l.b16 %v157
    %v581 = vunpack.c.l.b16 %v158
    %v582 = vunpack.c.l.b16 %v159
    %v583 = vunpack.c.l.b16 %v160
    %v584 = vunpack.c.l.b16 %v161
    %v585 = vunpack.c.l.b16 %v162
    %v586 = vunpack.c.l.b16 %v163
    %v587 = vunpack.c.l.b16 %v164
    %v588 = vunpack.c.l.b16 %v165
    %v589 = vpack.c.b16 %v574, %v573
    %v590 = vpack.c.b16 %v576, %v575
    %v591 = vpack.c.b16 %v578, %v577
    %v592 = vpack.c.b16 %v580, %v579
    %v593 = vpack.c.b16 %v582, %v581
    %v594 = vpack.c.b16 %v584, %v583
    %v595 = vpack.c.b16 %v586, %v585
    %v596 = vpack.c.b16 %v588, %v587
    %605 = vmatprep.subr.bf16.mxu0 0
    %606 = vmatpush1.bf16.msra.mxu0 %v596
    %607 = vmatprep.subr.bf16.mxu0 0
    %608 = vmatpush1.bf16.msra.mxu0 %v595
    %609 = vmatprep.subr.bf16.mxu0 0
    %610 = vmatpush1.bf16.msra.mxu0 %v594
    %611 = vmatprep.subr.bf16.mxu0 0
    %612 = vmatpush1.bf16.msra.mxu0 %v593
    %613 = vmatprep.subr.bf16.mxu0 0
    %614 = vmatpush1.bf16.msra.mxu0 %v592
    %615 = vmatprep.subr.bf16.mxu0 0
    %616 = vmatpush1.bf16.msra.mxu0 %v591
    %617 = vmatprep.subr.bf16.mxu0 0
    %618 = vmatpush1.bf16.msra.mxu0 %v590
    %619 = vmatprep.subr.bf16.mxu0 0
    %620 = vmatpush1.bf16.msra.mxu0 %v589
    %621 = vmatprep.subr.bf16.mxu0 0
    %622 = vmatpush2.bf16.msra.mxu0 0
    %623 = vmatprep.subr.bf16.mxu0 0
    %624 = vmatpush2.bf16.msra.mxu0 0
    %625 = vmatprep.subr.bf16.mxu0 0
    %626 = vmatpush2.bf16.msra.mxu0 0
    %627 = vmatprep.subr.bf16.mxu0 0
    %628 = vmatpush2.bf16.msra.mxu0 0
    %629 = vmatprep.subr.bf16.mxu0 0
    %630 = vmatpush2.bf16.msra.mxu0 0
    %631 = vmatprep.subr.bf16.mxu0 0
    %632 = vmatpush2.bf16.msra.mxu0 0
    %633 = vmatprep.subr.bf16.mxu0 0
    %634 = vmatpush2.bf16.msra.mxu0 0
    %635 = vmatprep.subr.bf16.mxu0 0
    %636 = vmatpush2.bf16.msra.mxu0 0
    %637 = vmatprep.mubr.bf16.mxu0 0
    %638 = vmatmul.mubr.bf16.gmra.mxu0 %v429
    %v639 = vpop.f32.mrf.mxu0
    %v640 = vadd.f32 %v171, %v639
    %v641 = vpop.f32.mrf.mxu0
    %v642 = vpop.f32.mrf.mxu0
    %v643 = vadd.f32 %v171, %v642
    %v644 = vpop.f32.mrf.mxu0
    %645 = vmatprep.mubr.bf16.mxu0 0
    %646 = vmatmul.mubr.bf16.gmra.mxu0 %v430
    %v647 = vpop.f32.mrf.mxu0
    %v648 = vadd.f32 %v171, %v647
    %v649 = vpop.f32.mrf.mxu0
    %v650 = vpop.f32.mrf.mxu0
    %v651 = vadd.f32 %v171, %v650
    %v652 = vpop.f32.mrf.mxu0
    %653 = vmatprep.mubr.bf16.mxu0 0
    %654 = vmatmul.mubr.bf16.gmra.mxu0 %v431
    %v655 = vpop.f32.mrf.mxu0
    %v656 = vadd.f32 %v171, %v655
    %v657 = vpop.f32.mrf.mxu0
    %v658 = vpop.f32.mrf.mxu0
    %v659 = vadd.f32 %v171, %v658
    %v660 = vpop.f32.mrf.mxu0
    %661 = vmatprep.mubr.bf16.mxu0 0
    %662 = vmatmul.mubr.bf16.gmra.mxu0 %v432
    %v663 = vpop.f32.mrf.mxu0
    %v664 = vadd.f32 %v171, %v663
    %v665 = vpop.f32.mrf.mxu0
    %v666 = vpop.f32.mrf.mxu0
    %v667 = vadd.f32 %v171, %v666
    %v668 = vpop.f32.mrf.mxu0
    %669 = vmatprep.mubr.bf16.mxu0 0
    %670 = vmatmul.mubr.bf16.gmra.mxu0 %v433
    %v671 = vpop.f32.mrf.mxu0
    %v672 = vadd.f32 %v171, %v671
    %v673 = vpop.f32.mrf.mxu0
    %v674 = vpop.f32.mrf.mxu0
    %v675 = vadd.f32 %v171, %v674
    %v676 = vpop.f32.mrf.mxu0
    %677 = vmatprep.mubr.bf16.mxu0 0
    %678 = vmatmul.mubr.bf16.gmra.mxu0 %v434
    %v679 = vpop.f32.mrf.mxu0
    %v680 = vadd.f32 %v171, %v679
    %v681 = vpop.f32.mrf.mxu0
    %v682 = vpop.f32.mrf.mxu0
    %v683 = vadd.f32 %v171, %v682
    %v684 = vpop.f32.mrf.mxu0
    %685 = vmatprep.mubr.bf16.mxu0 0
    %686 = vmatmul.mubr.bf16.gmra.mxu0 %v435
    %v687 = vpop.f32.mrf.mxu0
    %v688 = vadd.f32 %v171, %v687
    %v689 = vpop.f32.mrf.mxu0
    %v690 = vpop.f32.mrf.mxu0
    %v691 = vadd.f32 %v171, %v690
    %v692 = vpop.f32.mrf.mxu0
    %693 = vmatprep.mubr.bf16.mxu0 0
    %694 = vmatmul.mubr.bf16.gmra.mxu0 %v436
    %v695 = vpop.f32.mrf.mxu0
    %v696 = vadd.f32 %v171, %v695
    %v697 = vpop.f32.mrf.mxu0
    %v698 = vpop.f32.mrf.mxu0
    %v699 = vadd.f32 %v171, %v698
    %v700 = vpop.f32.mrf.mxu0
    %701 = vmatprep.mubr.bf16.mxu0 0
    %702 = vmatmul.mubr.bf16.gmra.mxu0 %v437
    %v703 = vpop.f32.mrf.mxu0
    %v704 = vadd.f32 %v171, %v703
    %v705 = vpop.f32.mrf.mxu0
    %v706 = vpop.f32.mrf.mxu0
    %v707 = vadd.f32 %v171, %v706
    %v708 = vpop.f32.mrf.mxu0
    %709 = vmatprep.mubr.bf16.mxu0 0
    %710 = vmatmul.mubr.bf16.gmra.mxu0 %v438
    %v711 = vpop.f32.mrf.mxu0
    %v712 = vadd.f32 %v171, %v711
    %v713 = vpop.f32.mrf.mxu0
    %v714 = vpop.f32.mrf.mxu0
    %v715 = vadd.f32 %v171, %v714
    %v716 = vpop.f32.mrf.mxu0
    %717 = vmatprep.mubr.bf16.mxu0 0
    %718 = vmatmul.mubr.bf16.gmra.mxu0 %v439
    %v719 = vpop.f32.mrf.mxu0
    %v720 = vadd.f32 %v171, %v719
    %v721 = vpop.f32.mrf.mxu0
    %v722 = vpop.f32.mrf.mxu0
    %v723 = vadd.f32 %v171, %v722
    %v724 = vpop.f32.mrf.mxu0
    %725 = vmatprep.mubr.bf16.mxu0 0
    %726 = vmatmul.mubr.bf16.gmra.mxu0 %v440
    %v727 = vpop.f32.mrf.mxu0
    %v728 = vadd.f32 %v171, %v727
    %v729 = vpop.f32.mrf.mxu0
    %v730 = vpop.f32.mrf.mxu0
    %v731 = vadd.f32 %v171, %v730
    %v732 = vpop.f32.mrf.mxu0
    %733 = vmatprep.mubr.bf16.mxu0 0
    %734 = vmatmul.mubr.bf16.gmra.mxu0 %v441
    %v735 = vpop.f32.mrf.mxu0
    %v736 = vadd.f32 %v171, %v735
    %v737 = vpop.f32.mrf.mxu0
    %v738 = vpop.f32.mrf.mxu0
    %v739 = vadd.f32 %v171, %v738
    %v740 = vpop.f32.mrf.mxu0
    %741 = vmatprep.mubr.bf16.mxu0 0
    %742 = vmatmul.mubr.bf16.gmra.mxu0 %v442
    %v743 = vpop.f32.mrf.mxu0
    %v744 = vadd.f32 %v171, %v743
    %v745 = vpop.f32.mrf.mxu0
    %v746 = vpop.f32.mrf.mxu0
    %v747 = vadd.f32 %v171, %v746
    %v748 = vpop.f32.mrf.mxu0
    %749 = vmatprep.mubr.bf16.mxu0 0
    %750 = vmatmul.mubr.bf16.gmra.mxu0 %v443
    %v751 = vpop.f32.mrf.mxu0
    %v752 = vadd.f32 %v171, %v751
    %v753 = vpop.f32.mrf.mxu0
    %v754 = vpop.f32.mrf.mxu0
    %v755 = vadd.f32 %v171, %v754
    %v756 = vpop.f32.mrf.mxu0
    %757 = vmatprep.mubr.bf16.mxu0 0
    %758 = vmatmul.mubr.bf16.gmra.mxu0 %v444
    %v759 = vpop.f32.mrf.mxu0
    %v760 = vadd.f32 %v171, %v759
    %v761 = vpop.f32.mrf.mxu0
    %v762 = vpop.f32.mrf.mxu0
    %v763 = vadd.f32 %v171, %v762
    %v764 = vpop.f32.mrf.mxu0
    %765 = vmatprep.mubr.bf16.mxu0 0
    %766 = vmatmul.mubr.bf16.gmra.mxu0 %v445
    %v767 = vpop.f32.mrf.mxu0
    %v768 = vadd.f32 %v171, %v767
    %v769 = vpop.f32.mrf.mxu0
    %v770 = vpop.f32.mrf.mxu0
    %v771 = vadd.f32 %v171, %v770
    %v772 = vpop.f32.mrf.mxu0
    %773 = vmatprep.mubr.bf16.mxu0 0
    %774 = vmatmul.mubr.bf16.gmra.mxu0 %v446
    %v775 = vpop.f32.mrf.mxu0
    %v776 = vadd.f32 %v171, %v775
    %v777 = vpop.f32.mrf.mxu0
    %v778 = vpop.f32.mrf.mxu0
    %v779 = vadd.f32 %v171, %v778
    %v780 = vpop.f32.mrf.mxu0
    %781 = vmatprep.mubr.bf16.mxu0 0
    %782 = vmatmul.mubr.bf16.gmra.mxu0 %v447
    %v783 = vpop.f32.mrf.mxu0
    %v784 = vadd.f32 %v171, %v783
    %v785 = vpop.f32.mrf.mxu0
    %v786 = vpop.f32.mrf.mxu0
    %v787 = vadd.f32 %v171, %v786
    %v788 = vpop.f32.mrf.mxu0
    %789 = vmatprep.mubr.bf16.mxu0 0
    %790 = vmatmul.mubr.bf16.gmra.mxu0 %v448
    %v791 = vpop.f32.mrf.mxu0
    %v792 = vadd.f32 %v171, %v791
    %v793 = vpop.f32.mrf.mxu0
    %v794 = vpop.f32.mrf.mxu0
    %v795 = vadd.f32 %v171, %v794
    %v796 = vpop.f32.mrf.mxu0
    %797 = vmatprep.mubr.bf16.mxu0 0
    %798 = vmatmul.mubr.bf16.gmra.mxu0 %v449
    %v799 = vpop.f32.mrf.mxu0
    %v800 = vadd.f32 %v171, %v799
    %v801 = vpop.f32.mrf.mxu0
    %v802 = vpop.f32.mrf.mxu0
    %v803 = vadd.f32 %v171, %v802
    %v804 = vpop.f32.mrf.mxu0
    %805 = vmatprep.mubr.bf16.mxu0 0
    %806 = vmatmul.mubr.bf16.gmra.mxu0 %v450
    %v807 = vpop.f32.mrf.mxu0
    %v808 = vadd.f32 %v171, %v807
    %v809 = vpop.f32.mrf.mxu0
    %v810 = vpop.f32.mrf.mxu0
    %v811 = vadd.f32 %v171, %v810
    %v812 = vpop.f32.mrf.mxu0
    %813 = vmatprep.mubr.bf16.mxu0 0
    %814 = vmatmul.mubr.bf16.gmra.mxu0 %v451
    %v815 = vpop.f32.mrf.mxu0
    %v816 = vadd.f32 %v171, %v815
    %v817 = vpop.f32.mrf.mxu0
    %v818 = vpop.f32.mrf.mxu0
    %v819 = vadd.f32 %v171, %v818
    %v820 = vpop.f32.mrf.mxu0
    %821 = vmatprep.mubr.bf16.mxu0 0
    %822 = vmatmul.mubr.bf16.gmra.mxu0 %v452
    %v823 = vpop.f32.mrf.mxu0
    %v824 = vadd.f32 %v171, %v823
    %v825 = vpop.f32.mrf.mxu0
    %v826 = vpop.f32.mrf.mxu0
    %v827 = vadd.f32 %v171, %v826
    %v828 = vpop.f32.mrf.mxu0
    %829 = vmatprep.mubr.bf16.mxu0 0
    %830 = vmatmul.mubr.bf16.gmra.mxu0 %v453
    %v831 = vpop.f32.mrf.mxu0
    %v832 = vadd.f32 %v171, %v831
    %v833 = vpop.f32.mrf.mxu0
    %v834 = vpop.f32.mrf.mxu0
    %v835 = vadd.f32 %v171, %v834
    %v836 = vpop.f32.mrf.mxu0
    %837 = vmatprep.mubr.bf16.mxu0 0
    %838 = vmatmul.mubr.bf16.gmra.mxu0 %v454
    %v839 = vpop.f32.mrf.mxu0
    %v840 = vadd.f32 %v171, %v839
    %v841 = vpop.f32.mrf.mxu0
    %v842 = vpop.f32.mrf.mxu0
    %v843 = vadd.f32 %v171, %v842
    %v844 = vpop.f32.mrf.mxu0
    %845 = vmatprep.mubr.bf16.mxu0 0
    %846 = vmatmul.mubr.bf16.gmra.mxu0 %v455
    %v847 = vpop.f32.mrf.mxu0
    %v848 = vadd.f32 %v171, %v847
    %v849 = vpop.f32.mrf.mxu0
    %v850 = vpop.f32.mrf.mxu0
    %v851 = vadd.f32 %v171, %v850
    %v852 = vpop.f32.mrf.mxu0
    %853 = vmatprep.mubr.bf16.mxu0 0
    %854 = vmatmul.mubr.bf16.gmra.mxu0 %v456
    %v855 = vpop.f32.mrf.mxu0
    %v856 = vadd.f32 %v171, %v855
    %v857 = vpop.f32.mrf.mxu0
    %v858 = vpop.f32.mrf.mxu0
    %v859 = vadd.f32 %v171, %v858
    %v860 = vpop.f32.mrf.mxu0
    %861 = vmatprep.mubr.bf16.mxu0 0
    %862 = vmatmul.mubr.bf16.gmra.mxu0 %v457
    %v863 = vpop.f32.mrf.mxu0
    %v864 = vadd.f32 %v171, %v863
    %v865 = vpop.f32.mrf.mxu0
    %v866 = vpop.f32.mrf.mxu0
    %v867 = vadd.f32 %v171, %v866
    %v868 = vpop.f32.mrf.mxu0
    %869 = vmatprep.mubr.bf16.mxu0 0
    %870 = vmatmul.mubr.bf16.gmra.mxu0 %v458
    %v871 = vpop.f32.mrf.mxu0
    %v872 = vadd.f32 %v171, %v871
    %v873 = vpop.f32.mrf.mxu0
    %v874 = vpop.f32.mrf.mxu0
    %v875 = vadd.f32 %v171, %v874
    %v876 = vpop.f32.mrf.mxu0
    %877 = vmatprep.mubr.bf16.mxu0 0
    %878 = vmatmul.mubr.bf16.gmra.mxu0 %v459
    %v879 = vpop.f32.mrf.mxu0
    %v880 = vadd.f32 %v171, %v879
    %v881 = vpop.f32.mrf.mxu0
    %v882 = vpop.f32.mrf.mxu0
    %v883 = vadd.f32 %v171, %v882
    %v884 = vpop.f32.mrf.mxu0
    %885 = vmatprep.mubr.bf16.mxu0 0
    %886 = vmatmul.mubr.bf16.gmra.mxu0 %v460
    %v887 = vpop.f32.mrf.mxu0
    %v888 = vadd.f32 %v171, %v887
    %v889 = vpop.f32.mrf.mxu0
    %v890 = vpop.f32.mrf.mxu0
    %v891 = vadd.f32 %v171, %v890
    %v892 = vpop.f32.mrf.mxu0
    %893 = vmatprep.mubr.bf16.mxu0 0
    %894 = vmatmul.mubr.bf16.gmra.mxu0 %v461
    %v895 = vpop.f32.mrf.mxu0
    %v896 = vadd.f32 %v171, %v895
    %v897 = vpop.f32.mrf.mxu0
    %v898 = vpop.f32.mrf.mxu0
    %v899 = vadd.f32 %v171, %v898
    %v900 = vpop.f32.mrf.mxu0
    %901 = vmatprep.mubr.bf16.mxu0 0
    %902 = vmatmul.mubr.bf16.gmra.mxu0 %v462
    %v903 = vpop.f32.mrf.mxu0
    %v904 = vadd.f32 %v171, %v903
    %v905 = vpop.f32.mrf.mxu0
    %v906 = vpop.f32.mrf.mxu0
    %v907 = vadd.f32 %v171, %v906
    %v908 = vpop.f32.mrf.mxu0
    %909 = vmatprep.mubr.bf16.mxu0 0
    %910 = vmatmul.mubr.bf16.gmra.mxu0 %v463
    %v911 = vpop.f32.mrf.mxu0
    %v912 = vadd.f32 %v171, %v911
    %v913 = vpop.f32.mrf.mxu0
    %v914 = vpop.f32.mrf.mxu0
    %v915 = vadd.f32 %v171, %v914
    %v916 = vpop.f32.mrf.mxu0
    %917 = vmatprep.mubr.bf16.mxu0 0
    %918 = vmatmul.mubr.bf16.gmra.mxu0 %v464
    %v919 = vpop.f32.mrf.mxu0
    %v920 = vadd.f32 %v171, %v919
    %v921 = vpop.f32.mrf.mxu0
    %v922 = vpop.f32.mrf.mxu0
    %v923 = vadd.f32 %v171, %v922
    %v924 = vpop.f32.mrf.mxu0
    %925 = vmatprep.mubr.bf16.mxu0 0
    %926 = vmatmul.mubr.bf16.gmra.mxu0 %v465
    %v927 = vpop.f32.mrf.mxu0
    %v928 = vadd.f32 %v171, %v927
    %v929 = vpop.f32.mrf.mxu0
    %v930 = vpop.f32.mrf.mxu0
    %v931 = vadd.f32 %v171, %v930
    %v932 = vpop.f32.mrf.mxu0
    %933 = vmatprep.mubr.bf16.mxu0 0
    %934 = vmatmul.mubr.bf16.gmra.mxu0 %v466
    %v935 = vpop.f32.mrf.mxu0
    %v936 = vadd.f32 %v171, %v935
    %v937 = vpop.f32.mrf.mxu0
    %v938 = vpop.f32.mrf.mxu0
    %v939 = vadd.f32 %v171, %v938
    %v940 = vpop.f32.mrf.mxu0
    %941 = vmatprep.mubr.bf16.mxu0 0
    %942 = vmatmul.mubr.bf16.gmra.mxu0 %v467
    %v943 = vpop.f32.mrf.mxu0
    %v944 = vadd.f32 %v171, %v943
    %v945 = vpop.f32.mrf.mxu0
    %v946 = vpop.f32.mrf.mxu0
    %v947 = vadd.f32 %v171, %v946
    %v948 = vpop.f32.mrf.mxu0
    %949 = vmatprep.mubr.bf16.mxu0 0
    %950 = vmatmul.mubr.bf16.gmra.mxu0 %v468
    %v951 = vpop.f32.mrf.mxu0
    %v952 = vadd.f32 %v171, %v951
    %v953 = vpop.f32.mrf.mxu0
    %v954 = vpop.f32.mrf.mxu0
    %v955 = vadd.f32 %v171, %v954
    %v956 = vpop.f32.mrf.mxu0
    %957 = vmatprep.mubr.bf16.mxu0 0
    %958 = vmatmul.mubr.bf16.gmra.mxu0 %v469
    %v959 = vpop.f32.mrf.mxu0
    %v960 = vadd.f32 %v171, %v959
    %v961 = vpop.f32.mrf.mxu0
    %v962 = vpop.f32.mrf.mxu0
    %v963 = vadd.f32 %v171, %v962
    %v964 = vpop.f32.mrf.mxu0
    %965 = vmatprep.mubr.bf16.mxu0 0
    %966 = vmatmul.mubr.bf16.gmra.mxu0 %v470
    %v967 = vpop.f32.mrf.mxu0
    %v968 = vadd.f32 %v171, %v967
    %v969 = vpop.f32.mrf.mxu0
    %v970 = vpop.f32.mrf.mxu0
    %v971 = vadd.f32 %v171, %v970
    %v972 = vpop.f32.mrf.mxu0
    %973 = vmatprep.mubr.bf16.mxu0 0
    %974 = vmatmul.mubr.bf16.gmra.mxu0 %v471
    %v975 = vpop.f32.mrf.mxu0
    %v976 = vadd.f32 %v171, %v975
    %v977 = vpop.f32.mrf.mxu0
    %v978 = vpop.f32.mrf.mxu0
    %v979 = vadd.f32 %v171, %v978
    %v980 = vpop.f32.mrf.mxu0
    %981 = vmatprep.mubr.bf16.mxu0 0
    %982 = vmatmul.mubr.bf16.gmra.mxu0 %v472
    %v983 = vpop.f32.mrf.mxu0
    %v984 = vadd.f32 %v171, %v983
    %v985 = vpop.f32.mrf.mxu0
    %v986 = vpop.f32.mrf.mxu0
    %v987 = vadd.f32 %v171, %v986
    %v988 = vpop.f32.mrf.mxu0
    %989 = vmatprep.mubr.bf16.mxu0 0
    %990 = vmatmul.mubr.bf16.gmra.mxu0 %v473
    %v991 = vpop.f32.mrf.mxu0
    %v992 = vadd.f32 %v171, %v991
    %v993 = vpop.f32.mrf.mxu0
    %v994 = vpop.f32.mrf.mxu0
    %v995 = vadd.f32 %v171, %v994
    %v996 = vpop.f32.mrf.mxu0
    %997 = vmatprep.mubr.bf16.mxu0 0
    %998 = vmatmul.mubr.bf16.gmra.mxu0 %v474
    %v999 = vpop.f32.mrf.mxu0
    %v1000 = vadd.f32 %v171, %v999
    %v1001 = vpop.f32.mrf.mxu0
    %v1002 = vpop.f32.mrf.mxu0
    %v1003 = vadd.f32 %v171, %v1002
    %v1004 = vpop.f32.mrf.mxu0
    %1005 = vmatprep.mubr.bf16.mxu0 0
    %1006 = vmatmul.mubr.bf16.gmra.mxu0 %v475
    %v1007 = vpop.f32.mrf.mxu0
    %v1008 = vadd.f32 %v171, %v1007
    %v1009 = vpop.f32.mrf.mxu0
    %v1010 = vpop.f32.mrf.mxu0
    %v1011 = vadd.f32 %v171, %v1010
    %v1012 = vpop.f32.mrf.mxu0
    %1013 = vmatprep.mubr.bf16.mxu0 0
    %1014 = vmatmul.mubr.bf16.gmra.mxu0 %v476
    %v1015 = vpop.f32.mrf.mxu0
    %v1016 = vadd.f32 %v171, %v1015
    %v1017 = vpop.f32.mrf.mxu0
    %v1018 = vpop.f32.mrf.mxu0
    %v1019 = vadd.f32 %v171, %v1018
    %v1020 = vpop.f32.mrf.mxu0
    %1021 = vmatprep.mubr.bf16.mxu0 0
    %1022 = vmatmul.mubr.bf16.gmra.mxu0 %v477
    %v1023 = vpop.f32.mrf.mxu0
    %v1024 = vadd.f32 %v171, %v1023
    %v1025 = vpop.f32.mrf.mxu0
    %v1026 = vpop.f32.mrf.mxu0
    %v1027 = vadd.f32 %v171, %v1026
    %v1028 = vpop.f32.mrf.mxu0
    %1029 = vmatprep.mubr.bf16.mxu0 0
    %1030 = vmatmul.mubr.bf16.gmra.mxu0 %v478
    %v1031 = vpop.f32.mrf.mxu0
    %v1032 = vadd.f32 %v171, %v1031
    %v1033 = vpop.f32.mrf.mxu0
    %v1034 = vpop.f32.mrf.mxu0
    %v1035 = vadd.f32 %v171, %v1034
    %v1036 = vpop.f32.mrf.mxu0
    %1037 = vmatprep.mubr.bf16.mxu0 0
    %1038 = vmatmul.mubr.bf16.gmra.mxu0 %v479
    %v1039 = vpop.f32.mrf.mxu0
    %v1040 = vadd.f32 %v171, %v1039
    %v1041 = vpop.f32.mrf.mxu0
    %v1042 = vpop.f32.mrf.mxu0
    %v1043 = vadd.f32 %v171, %v1042
    %v1044 = vpop.f32.mrf.mxu0
    %1045 = vmatprep.mubr.bf16.mxu0 0
    %1046 = vmatmul.mubr.bf16.gmra.mxu0 %v480
    %v1047 = vpop.f32.mrf.mxu0
    %v1048 = vadd.f32 %v171, %v1047
    %v1049 = vpop.f32.mrf.mxu0
    %v1050 = vpop.f32.mrf.mxu0
    %v1051 = vadd.f32 %v171, %v1050
    %v1052 = vpop.f32.mrf.mxu0
    %1053 = vmatprep.mubr.bf16.mxu0 0
    %1054 = vmatmul.mubr.bf16.gmra.mxu0 %v481
    %v1055 = vpop.f32.mrf.mxu0
    %v1056 = vadd.f32 %v171, %v1055
    %v1057 = vpop.f32.mrf.mxu0
    %v1058 = vpop.f32.mrf.mxu0
    %v1059 = vadd.f32 %v171, %v1058
    %v1060 = vpop.f32.mrf.mxu0
    %1061 = vmatprep.mubr.bf16.mxu0 0
    %1062 = vmatmul.mubr.bf16.gmra.mxu0 %v482
    %v1063 = vpop.f32.mrf.mxu0
    %v1064 = vadd.f32 %v171, %v1063
    %v1065 = vpop.f32.mrf.mxu0
    %v1066 = vpop.f32.mrf.mxu0
    %v1067 = vadd.f32 %v171, %v1066
    %v1068 = vpop.f32.mrf.mxu0
    %1069 = vmatprep.mubr.bf16.mxu0 0
    %1070 = vmatmul.mubr.bf16.gmra.mxu0 %v483
    %v1071 = vpop.f32.mrf.mxu0
    %v1072 = vadd.f32 %v171, %v1071
    %v1073 = vpop.f32.mrf.mxu0
    %v1074 = vpop.f32.mrf.mxu0
    %v1075 = vadd.f32 %v171, %v1074
    %v1076 = vpop.f32.mrf.mxu0
    %1077 = vmatprep.mubr.bf16.mxu0 0
    %1078 = vmatmul.mubr.bf16.gmra.mxu0 %v484
    %v1079 = vpop.f32.mrf.mxu0
    %v1080 = vadd.f32 %v171, %v1079
    %v1081 = vpop.f32.mrf.mxu0
    %v1082 = vpop.f32.mrf.mxu0
    %v1083 = vadd.f32 %v171, %v1082
    %v1084 = vpop.f32.mrf.mxu0
    %1085 = vmatprep.mubr.bf16.mxu0 0
    %1086 = vmatmul.mubr.bf16.gmra.mxu0 %v485
    %v1087 = vpop.f32.mrf.mxu0
    %v1088 = vadd.f32 %v171, %v1087
    %v1089 = vpop.f32.mrf.mxu0
    %v1090 = vpop.f32.mrf.mxu0
    %v1091 = vadd.f32 %v171, %v1090
    %v1092 = vpop.f32.mrf.mxu0
    %1093 = vmatprep.mubr.bf16.mxu0 0
    %1094 = vmatmul.mubr.bf16.gmra.mxu0 %v486
    %v1095 = vpop.f32.mrf.mxu0
    %v1096 = vadd.f32 %v171, %v1095
    %v1097 = vpop.f32.mrf.mxu0
    %v1098 = vpop.f32.mrf.mxu0
    %v1099 = vadd.f32 %v171, %v1098
    %v1100 = vpop.f32.mrf.mxu0
    %1101 = vmatprep.mubr.bf16.mxu0 0
    %1102 = vmatmul.mubr.bf16.gmra.mxu0 %v487
    %v1103 = vpop.f32.mrf.mxu0
    %v1104 = vadd.f32 %v171, %v1103
    %v1105 = vpop.f32.mrf.mxu0
    %v1106 = vpop.f32.mrf.mxu0
    %v1107 = vadd.f32 %v171, %v1106
    %v1108 = vpop.f32.mrf.mxu0
    %1109 = vmatprep.mubr.bf16.mxu0 0
    %1110 = vmatmul.mubr.bf16.gmra.mxu0 %v488
    %v1111 = vpop.f32.mrf.mxu0
    %v1112 = vadd.f32 %v171, %v1111
    %v1113 = vpop.f32.mrf.mxu0
    %v1114 = vpop.f32.mrf.mxu0
    %v1115 = vadd.f32 %v171, %v1114
    %v1116 = vpop.f32.mrf.mxu0
    %1117 = vmatprep.mubr.bf16.mxu0 0
    %1118 = vmatmul.mubr.bf16.gmra.mxu0 %v489
    %v1119 = vpop.f32.mrf.mxu0
    %v1120 = vadd.f32 %v171, %v1119
    %v1121 = vpop.f32.mrf.mxu0
    %v1122 = vpop.f32.mrf.mxu0
    %v1123 = vadd.f32 %v171, %v1122
    %v1124 = vpop.f32.mrf.mxu0
    %1125 = vmatprep.mubr.bf16.mxu0 0
    %1126 = vmatmul.mubr.bf16.gmra.mxu0 %v490
    %v1127 = vpop.f32.mrf.mxu0
    %v1128 = vadd.f32 %v171, %v1127
    %v1129 = vpop.f32.mrf.mxu0
    %v1130 = vpop.f32.mrf.mxu0
    %v1131 = vadd.f32 %v171, %v1130
    %v1132 = vpop.f32.mrf.mxu0
    %1133 = vmatprep.mubr.bf16.mxu0 0
    %1134 = vmatmul.mubr.bf16.gmra.mxu0 %v491
    %v1135 = vpop.f32.mrf.mxu0
    %v1136 = vadd.f32 %v171, %v1135
    %v1137 = vpop.f32.mrf.mxu0
    %v1138 = vpop.f32.mrf.mxu0
    %v1139 = vadd.f32 %v171, %v1138
    %v1140 = vpop.f32.mrf.mxu0
    %1141 = vmatprep.mubr.bf16.mxu0 0
    %1142 = vmatmul.mubr.bf16.gmra.mxu0 %v492
    %v1143 = vpop.f32.mrf.mxu0
    %v1144 = vadd.f32 %v171, %v1143
    %v1145 = vpop.f32.mrf.mxu0
    %v1146 = vpop.f32.mrf.mxu0
    %v1147 = vadd.f32 %v171, %v1146
    %v1148 = vpop.f32.mrf.mxu0
    %1149 = vdwg.mxu0
    %v1150 = vld [vmem:[%s3] sm:$0x1]
    %v1152 = vlaneseq
    %v1153 = vshrl.u32 %v1152, 7
    %v1154 = vsub.s32 0, %v1153
    %v1155 = vrot.slane %v1150, %v1154
    %v1157 = vmul.f32 %v640, %v1155
    %v1158 = vmul.f32 %v643, %v1155
    %v1159 = vmul.f32 %v648, %v1155
    %v1160 = vmul.f32 %v651, %v1155
    %v1161 = vmul.f32 %v656, %v1155
    %v1162 = vmul.f32 %v659, %v1155
    %v1163 = vmul.f32 %v664, %v1155
    %v1164 = vmul.f32 %v667, %v1155
    %v1165 = vmul.f32 %v672, %v1155
    %v1166 = vmul.f32 %v675, %v1155
    %v1167 = vmul.f32 %v680, %v1155
    %v1168 = vmul.f32 %v683, %v1155
    %v1169 = vmul.f32 %v688, %v1155
    %v1170 = vmul.f32 %v691, %v1155
    %v1171 = vmul.f32 %v696, %v1155
    %v1172 = vmul.f32 %v699, %v1155
    %v1173 = vmul.f32 %v704, %v1155
    %v1174 = vmul.f32 %v707, %v1155
    %v1175 = vmul.f32 %v712, %v1155
    %v1176 = vmul.f32 %v715, %v1155
    %v1177 = vmul.f32 %v720, %v1155
    %v1178 = vmul.f32 %v723, %v1155
    %v1179 = vmul.f32 %v728, %v1155
    %v1180 = vmul.f32 %v731, %v1155
    %v1181 = vmul.f32 %v736, %v1155
    %v1182 = vmul.f32 %v739, %v1155
    %v1183 = vmul.f32 %v744, %v1155
    %v1184 = vmul.f32 %v747, %v1155
    %v1185 = vmul.f32 %v752, %v1155
    %v1186 = vmul.f32 %v755, %v1155
    %v1187 = vmul.f32 %v760, %v1155
    %v1188 = vmul.f32 %v763, %v1155
    %v1189 = vmul.f32 %v768, %v1155
    %v1190 = vmul.f32 %v771, %v1155
    %v1191 = vmul.f32 %v776, %v1155
    %v1192 = vmul.f32 %v779, %v1155
    %v1193 = vmul.f32 %v784, %v1155
    %v1194 = vmul.f32 %v787, %v1155
    %v1195 = vmul.f32 %v792, %v1155
    %v1196 = vmul.f32 %v795, %v1155
    %v1197 = vmul.f32 %v800, %v1155
    %v1198 = vmul.f32 %v803, %v1155
    %v1199 = vmul.f32 %v808, %v1155
    %v1200 = vmul.f32 %v811, %v1155
    %v1201 = vmul.f32 %v816, %v1155
    %v1202 = vmul.f32 %v819, %v1155
    %v1203 = vmul.f32 %v824, %v1155
    %v1204 = vmul.f32 %v827, %v1155
    %v1205 = vmul.f32 %v832, %v1155
    %v1206 = vmul.f32 %v835, %v1155
    %v1207 = vmul.f32 %v840, %v1155
    %v1208 = vmul.f32 %v843, %v1155
    %v1209 = vmul.f32 %v848, %v1155
    %v1210 = vmul.f32 %v851, %v1155
    %v1211 = vmul.f32 %v856, %v1155
    %v1212 = vmul.f32 %v859, %v1155
    %v1213 = vmul.f32 %v864, %v1155
    %v1214 = vmul.f32 %v867, %v1155
    %v1215 = vmul.f32 %v872, %v1155
    %v1216 = vmul.f32 %v875, %v1155
    %v1217 = vmul.f32 %v880, %v1155
    %v1218 = vmul.f32 %v883, %v1155
    %v1219 = vmul.f32 %v888, %v1155
    %v1220 = vmul.f32 %v891, %v1155
    %v1221 = vmul.f32 %v896, %v1155
    %v1222 = vmul.f32 %v899, %v1155
    %v1223 = vmul.f32 %v904, %v1155
    %v1224 = vmul.f32 %v907, %v1155
    %v1225 = vmul.f32 %v912, %v1155
    %v1226 = vmul.f32 %v915, %v1155
    %v1227 = vmul.f32 %v920, %v1155
    %v1228 = vmul.f32 %v923, %v1155
    %v1229 = vmul.f32 %v928, %v1155
    %v1230 = vmul.f32 %v931, %v1155
    %v1231 = vmul.f32 %v936, %v1155
    %v1232 = vmul.f32 %v939, %v1155
    %v1233 = vmul.f32 %v944, %v1155
    %v1234 = vmul.f32 %v947, %v1155
    %v1235 = vmul.f32 %v952, %v1155
    %v1236 = vmul.f32 %v955, %v1155
    %v1237 = vmul.f32 %v960, %v1155
    %v1238 = vmul.f32 %v963, %v1155
    %v1239 = vmul.f32 %v968, %v1155
    %v1240 = vmul.f32 %v971, %v1155
    %v1241 = vmul.f32 %v976, %v1155
    %v1242 = vmul.f32 %v979, %v1155
    %v1243 = vmul.f32 %v984, %v1155
    %v1244 = vmul.f32 %v987, %v1155
    %v1245 = vmul.f32 %v992, %v1155
    %v1246 = vmul.f32 %v995, %v1155
    %v1247 = vmul.f32 %v1000, %v1155
    %v1248 = vmul.f32 %v1003, %v1155
    %v1249 = vmul.f32 %v1008, %v1155
    %v1250 = vmul.f32 %v1011, %v1155
    %v1251 = vmul.f32 %v1016, %v1155
    %v1252 = vmul.f32 %v1019, %v1155
    %v1253 = vmul.f32 %v1024, %v1155
    %v1254 = vmul.f32 %v1027, %v1155
    %v1255 = vmul.f32 %v1032, %v1155
    %v1256 = vmul.f32 %v1035, %v1155
    %v1257 = vmul.f32 %v1040, %v1155
    %v1258 = vmul.f32 %v1043, %v1155
    %v1259 = vmul.f32 %v1048, %v1155
    %v1260 = vmul.f32 %v1051, %v1155
    %v1261 = vmul.f32 %v1056, %v1155
    %v1262 = vmul.f32 %v1059, %v1155
    %v1263 = vmul.f32 %v1064, %v1155
    %v1264 = vmul.f32 %v1067, %v1155
    %v1265 = vmul.f32 %v1072, %v1155
    %v1266 = vmul.f32 %v1075, %v1155
    %v1267 = vmul.f32 %v1080, %v1155
    %v1268 = vmul.f32 %v1083, %v1155
    %v1269 = vmul.f32 %v1088, %v1155
    %v1270 = vmul.f32 %v1091, %v1155
    %v1271 = vmul.f32 %v1096, %v1155
    %v1272 = vmul.f32 %v1099, %v1155
    %v1273 = vmul.f32 %v1104, %v1155
    %v1274 = vmul.f32 %v1107, %v1155
    %v1275 = vmul.f32 %v1112, %v1155
    %v1276 = vmul.f32 %v1115, %v1155
    %v1277 = vmul.f32 %v1120, %v1155
    %v1278 = vmul.f32 %v1123, %v1155
    %v1279 = vmul.f32 %v1128, %v1155
    %v1280 = vmul.f32 %v1131, %v1155
    %v1281 = vmul.f32 %v1136, %v1155
    %v1282 = vmul.f32 %v1139, %v1155
    %v1283 = vmul.f32 %v1144, %v1155
    %v1284 = vmul.f32 %v1147, %v1155
    %v1285 = vld [vmem:[%s4] sm:$0x1]
    %v1287 = vlaneseq
    %v1288 = vshrl.u32 %v1287, 7
    %v1289 = vsub.s32 0, %v1288
    %v1290 = vrot.slane %v1285, %v1289
    %v1292 = vadd.f32 %v1157, %v1290
    %v1293 = vadd.f32 %v1158, %v1290
    %v1294 = vadd.f32 %v1159, %v1290
    %v1295 = vadd.f32 %v1160, %v1290
    %v1296 = vadd.f32 %v1161, %v1290
    %v1297 = vadd.f32 %v1162, %v1290
    %v1298 = vadd.f32 %v1163, %v1290
    %v1299 = vadd.f32 %v1164, %v1290
    %v1300 = vadd.f32 %v1165, %v1290
    %v1301 = vadd.f32 %v1166, %v1290
    %v1302 = vadd.f32 %v1167, %v1290
    %v1303 = vadd.f32 %v1168, %v1290
    %v1304 = vadd.f32 %v1169, %v1290
    %v1305 = vadd.f32 %v1170, %v1290
    %v1306 = vadd.f32 %v1171, %v1290
    %v1307 = vadd.f32 %v1172, %v1290
    %v1308 = vadd.f32 %v1173, %v1290
    %v1309 = vadd.f32 %v1174, %v1290
    %v1310 = vadd.f32 %v1175, %v1290
    %v1311 = vadd.f32 %v1176, %v1290
    %v1312 = vadd.f32 %v1177, %v1290
    %v1313 = vadd.f32 %v1178, %v1290
    %v1314 = vadd.f32 %v1179, %v1290
    %v1315 = vadd.f32 %v1180, %v1290
    %v1316 = vadd.f32 %v1181, %v1290
    %v1317 = vadd.f32 %v1182, %v1290
    %v1318 = vadd.f32 %v1183, %v1290
    %v1319 = vadd.f32 %v1184, %v1290
    %v1320 = vadd.f32 %v1185, %v1290
    %v1321 = vadd.f32 %v1186, %v1290
    %v1322 = vadd.f32 %v1187, %v1290
    %v1323 = vadd.f32 %v1188, %v1290
    %v1324 = vadd.f32 %v1189, %v1290
    %v1325 = vadd.f32 %v1190, %v1290
    %v1326 = vadd.f32 %v1191, %v1290
    %v1327 = vadd.f32 %v1192, %v1290
    %v1328 = vadd.f32 %v1193, %v1290
    %v1329 = vadd.f32 %v1194, %v1290
    %v1330 = vadd.f32 %v1195, %v1290
    %v1331 = vadd.f32 %v1196, %v1290
    %v1332 = vadd.f32 %v1197, %v1290
    %v1333 = vadd.f32 %v1198, %v1290
    %v1334 = vadd.f32 %v1199, %v1290
    %v1335 = vadd.f32 %v1200, %v1290
    %v1336 = vadd.f32 %v1201, %v1290
    %v1337 = vadd.f32 %v1202, %v1290
    %v1338 = vadd.f32 %v1203, %v1290
    %v1339 = vadd.f32 %v1204, %v1290
    %v1340 = vadd.f32 %v1205, %v1290
    %v1341 = vadd.f32 %v1206, %v1290
    %v1342 = vadd.f32 %v1207, %v1290
    %v1343 = vadd.f32 %v1208, %v1290
    %v1344 = vadd.f32 %v1209, %v1290
    %v1345 = vadd.f32 %v1210, %v1290
    %v1346 = vadd.f32 %v1211, %v1290
    %v1347 = vadd.f32 %v1212, %v1290
    %v1348 = vadd.f32 %v1213, %v1290
    %v1349 = vadd.f32 %v1214, %v1290
    %v1350 = vadd.f32 %v1215, %v1290
    %v1351 = vadd.f32 %v1216, %v1290
    %v1352 = vadd.f32 %v1217, %v1290
    %v1353 = vadd.f32 %v1218, %v1290
    %v1354 = vadd.f32 %v1219, %v1290
    %v1355 = vadd.f32 %v1220, %v1290
    %v1356 = vadd.f32 %v1221, %v1290
    %v1357 = vadd.f32 %v1222, %v1290
    %v1358 = vadd.f32 %v1223, %v1290
    %v1359 = vadd.f32 %v1224, %v1290
    %v1360 = vadd.f32 %v1225, %v1290
    %v1361 = vadd.f32 %v1226, %v1290
    %v1362 = vadd.f32 %v1227, %v1290
    %v1363 = vadd.f32 %v1228, %v1290
    %v1364 = vadd.f32 %v1229, %v1290
    %v1365 = vadd.f32 %v1230, %v1290
    %v1366 = vadd.f32 %v1231, %v1290
    %v1367 = vadd.f32 %v1232, %v1290
    %v1368 = vadd.f32 %v1233, %v1290
    %v1369 = vadd.f32 %v1234, %v1290
    %v1370 = vadd.f32 %v1235, %v1290
    %v1371 = vadd.f32 %v1236, %v1290
    %v1372 = vadd.f32 %v1237, %v1290
    %v1373 = vadd.f32 %v1238, %v1290
    %v1374 = vadd.f32 %v1239, %v1290
    %v1375 = vadd.f32 %v1240, %v1290
    %v1376 = vadd.f32 %v1241, %v1290
    %v1377 = vadd.f32 %v1242, %v1290
    %v1378 = vadd.f32 %v1243, %v1290
    %v1379 = vadd.f32 %v1244, %v1290
    %v1380 = vadd.f32 %v1245, %v1290
    %v1381 = vadd.f32 %v1246, %v1290
    %v1382 = vadd.f32 %v1247, %v1290
    %v1383 = vadd.f32 %v1248, %v1290
    %v1384 = vadd.f32 %v1249, %v1290
    %v1385 = vadd.f32 %v1250, %v1290
    %v1386 = vadd.f32 %v1251, %v1290
    %v1387 = vadd.f32 %v1252, %v1290
    %v1388 = vadd.f32 %v1253, %v1290
    %v1389 = vadd.f32 %v1254, %v1290
    %v1390 = vadd.f32 %v1255, %v1290
    %v1391 = vadd.f32 %v1256, %v1290
    %v1392 = vadd.f32 %v1257, %v1290
    %v1393 = vadd.f32 %v1258, %v1290
    %v1394 = vadd.f32 %v1259, %v1290
    %v1395 = vadd.f32 %v1260, %v1290
    %v1396 = vadd.f32 %v1261, %v1290
    %v1397 = vadd.f32 %v1262, %v1290
    %v1398 = vadd.f32 %v1263, %v1290
    %v1399 = vadd.f32 %v1264, %v1290
    %v1400 = vadd.f32 %v1265, %v1290
    %v1401 = vadd.f32 %v1266, %v1290
    %v1402 = vadd.f32 %v1267, %v1290
    %v1403 = vadd.f32 %v1268, %v1290
    %v1404 = vadd.f32 %v1269, %v1290
    %v1405 = vadd.f32 %v1270, %v1290
    %v1406 = vadd.f32 %v1271, %v1290
    %v1407 = vadd.f32 %v1272, %v1290
    %v1408 = vadd.f32 %v1273, %v1290
    %v1409 = vadd.f32 %v1274, %v1290
    %v1410 = vadd.f32 %v1275, %v1290
    %v1411 = vadd.f32 %v1276, %v1290
    %v1412 = vadd.f32 %v1277, %v1290
    %v1413 = vadd.f32 %v1278, %v1290
    %v1414 = vadd.f32 %v1279, %v1290
    %v1415 = vadd.f32 %v1280, %v1290
    %v1416 = vadd.f32 %v1281, %v1290
    %v1417 = vadd.f32 %v1282, %v1290
    %v1418 = vadd.f32 %v1283, %v1290
    %v1419 = vadd.f32 %v1284, %v1290
    %v1420 = vmax.f32 %v1292, 0.0
    %v1421 = vmax.f32 %v1293, 0.0
    %v1422 = vmax.f32 %v1294, 0.0
    %v1423 = vmax.f32 %v1295, 0.0
    %v1424 = vmax.f32 %v1296, 0.0
    %v1425 = vmax.f32 %v1297, 0.0
    %v1426 = vmax.f32 %v1298, 0.0
    %v1427 = vmax.f32 %v1299, 0.0
    %v1428 = vmax.f32 %v1300, 0.0
    %v1429 = vmax.f32 %v1301, 0.0
    %v1430 = vmax.f32 %v1302, 0.0
    %v1431 = vmax.f32 %v1303, 0.0
    %v1432 = vmax.f32 %v1304, 0.0
    %v1433 = vmax.f32 %v1305, 0.0
    %v1434 = vmax.f32 %v1306, 0.0
    %v1435 = vmax.f32 %v1307, 0.0
    %v1436 = vmax.f32 %v1308, 0.0
    %v1437 = vmax.f32 %v1309, 0.0
    %v1438 = vmax.f32 %v1310, 0.0
    %v1439 = vmax.f32 %v1311, 0.0
    %v1440 = vmax.f32 %v1312, 0.0
    %v1441 = vmax.f32 %v1313, 0.0
    %v1442 = vmax.f32 %v1314, 0.0
    %v1443 = vmax.f32 %v1315, 0.0
    %v1444 = vmax.f32 %v1316, 0.0
    %v1445 = vmax.f32 %v1317, 0.0
    %v1446 = vmax.f32 %v1318, 0.0
    %v1447 = vmax.f32 %v1319, 0.0
    %v1448 = vmax.f32 %v1320, 0.0
    %v1449 = vmax.f32 %v1321, 0.0
    %v1450 = vmax.f32 %v1322, 0.0
    %v1451 = vmax.f32 %v1323, 0.0
    %v1452 = vmax.f32 %v1324, 0.0
    %v1453 = vmax.f32 %v1325, 0.0
    %v1454 = vmax.f32 %v1326, 0.0
    %v1455 = vmax.f32 %v1327, 0.0
    %v1456 = vmax.f32 %v1328, 0.0
    %v1457 = vmax.f32 %v1329, 0.0
    %v1458 = vmax.f32 %v1330, 0.0
    %v1459 = vmax.f32 %v1331, 0.0
    %v1460 = vmax.f32 %v1332, 0.0
    %v1461 = vmax.f32 %v1333, 0.0
    %v1462 = vmax.f32 %v1334, 0.0
    %v1463 = vmax.f32 %v1335, 0.0
    %v1464 = vmax.f32 %v1336, 0.0
    %v1465 = vmax.f32 %v1337, 0.0
    %v1466 = vmax.f32 %v1338, 0.0
    %v1467 = vmax.f32 %v1339, 0.0
    %v1468 = vmax.f32 %v1340, 0.0
    %v1469 = vmax.f32 %v1341, 0.0
    %v1470 = vmax.f32 %v1342, 0.0
    %v1471 = vmax.f32 %v1343, 0.0
    %v1472 = vmax.f32 %v1344, 0.0
    %v1473 = vmax.f32 %v1345, 0.0
    %v1474 = vmax.f32 %v1346, 0.0
    %v1475 = vmax.f32 %v1347, 0.0
    %v1476 = vmax.f32 %v1348, 0.0
    %v1477 = vmax.f32 %v1349, 0.0
    %v1478 = vmax.f32 %v1350, 0.0
    %v1479 = vmax.f32 %v1351, 0.0
    %v1480 = vmax.f32 %v1352, 0.0
    %v1481 = vmax.f32 %v1353, 0.0
    %v1482 = vmax.f32 %v1354, 0.0
    %v1483 = vmax.f32 %v1355, 0.0
    %v1484 = vmax.f32 %v1356, 0.0
    %v1485 = vmax.f32 %v1357, 0.0
    %v1486 = vmax.f32 %v1358, 0.0
    %v1487 = vmax.f32 %v1359, 0.0
    %v1488 = vmax.f32 %v1360, 0.0
    %v1489 = vmax.f32 %v1361, 0.0
    %v1490 = vmax.f32 %v1362, 0.0
    %v1491 = vmax.f32 %v1363, 0.0
    %v1492 = vmax.f32 %v1364, 0.0
    %v1493 = vmax.f32 %v1365, 0.0
    %v1494 = vmax.f32 %v1366, 0.0
    %v1495 = vmax.f32 %v1367, 0.0
    %v1496 = vmax.f32 %v1368, 0.0
    %v1497 = vmax.f32 %v1369, 0.0
    %v1498 = vmax.f32 %v1370, 0.0
    %v1499 = vmax.f32 %v1371, 0.0
    %v1500 = vmax.f32 %v1372, 0.0
    %v1501 = vmax.f32 %v1373, 0.0
    %v1502 = vmax.f32 %v1374, 0.0
    %v1503 = vmax.f32 %v1375, 0.0
    %v1504 = vmax.f32 %v1376, 0.0
    %v1505 = vmax.f32 %v1377, 0.0
    %v1506 = vmax.f32 %v1378, 0.0
    %v1507 = vmax.f32 %v1379, 0.0
    %v1508 = vmax.f32 %v1380, 0.0
    %v1509 = vmax.f32 %v1381, 0.0
    %v1510 = vmax.f32 %v1382, 0.0
    %v1511 = vmax.f32 %v1383, 0.0
    %v1512 = vmax.f32 %v1384, 0.0
    %v1513 = vmax.f32 %v1385, 0.0
    %v1514 = vmax.f32 %v1386, 0.0
    %v1515 = vmax.f32 %v1387, 0.0
    %v1516 = vmax.f32 %v1388, 0.0
    %v1517 = vmax.f32 %v1389, 0.0
    %v1518 = vmax.f32 %v1390, 0.0
    %v1519 = vmax.f32 %v1391, 0.0
    %v1520 = vmax.f32 %v1392, 0.0
    %v1521 = vmax.f32 %v1393, 0.0
    %v1522 = vmax.f32 %v1394, 0.0
    %v1523 = vmax.f32 %v1395, 0.0
    %v1524 = vmax.f32 %v1396, 0.0
    %v1525 = vmax.f32 %v1397, 0.0
    %v1526 = vmax.f32 %v1398, 0.0
    %v1527 = vmax.f32 %v1399, 0.0
    %v1528 = vmax.f32 %v1400, 0.0
    %v1529 = vmax.f32 %v1401, 0.0
    %v1530 = vmax.f32 %v1402, 0.0
    %v1531 = vmax.f32 %v1403, 0.0
    %v1532 = vmax.f32 %v1404, 0.0
    %v1533 = vmax.f32 %v1405, 0.0
    %v1534 = vmax.f32 %v1406, 0.0
    %v1535 = vmax.f32 %v1407, 0.0
    %v1536 = vmax.f32 %v1408, 0.0
    %v1537 = vmax.f32 %v1409, 0.0
    %v1538 = vmax.f32 %v1410, 0.0
    %v1539 = vmax.f32 %v1411, 0.0
    %v1540 = vmax.f32 %v1412, 0.0
    %v1541 = vmax.f32 %v1413, 0.0
    %v1542 = vmax.f32 %v1414, 0.0
    %v1543 = vmax.f32 %v1415, 0.0
    %v1544 = vmax.f32 %v1416, 0.0
    %v1545 = vmax.f32 %v1417, 0.0
    %v1546 = vmax.f32 %v1418, 0.0
    %v1547 = vmax.f32 %v1419, 0.0
    %v1548 = vrot.slane %v1420, 4
    %v1549 = vmax.f32 %v1420, %v1548
    %v1550 = vrot.slane %v1549, 2
    %v1551 = vmax.f32 %v1549, %v1550
    %v1552 = vrot.slane %v1551, 1
    %v1553 = vmax.f32 %v1551, %v1552
    %v1554 = vrot.slane %v1421, 4
    %v1555 = vmax.f32 %v1421, %v1554
    %v1556 = vrot.slane %v1555, 2
    %v1557 = vmax.f32 %v1555, %v1556
    %v1558 = vrot.slane %v1557, 1
    %v1559 = vmax.f32 %v1557, %v1558
    %v1560 = vrot.slane %v1422, 4
    %v1561 = vmax.f32 %v1422, %v1560
    %v1562 = vrot.slane %v1561, 2
    %v1563 = vmax.f32 %v1561, %v1562
    %v1564 = vrot.slane %v1563, 1
    %v1565 = vmax.f32 %v1563, %v1564
    %v1566 = vrot.slane %v1423, 4
    %v1567 = vmax.f32 %v1423, %v1566
    %v1568 = vrot.slane %v1567, 2
    %v1569 = vmax.f32 %v1567, %v1568
    %v1570 = vrot.slane %v1569, 1
    %v1571 = vmax.f32 %v1569, %v1570
    %v1572 = vrot.slane %v1424, 4
    %v1573 = vmax.f32 %v1424, %v1572
    %v1574 = vrot.slane %v1573, 2
    %v1575 = vmax.f32 %v1573, %v1574
    %v1576 = vrot.slane %v1575, 1
    %v1577 = vmax.f32 %v1575, %v1576
    %v1578 = vrot.slane %v1425, 4
    %v1579 = vmax.f32 %v1425, %v1578
    %v1580 = vrot.slane %v1579, 2
    %v1581 = vmax.f32 %v1579, %v1580
    %v1582 = vrot.slane %v1581, 1
    %v1583 = vmax.f32 %v1581, %v1582
    %v1584 = vrot.slane %v1426, 4
    %v1585 = vmax.f32 %v1426, %v1584
    %v1586 = vrot.slane %v1585, 2
    %v1587 = vmax.f32 %v1585, %v1586
    %v1588 = vrot.slane %v1587, 1
    %v1589 = vmax.f32 %v1587, %v1588
    %v1590 = vrot.slane %v1427, 4
    %v1591 = vmax.f32 %v1427, %v1590
    %v1592 = vrot.slane %v1591, 2
    %v1593 = vmax.f32 %v1591, %v1592
    %v1594 = vrot.slane %v1593, 1
    %v1595 = vmax.f32 %v1593, %v1594
    %v1596 = vrot.slane %v1428, 4
    %v1597 = vmax.f32 %v1428, %v1596
    %v1598 = vrot.slane %v1597, 2
    %v1599 = vmax.f32 %v1597, %v1598
    %v1600 = vrot.slane %v1599, 1
    %v1601 = vmax.f32 %v1599, %v1600
    %v1602 = vrot.slane %v1429, 4
    %v1603 = vmax.f32 %v1429, %v1602
    %v1604 = vrot.slane %v1603, 2
    %v1605 = vmax.f32 %v1603, %v1604
    %v1606 = vrot.slane %v1605, 1
    %v1607 = vmax.f32 %v1605, %v1606
    %v1608 = vrot.slane %v1430, 4
    %v1609 = vmax.f32 %v1430, %v1608
    %v1610 = vrot.slane %v1609, 2
    %v1611 = vmax.f32 %v1609, %v1610
    %v1612 = vrot.slane %v1611, 1
    %v1613 = vmax.f32 %v1611, %v1612
    %v1614 = vrot.slane %v1431, 4
    %v1615 = vmax.f32 %v1431, %v1614
    %v1616 = vrot.slane %v1615, 2
    %v1617 = vmax.f32 %v1615, %v1616
    %v1618 = vrot.slane %v1617, 1
    %v1619 = vmax.f32 %v1617, %v1618
    %v1620 = vrot.slane %v1432, 4
    %v1621 = vmax.f32 %v1432, %v1620
    %v1622 = vrot.slane %v1621, 2
    %v1623 = vmax.f32 %v1621, %v1622
    %v1624 = vrot.slane %v1623, 1
    %v1625 = vmax.f32 %v1623, %v1624
    %v1626 = vrot.slane %v1433, 4
    %v1627 = vmax.f32 %v1433, %v1626
    %v1628 = vrot.slane %v1627, 2
    %v1629 = vmax.f32 %v1627, %v1628
    %v1630 = vrot.slane %v1629, 1
    %v1631 = vmax.f32 %v1629, %v1630
    %v1632 = vrot.slane %v1434, 4
    %v1633 = vmax.f32 %v1434, %v1632
    %v1634 = vrot.slane %v1633, 2
    %v1635 = vmax.f32 %v1633, %v1634
    %v1636 = vrot.slane %v1635, 1
    %v1637 = vmax.f32 %v1635, %v1636
    %v1638 = vrot.slane %v1435, 4
    %v1639 = vmax.f32 %v1435, %v1638
    %v1640 = vrot.slane %v1639, 2
    %v1641 = vmax.f32 %v1639, %v1640
    %v1642 = vrot.slane %v1641, 1
    %v1643 = vmax.f32 %v1641, %v1642
    %v1644 = vrot.slane %v1436, 4
    %v1645 = vmax.f32 %v1436, %v1644
    %v1646 = vrot.slane %v1645, 2
    %v1647 = vmax.f32 %v1645, %v1646
    %v1648 = vrot.slane %v1647, 1
    %v1649 = vmax.f32 %v1647, %v1648
    %v1650 = vrot.slane %v1437, 4
    %v1651 = vmax.f32 %v1437, %v1650
    %v1652 = vrot.slane %v1651, 2
    %v1653 = vmax.f32 %v1651, %v1652
    %v1654 = vrot.slane %v1653, 1
    %v1655 = vmax.f32 %v1653, %v1654
    %v1656 = vrot.slane %v1438, 4
    %v1657 = vmax.f32 %v1438, %v1656
    %v1658 = vrot.slane %v1657, 2
    %v1659 = vmax.f32 %v1657, %v1658
    %v1660 = vrot.slane %v1659, 1
    %v1661 = vmax.f32 %v1659, %v1660
    %v1662 = vrot.slane %v1439, 4
    %v1663 = vmax.f32 %v1439, %v1662
    %v1664 = vrot.slane %v1663, 2
    %v1665 = vmax.f32 %v1663, %v1664
    %v1666 = vrot.slane %v1665, 1
    %v1667 = vmax.f32 %v1665, %v1666
    %v1668 = vrot.slane %v1440, 4
    %v1669 = vmax.f32 %v1440, %v1668
    %v1670 = vrot.slane %v1669, 2
    %v1671 = vmax.f32 %v1669, %v1670
    %v1672 = vrot.slane %v1671, 1
    %v1673 = vmax.f32 %v1671, %v1672
    %v1674 = vrot.slane %v1441, 4
    %v1675 = vmax.f32 %v1441, %v1674
    %v1676 = vrot.slane %v1675, 2
    %v1677 = vmax.f32 %v1675, %v1676
    %v1678 = vrot.slane %v1677, 1
    %v1679 = vmax.f32 %v1677, %v1678
    %v1680 = vrot.slane %v1442, 4
    %v1681 = vmax.f32 %v1442, %v1680
    %v1682 = vrot.slane %v1681, 2
    %v1683 = vmax.f32 %v1681, %v1682
    %v1684 = vrot.slane %v1683, 1
    %v1685 = vmax.f32 %v1683, %v1684
    %v1686 = vrot.slane %v1443, 4
    %v1687 = vmax.f32 %v1443, %v1686
    %v1688 = vrot.slane %v1687, 2
    %v1689 = vmax.f32 %v1687, %v1688
    %v1690 = vrot.slane %v1689, 1
    %v1691 = vmax.f32 %v1689, %v1690
    %v1692 = vrot.slane %v1444, 4
    %v1693 = vmax.f32 %v1444, %v1692
    %v1694 = vrot.slane %v1693, 2
    %v1695 = vmax.f32 %v1693, %v1694
    %v1696 = vrot.slane %v1695, 1
    %v1697 = vmax.f32 %v1695, %v1696
    %v1698 = vrot.slane %v1445, 4
    %v1699 = vmax.f32 %v1445, %v1698
    %v1700 = vrot.slane %v1699, 2
    %v1701 = vmax.f32 %v1699, %v1700
    %v1702 = vrot.slane %v1701, 1
    %v1703 = vmax.f32 %v1701, %v1702
    %v1704 = vrot.slane %v1446, 4
    %v1705 = vmax.f32 %v1446, %v1704
    %v1706 = vrot.slane %v1705, 2
    %v1707 = vmax.f32 %v1705, %v1706
    %v1708 = vrot.slane %v1707, 1
    %v1709 = vmax.f32 %v1707, %v1708
    %v1710 = vrot.slane %v1447, 4
    %v1711 = vmax.f32 %v1447, %v1710
    %v1712 = vrot.slane %v1711, 2
    %v1713 = vmax.f32 %v1711, %v1712
    %v1714 = vrot.slane %v1713, 1
    %v1715 = vmax.f32 %v1713, %v1714
    %v1716 = vrot.slane %v1448, 4
    %v1717 = vmax.f32 %v1448, %v1716
    %v1718 = vrot.slane %v1717, 2
    %v1719 = vmax.f32 %v1717, %v1718
    %v1720 = vrot.slane %v1719, 1
    %v1721 = vmax.f32 %v1719, %v1720
    %v1722 = vrot.slane %v1449, 4
    %v1723 = vmax.f32 %v1449, %v1722
    %v1724 = vrot.slane %v1723, 2
    %v1725 = vmax.f32 %v1723, %v1724
    %v1726 = vrot.slane %v1725, 1
    %v1727 = vmax.f32 %v1725, %v1726
    %v1728 = vrot.slane %v1450, 4
    %v1729 = vmax.f32 %v1450, %v1728
    %v1730 = vrot.slane %v1729, 2
    %v1731 = vmax.f32 %v1729, %v1730
    %v1732 = vrot.slane %v1731, 1
    %v1733 = vmax.f32 %v1731, %v1732
    %v1734 = vrot.slane %v1451, 4
    %v1735 = vmax.f32 %v1451, %v1734
    %v1736 = vrot.slane %v1735, 2
    %v1737 = vmax.f32 %v1735, %v1736
    %v1738 = vrot.slane %v1737, 1
    %v1739 = vmax.f32 %v1737, %v1738
    %v1740 = vrot.slane %v1452, 4
    %v1741 = vmax.f32 %v1452, %v1740
    %v1742 = vrot.slane %v1741, 2
    %v1743 = vmax.f32 %v1741, %v1742
    %v1744 = vrot.slane %v1743, 1
    %v1745 = vmax.f32 %v1743, %v1744
    %v1746 = vrot.slane %v1453, 4
    %v1747 = vmax.f32 %v1453, %v1746
    %v1748 = vrot.slane %v1747, 2
    %v1749 = vmax.f32 %v1747, %v1748
    %v1750 = vrot.slane %v1749, 1
    %v1751 = vmax.f32 %v1749, %v1750
    %v1752 = vrot.slane %v1454, 4
    %v1753 = vmax.f32 %v1454, %v1752
    %v1754 = vrot.slane %v1753, 2
    %v1755 = vmax.f32 %v1753, %v1754
    %v1756 = vrot.slane %v1755, 1
    %v1757 = vmax.f32 %v1755, %v1756
    %v1758 = vrot.slane %v1455, 4
    %v1759 = vmax.f32 %v1455, %v1758
    %v1760 = vrot.slane %v1759, 2
    %v1761 = vmax.f32 %v1759, %v1760
    %v1762 = vrot.slane %v1761, 1
    %v1763 = vmax.f32 %v1761, %v1762
    %v1764 = vrot.slane %v1456, 4
    %v1765 = vmax.f32 %v1456, %v1764
    %v1766 = vrot.slane %v1765, 2
    %v1767 = vmax.f32 %v1765, %v1766
    %v1768 = vrot.slane %v1767, 1
    %v1769 = vmax.f32 %v1767, %v1768
    %v1770 = vrot.slane %v1457, 4
    %v1771 = vmax.f32 %v1457, %v1770
    %v1772 = vrot.slane %v1771, 2
    %v1773 = vmax.f32 %v1771, %v1772
    %v1774 = vrot.slane %v1773, 1
    %v1775 = vmax.f32 %v1773, %v1774
    %v1776 = vrot.slane %v1458, 4
    %v1777 = vmax.f32 %v1458, %v1776
    %v1778 = vrot.slane %v1777, 2
    %v1779 = vmax.f32 %v1777, %v1778
    %v1780 = vrot.slane %v1779, 1
    %v1781 = vmax.f32 %v1779, %v1780
    %v1782 = vrot.slane %v1459, 4
    %v1783 = vmax.f32 %v1459, %v1782
    %v1784 = vrot.slane %v1783, 2
    %v1785 = vmax.f32 %v1783, %v1784
    %v1786 = vrot.slane %v1785, 1
    %v1787 = vmax.f32 %v1785, %v1786
    %v1788 = vrot.slane %v1460, 4
    %v1789 = vmax.f32 %v1460, %v1788
    %v1790 = vrot.slane %v1789, 2
    %v1791 = vmax.f32 %v1789, %v1790
    %v1792 = vrot.slane %v1791, 1
    %v1793 = vmax.f32 %v1791, %v1792
    %v1794 = vrot.slane %v1461, 4
    %v1795 = vmax.f32 %v1461, %v1794
    %v1796 = vrot.slane %v1795, 2
    %v1797 = vmax.f32 %v1795, %v1796
    %v1798 = vrot.slane %v1797, 1
    %v1799 = vmax.f32 %v1797, %v1798
    %v1800 = vrot.slane %v1462, 4
    %v1801 = vmax.f32 %v1462, %v1800
    %v1802 = vrot.slane %v1801, 2
    %v1803 = vmax.f32 %v1801, %v1802
    %v1804 = vrot.slane %v1803, 1
    %v1805 = vmax.f32 %v1803, %v1804
    %v1806 = vrot.slane %v1463, 4
    %v1807 = vmax.f32 %v1463, %v1806
    %v1808 = vrot.slane %v1807, 2
    %v1809 = vmax.f32 %v1807, %v1808
    %v1810 = vrot.slane %v1809, 1
    %v1811 = vmax.f32 %v1809, %v1810
    %v1812 = vrot.slane %v1464, 4
    %v1813 = vmax.f32 %v1464, %v1812
    %v1814 = vrot.slane %v1813, 2
    %v1815 = vmax.f32 %v1813, %v1814
    %v1816 = vrot.slane %v1815, 1
    %v1817 = vmax.f32 %v1815, %v1816
    %v1818 = vrot.slane %v1465, 4
    %v1819 = vmax.f32 %v1465, %v1818
    %v1820 = vrot.slane %v1819, 2
    %v1821 = vmax.f32 %v1819, %v1820
    %v1822 = vrot.slane %v1821, 1
    %v1823 = vmax.f32 %v1821, %v1822
    %v1824 = vrot.slane %v1466, 4
    %v1825 = vmax.f32 %v1466, %v1824
    %v1826 = vrot.slane %v1825, 2
    %v1827 = vmax.f32 %v1825, %v1826
    %v1828 = vrot.slane %v1827, 1
    %v1829 = vmax.f32 %v1827, %v1828
    %v1830 = vrot.slane %v1467, 4
    %v1831 = vmax.f32 %v1467, %v1830
    %v1832 = vrot.slane %v1831, 2
    %v1833 = vmax.f32 %v1831, %v1832
    %v1834 = vrot.slane %v1833, 1
    %v1835 = vmax.f32 %v1833, %v1834
    %v1836 = vrot.slane %v1468, 4
    %v1837 = vmax.f32 %v1468, %v1836
    %v1838 = vrot.slane %v1837, 2
    %v1839 = vmax.f32 %v1837, %v1838
    %v1840 = vrot.slane %v1839, 1
    %v1841 = vmax.f32 %v1839, %v1840
    %v1842 = vrot.slane %v1469, 4
    %v1843 = vmax.f32 %v1469, %v1842
    %v1844 = vrot.slane %v1843, 2
    %v1845 = vmax.f32 %v1843, %v1844
    %v1846 = vrot.slane %v1845, 1
    %v1847 = vmax.f32 %v1845, %v1846
    %v1848 = vrot.slane %v1470, 4
    %v1849 = vmax.f32 %v1470, %v1848
    %v1850 = vrot.slane %v1849, 2
    %v1851 = vmax.f32 %v1849, %v1850
    %v1852 = vrot.slane %v1851, 1
    %v1853 = vmax.f32 %v1851, %v1852
    %v1854 = vrot.slane %v1471, 4
    %v1855 = vmax.f32 %v1471, %v1854
    %v1856 = vrot.slane %v1855, 2
    %v1857 = vmax.f32 %v1855, %v1856
    %v1858 = vrot.slane %v1857, 1
    %v1859 = vmax.f32 %v1857, %v1858
    %v1860 = vrot.slane %v1472, 4
    %v1861 = vmax.f32 %v1472, %v1860
    %v1862 = vrot.slane %v1861, 2
    %v1863 = vmax.f32 %v1861, %v1862
    %v1864 = vrot.slane %v1863, 1
    %v1865 = vmax.f32 %v1863, %v1864
    %v1866 = vrot.slane %v1473, 4
    %v1867 = vmax.f32 %v1473, %v1866
    %v1868 = vrot.slane %v1867, 2
    %v1869 = vmax.f32 %v1867, %v1868
    %v1870 = vrot.slane %v1869, 1
    %v1871 = vmax.f32 %v1869, %v1870
    %v1872 = vrot.slane %v1474, 4
    %v1873 = vmax.f32 %v1474, %v1872
    %v1874 = vrot.slane %v1873, 2
    %v1875 = vmax.f32 %v1873, %v1874
    %v1876 = vrot.slane %v1875, 1
    %v1877 = vmax.f32 %v1875, %v1876
    %v1878 = vrot.slane %v1475, 4
    %v1879 = vmax.f32 %v1475, %v1878
    %v1880 = vrot.slane %v1879, 2
    %v1881 = vmax.f32 %v1879, %v1880
    %v1882 = vrot.slane %v1881, 1
    %v1883 = vmax.f32 %v1881, %v1882
    %v1884 = vrot.slane %v1476, 4
    %v1885 = vmax.f32 %v1476, %v1884
    %v1886 = vrot.slane %v1885, 2
    %v1887 = vmax.f32 %v1885, %v1886
    %v1888 = vrot.slane %v1887, 1
    %v1889 = vmax.f32 %v1887, %v1888
    %v1890 = vrot.slane %v1477, 4
    %v1891 = vmax.f32 %v1477, %v1890
    %v1892 = vrot.slane %v1891, 2
    %v1893 = vmax.f32 %v1891, %v1892
    %v1894 = vrot.slane %v1893, 1
    %v1895 = vmax.f32 %v1893, %v1894
    %v1896 = vrot.slane %v1478, 4
    %v1897 = vmax.f32 %v1478, %v1896
    %v1898 = vrot.slane %v1897, 2
    %v1899 = vmax.f32 %v1897, %v1898
    %v1900 = vrot.slane %v1899, 1
    %v1901 = vmax.f32 %v1899, %v1900
    %v1902 = vrot.slane %v1479, 4
    %v1903 = vmax.f32 %v1479, %v1902
    %v1904 = vrot.slane %v1903, 2
    %v1905 = vmax.f32 %v1903, %v1904
    %v1906 = vrot.slane %v1905, 1
    %v1907 = vmax.f32 %v1905, %v1906
    %v1908 = vrot.slane %v1480, 4
    %v1909 = vmax.f32 %v1480, %v1908
    %v1910 = vrot.slane %v1909, 2
    %v1911 = vmax.f32 %v1909, %v1910
    %v1912 = vrot.slane %v1911, 1
    %v1913 = vmax.f32 %v1911, %v1912
    %v1914 = vrot.slane %v1481, 4
    %v1915 = vmax.f32 %v1481, %v1914
    %v1916 = vrot.slane %v1915, 2
    %v1917 = vmax.f32 %v1915, %v1916
    %v1918 = vrot.slane %v1917, 1
    %v1919 = vmax.f32 %v1917, %v1918
    %v1920 = vrot.slane %v1482, 4
    %v1921 = vmax.f32 %v1482, %v1920
    %v1922 = vrot.slane %v1921, 2
    %v1923 = vmax.f32 %v1921, %v1922
    %v1924 = vrot.slane %v1923, 1
    %v1925 = vmax.f32 %v1923, %v1924
    %v1926 = vrot.slane %v1483, 4
    %v1927 = vmax.f32 %v1483, %v1926
    %v1928 = vrot.slane %v1927, 2
    %v1929 = vmax.f32 %v1927, %v1928
    %v1930 = vrot.slane %v1929, 1
    %v1931 = vmax.f32 %v1929, %v1930
    %v1932 = vrot.slane %v1484, 4
    %v1933 = vmax.f32 %v1484, %v1932
    %v1934 = vrot.slane %v1933, 2
    %v1935 = vmax.f32 %v1933, %v1934
    %v1936 = vrot.slane %v1935, 1
    %v1937 = vmax.f32 %v1935, %v1936
    %v1938 = vrot.slane %v1485, 4
    %v1939 = vmax.f32 %v1485, %v1938
    %v1940 = vrot.slane %v1939, 2
    %v1941 = vmax.f32 %v1939, %v1940
    %v1942 = vrot.slane %v1941, 1
    %v1943 = vmax.f32 %v1941, %v1942
    %v1944 = vrot.slane %v1486, 4
    %v1945 = vmax.f32 %v1486, %v1944
    %v1946 = vrot.slane %v1945, 2
    %v1947 = vmax.f32 %v1945, %v1946
    %v1948 = vrot.slane %v1947, 1
    %v1949 = vmax.f32 %v1947, %v1948
    %v1950 = vrot.slane %v1487, 4
    %v1951 = vmax.f32 %v1487, %v1950
    %v1952 = vrot.slane %v1951, 2
    %v1953 = vmax.f32 %v1951, %v1952
    %v1954 = vrot.slane %v1953, 1
    %v1955 = vmax.f32 %v1953, %v1954
    %v1956 = vrot.slane %v1488, 4
    %v1957 = vmax.f32 %v1488, %v1956
    %v1958 = vrot.slane %v1957, 2
    %v1959 = vmax.f32 %v1957, %v1958
    %v1960 = vrot.slane %v1959, 1
    %v1961 = vmax.f32 %v1959, %v1960
    %v1962 = vrot.slane %v1489, 4
    %v1963 = vmax.f32 %v1489, %v1962
    %v1964 = vrot.slane %v1963, 2
    %v1965 = vmax.f32 %v1963, %v1964
    %v1966 = vrot.slane %v1965, 1
    %v1967 = vmax.f32 %v1965, %v1966
    %v1968 = vrot.slane %v1490, 4
    %v1969 = vmax.f32 %v1490, %v1968
    %v1970 = vrot.slane %v1969, 2
    %v1971 = vmax.f32 %v1969, %v1970
    %v1972 = vrot.slane %v1971, 1
    %v1973 = vmax.f32 %v1971, %v1972
    %v1974 = vrot.slane %v1491, 4
    %v1975 = vmax.f32 %v1491, %v1974
    %v1976 = vrot.slane %v1975, 2
    %v1977 = vmax.f32 %v1975, %v1976
    %v1978 = vrot.slane %v1977, 1
    %v1979 = vmax.f32 %v1977, %v1978
    %v1980 = vrot.slane %v1492, 4
    %v1981 = vmax.f32 %v1492, %v1980
    %v1982 = vrot.slane %v1981, 2
    %v1983 = vmax.f32 %v1981, %v1982
    %v1984 = vrot.slane %v1983, 1
    %v1985 = vmax.f32 %v1983, %v1984
    %v1986 = vrot.slane %v1493, 4
    %v1987 = vmax.f32 %v1493, %v1986
    %v1988 = vrot.slane %v1987, 2
    %v1989 = vmax.f32 %v1987, %v1988
    %v1990 = vrot.slane %v1989, 1
    %v1991 = vmax.f32 %v1989, %v1990
    %v1992 = vrot.slane %v1494, 4
    %v1993 = vmax.f32 %v1494, %v1992
    %v1994 = vrot.slane %v1993, 2
    %v1995 = vmax.f32 %v1993, %v1994
    %v1996 = vrot.slane %v1995, 1
    %v1997 = vmax.f32 %v1995, %v1996
    %v1998 = vrot.slane %v1495, 4
    %v1999 = vmax.f32 %v1495, %v1998
    %v2000 = vrot.slane %v1999, 2
    %v2001 = vmax.f32 %v1999, %v2000
    %v2002 = vrot.slane %v2001, 1
    %v2003 = vmax.f32 %v2001, %v2002
    %v2004 = vrot.slane %v1496, 4
    %v2005 = vmax.f32 %v1496, %v2004
    %v2006 = vrot.slane %v2005, 2
    %v2007 = vmax.f32 %v2005, %v2006
    %v2008 = vrot.slane %v2007, 1
    %v2009 = vmax.f32 %v2007, %v2008
    %v2010 = vrot.slane %v1497, 4
    %v2011 = vmax.f32 %v1497, %v2010
    %v2012 = vrot.slane %v2011, 2
    %v2013 = vmax.f32 %v2011, %v2012
    %v2014 = vrot.slane %v2013, 1
    %v2015 = vmax.f32 %v2013, %v2014
    %v2016 = vrot.slane %v1498, 4
    %v2017 = vmax.f32 %v1498, %v2016
    %v2018 = vrot.slane %v2017, 2
    %v2019 = vmax.f32 %v2017, %v2018
    %v2020 = vrot.slane %v2019, 1
    %v2021 = vmax.f32 %v2019, %v2020
    %v2022 = vrot.slane %v1499, 4
    %v2023 = vmax.f32 %v1499, %v2022
    %v2024 = vrot.slane %v2023, 2
    %v2025 = vmax.f32 %v2023, %v2024
    %v2026 = vrot.slane %v2025, 1
    %v2027 = vmax.f32 %v2025, %v2026
    %v2028 = vrot.slane %v1500, 4
    %v2029 = vmax.f32 %v1500, %v2028
    %v2030 = vrot.slane %v2029, 2
    %v2031 = vmax.f32 %v2029, %v2030
    %v2032 = vrot.slane %v2031, 1
    %v2033 = vmax.f32 %v2031, %v2032
    %v2034 = vrot.slane %v1501, 4
    %v2035 = vmax.f32 %v1501, %v2034
    %v2036 = vrot.slane %v2035, 2
    %v2037 = vmax.f32 %v2035, %v2036
    %v2038 = vrot.slane %v2037, 1
    %v2039 = vmax.f32 %v2037, %v2038
    %v2040 = vrot.slane %v1502, 4
    %v2041 = vmax.f32 %v1502, %v2040
    %v2042 = vrot.slane %v2041, 2
    %v2043 = vmax.f32 %v2041, %v2042
    %v2044 = vrot.slane %v2043, 1
    %v2045 = vmax.f32 %v2043, %v2044
    %v2046 = vrot.slane %v1503, 4
    %v2047 = vmax.f32 %v1503, %v2046
    %v2048 = vrot.slane %v2047, 2
    %v2049 = vmax.f32 %v2047, %v2048
    %v2050 = vrot.slane %v2049, 1
    %v2051 = vmax.f32 %v2049, %v2050
    %v2052 = vrot.slane %v1504, 4
    %v2053 = vmax.f32 %v1504, %v2052
    %v2054 = vrot.slane %v2053, 2
    %v2055 = vmax.f32 %v2053, %v2054
    %v2056 = vrot.slane %v2055, 1
    %v2057 = vmax.f32 %v2055, %v2056
    %v2058 = vrot.slane %v1505, 4
    %v2059 = vmax.f32 %v1505, %v2058
    %v2060 = vrot.slane %v2059, 2
    %v2061 = vmax.f32 %v2059, %v2060
    %v2062 = vrot.slane %v2061, 1
    %v2063 = vmax.f32 %v2061, %v2062
    %v2064 = vrot.slane %v1506, 4
    %v2065 = vmax.f32 %v1506, %v2064
    %v2066 = vrot.slane %v2065, 2
    %v2067 = vmax.f32 %v2065, %v2066
    %v2068 = vrot.slane %v2067, 1
    %v2069 = vmax.f32 %v2067, %v2068
    %v2070 = vrot.slane %v1507, 4
    %v2071 = vmax.f32 %v1507, %v2070
    %v2072 = vrot.slane %v2071, 2
    %v2073 = vmax.f32 %v2071, %v2072
    %v2074 = vrot.slane %v2073, 1
    %v2075 = vmax.f32 %v2073, %v2074
    %v2076 = vrot.slane %v1508, 4
    %v2077 = vmax.f32 %v1508, %v2076
    %v2078 = vrot.slane %v2077, 2
    %v2079 = vmax.f32 %v2077, %v2078
    %v2080 = vrot.slane %v2079, 1
    %v2081 = vmax.f32 %v2079, %v2080
    %v2082 = vrot.slane %v1509, 4
    %v2083 = vmax.f32 %v1509, %v2082
    %v2084 = vrot.slane %v2083, 2
    %v2085 = vmax.f32 %v2083, %v2084
    %v2086 = vrot.slane %v2085, 1
    %v2087 = vmax.f32 %v2085, %v2086
    %v2088 = vrot.slane %v1510, 4
    %v2089 = vmax.f32 %v1510, %v2088
    %v2090 = vrot.slane %v2089, 2
    %v2091 = vmax.f32 %v2089, %v2090
    %v2092 = vrot.slane %v2091, 1
    %v2093 = vmax.f32 %v2091, %v2092
    %v2094 = vrot.slane %v1511, 4
    %v2095 = vmax.f32 %v1511, %v2094
    %v2096 = vrot.slane %v2095, 2
    %v2097 = vmax.f32 %v2095, %v2096
    %v2098 = vrot.slane %v2097, 1
    %v2099 = vmax.f32 %v2097, %v2098
    %v2100 = vrot.slane %v1512, 4
    %v2101 = vmax.f32 %v1512, %v2100
    %v2102 = vrot.slane %v2101, 2
    %v2103 = vmax.f32 %v2101, %v2102
    %v2104 = vrot.slane %v2103, 1
    %v2105 = vmax.f32 %v2103, %v2104
    %v2106 = vrot.slane %v1513, 4
    %v2107 = vmax.f32 %v1513, %v2106
    %v2108 = vrot.slane %v2107, 2
    %v2109 = vmax.f32 %v2107, %v2108
    %v2110 = vrot.slane %v2109, 1
    %v2111 = vmax.f32 %v2109, %v2110
    %v2112 = vrot.slane %v1514, 4
    %v2113 = vmax.f32 %v1514, %v2112
    %v2114 = vrot.slane %v2113, 2
    %v2115 = vmax.f32 %v2113, %v2114
    %v2116 = vrot.slane %v2115, 1
    %v2117 = vmax.f32 %v2115, %v2116
    %v2118 = vrot.slane %v1515, 4
    %v2119 = vmax.f32 %v1515, %v2118
    %v2120 = vrot.slane %v2119, 2
    %v2121 = vmax.f32 %v2119, %v2120
    %v2122 = vrot.slane %v2121, 1
    %v2123 = vmax.f32 %v2121, %v2122
    %v2124 = vrot.slane %v1516, 4
    %v2125 = vmax.f32 %v1516, %v2124
    %v2126 = vrot.slane %v2125, 2
    %v2127 = vmax.f32 %v2125, %v2126
    %v2128 = vrot.slane %v2127, 1
    %v2129 = vmax.f32 %v2127, %v2128
    %v2130 = vrot.slane %v1517, 4
    %v2131 = vmax.f32 %v1517, %v2130
    %v2132 = vrot.slane %v2131, 2
    %v2133 = vmax.f32 %v2131, %v2132
    %v2134 = vrot.slane %v2133, 1
    %v2135 = vmax.f32 %v2133, %v2134
    %v2136 = vrot.slane %v1518, 4
    %v2137 = vmax.f32 %v1518, %v2136
    %v2138 = vrot.slane %v2137, 2
    %v2139 = vmax.f32 %v2137, %v2138
    %v2140 = vrot.slane %v2139, 1
    %v2141 = vmax.f32 %v2139, %v2140
    %v2142 = vrot.slane %v1519, 4
    %v2143 = vmax.f32 %v1519, %v2142
    %v2144 = vrot.slane %v2143, 2
    %v2145 = vmax.f32 %v2143, %v2144
    %v2146 = vrot.slane %v2145, 1
    %v2147 = vmax.f32 %v2145, %v2146
    %v2148 = vrot.slane %v1520, 4
    %v2149 = vmax.f32 %v1520, %v2148
    %v2150 = vrot.slane %v2149, 2
    %v2151 = vmax.f32 %v2149, %v2150
    %v2152 = vrot.slane %v2151, 1
    %v2153 = vmax.f32 %v2151, %v2152
    %v2154 = vrot.slane %v1521, 4
    %v2155 = vmax.f32 %v1521, %v2154
    %v2156 = vrot.slane %v2155, 2
    %v2157 = vmax.f32 %v2155, %v2156
    %v2158 = vrot.slane %v2157, 1
    %v2159 = vmax.f32 %v2157, %v2158
    %v2160 = vrot.slane %v1522, 4
    %v2161 = vmax.f32 %v1522, %v2160
    %v2162 = vrot.slane %v2161, 2
    %v2163 = vmax.f32 %v2161, %v2162
    %v2164 = vrot.slane %v2163, 1
    %v2165 = vmax.f32 %v2163, %v2164
    %v2166 = vrot.slane %v1523, 4
    %v2167 = vmax.f32 %v1523, %v2166
    %v2168 = vrot.slane %v2167, 2
    %v2169 = vmax.f32 %v2167, %v2168
    %v2170 = vrot.slane %v2169, 1
    %v2171 = vmax.f32 %v2169, %v2170
    %v2172 = vrot.slane %v1524, 4
    %v2173 = vmax.f32 %v1524, %v2172
    %v2174 = vrot.slane %v2173, 2
    %v2175 = vmax.f32 %v2173, %v2174
    %v2176 = vrot.slane %v2175, 1
    %v2177 = vmax.f32 %v2175, %v2176
    %v2178 = vrot.slane %v1525, 4
    %v2179 = vmax.f32 %v1525, %v2178
    %v2180 = vrot.slane %v2179, 2
    %v2181 = vmax.f32 %v2179, %v2180
    %v2182 = vrot.slane %v2181, 1
    %v2183 = vmax.f32 %v2181, %v2182
    %v2184 = vrot.slane %v1526, 4
    %v2185 = vmax.f32 %v1526, %v2184
    %v2186 = vrot.slane %v2185, 2
    %v2187 = vmax.f32 %v2185, %v2186
    %v2188 = vrot.slane %v2187, 1
    %v2189 = vmax.f32 %v2187, %v2188
    %v2190 = vrot.slane %v1527, 4
    %v2191 = vmax.f32 %v1527, %v2190
    %v2192 = vrot.slane %v2191, 2
    %v2193 = vmax.f32 %v2191, %v2192
    %v2194 = vrot.slane %v2193, 1
    %v2195 = vmax.f32 %v2193, %v2194
    %v2196 = vrot.slane %v1528, 4
    %v2197 = vmax.f32 %v1528, %v2196
    %v2198 = vrot.slane %v2197, 2
    %v2199 = vmax.f32 %v2197, %v2198
    %v2200 = vrot.slane %v2199, 1
    %v2201 = vmax.f32 %v2199, %v2200
    %v2202 = vrot.slane %v1529, 4
    %v2203 = vmax.f32 %v1529, %v2202
    %v2204 = vrot.slane %v2203, 2
    %v2205 = vmax.f32 %v2203, %v2204
    %v2206 = vrot.slane %v2205, 1
    %v2207 = vmax.f32 %v2205, %v2206
    %v2208 = vrot.slane %v1530, 4
    %v2209 = vmax.f32 %v1530, %v2208
    %v2210 = vrot.slane %v2209, 2
    %v2211 = vmax.f32 %v2209, %v2210
    %v2212 = vrot.slane %v2211, 1
    %v2213 = vmax.f32 %v2211, %v2212
    %v2214 = vrot.slane %v1531, 4
    %v2215 = vmax.f32 %v1531, %v2214
    %v2216 = vrot.slane %v2215, 2
    %v2217 = vmax.f32 %v2215, %v2216
    %v2218 = vrot.slane %v2217, 1
    %v2219 = vmax.f32 %v2217, %v2218
    %v2220 = vrot.slane %v1532, 4
    %v2221 = vmax.f32 %v1532, %v2220
    %v2222 = vrot.slane %v2221, 2
    %v2223 = vmax.f32 %v2221, %v2222
    %v2224 = vrot.slane %v2223, 1
    %v2225 = vmax.f32 %v2223, %v2224
    %v2226 = vrot.slane %v1533, 4
    %v2227 = vmax.f32 %v1533, %v2226
    %v2228 = vrot.slane %v2227, 2
    %v2229 = vmax.f32 %v2227, %v2228
    %v2230 = vrot.slane %v2229, 1
    %v2231 = vmax.f32 %v2229, %v2230
    %v2232 = vrot.slane %v1534, 4
    %v2233 = vmax.f32 %v1534, %v2232
    %v2234 = vrot.slane %v2233, 2
    %v2235 = vmax.f32 %v2233, %v2234
    %v2236 = vrot.slane %v2235, 1
    %v2237 = vmax.f32 %v2235, %v2236
    %v2238 = vrot.slane %v1535, 4
    %v2239 = vmax.f32 %v1535, %v2238
    %v2240 = vrot.slane %v2239, 2
    %v2241 = vmax.f32 %v2239, %v2240
    %v2242 = vrot.slane %v2241, 1
    %v2243 = vmax.f32 %v2241, %v2242
    %v2244 = vrot.slane %v1536, 4
    %v2245 = vmax.f32 %v1536, %v2244
    %v2246 = vrot.slane %v2245, 2
    %v2247 = vmax.f32 %v2245, %v2246
    %v2248 = vrot.slane %v2247, 1
    %v2249 = vmax.f32 %v2247, %v2248
    %v2250 = vrot.slane %v1537, 4
    %v2251 = vmax.f32 %v1537, %v2250
    %v2252 = vrot.slane %v2251, 2
    %v2253 = vmax.f32 %v2251, %v2252
    %v2254 = vrot.slane %v2253, 1
    %v2255 = vmax.f32 %v2253, %v2254
    %v2256 = vrot.slane %v1538, 4
    %v2257 = vmax.f32 %v1538, %v2256
    %v2258 = vrot.slane %v2257, 2
    %v2259 = vmax.f32 %v2257, %v2258
    %v2260 = vrot.slane %v2259, 1
    %v2261 = vmax.f32 %v2259, %v2260
    %v2262 = vrot.slane %v1539, 4
    %v2263 = vmax.f32 %v1539, %v2262
    %v2264 = vrot.slane %v2263, 2
    %v2265 = vmax.f32 %v2263, %v2264
    %v2266 = vrot.slane %v2265, 1
    %v2267 = vmax.f32 %v2265, %v2266
    %v2268 = vrot.slane %v1540, 4
    %v2269 = vmax.f32 %v1540, %v2268
    %v2270 = vrot.slane %v2269, 2
    %v2271 = vmax.f32 %v2269, %v2270
    %v2272 = vrot.slane %v2271, 1
    %v2273 = vmax.f32 %v2271, %v2272
    %v2274 = vrot.slane %v1541, 4
    %v2275 = vmax.f32 %v1541, %v2274
    %v2276 = vrot.slane %v2275, 2
    %v2277 = vmax.f32 %v2275, %v2276
    %v2278 = vrot.slane %v2277, 1
    %v2279 = vmax.f32 %v2277, %v2278
    %v2280 = vrot.slane %v1542, 4
    %v2281 = vmax.f32 %v1542, %v2280
    %v2282 = vrot.slane %v2281, 2
    %v2283 = vmax.f32 %v2281, %v2282
    %v2284 = vrot.slane %v2283, 1
    %v2285 = vmax.f32 %v2283, %v2284
    %v2286 = vrot.slane %v1543, 4
    %v2287 = vmax.f32 %v1543, %v2286
    %v2288 = vrot.slane %v2287, 2
    %v2289 = vmax.f32 %v2287, %v2288
    %v2290 = vrot.slane %v2289, 1
    %v2291 = vmax.f32 %v2289, %v2290
    %v2292 = vrot.slane %v1544, 4
    %v2293 = vmax.f32 %v1544, %v2292
    %v2294 = vrot.slane %v2293, 2
    %v2295 = vmax.f32 %v2293, %v2294
    %v2296 = vrot.slane %v2295, 1
    %v2297 = vmax.f32 %v2295, %v2296
    %v2298 = vrot.slane %v1545, 4
    %v2299 = vmax.f32 %v1545, %v2298
    %v2300 = vrot.slane %v2299, 2
    %v2301 = vmax.f32 %v2299, %v2300
    %v2302 = vrot.slane %v2301, 1
    %v2303 = vmax.f32 %v2301, %v2302
    %v2304 = vrot.slane %v1546, 4
    %v2305 = vmax.f32 %v1546, %v2304
    %v2306 = vrot.slane %v2305, 2
    %v2307 = vmax.f32 %v2305, %v2306
    %v2308 = vrot.slane %v2307, 1
    %v2309 = vmax.f32 %v2307, %v2308
    %v2310 = vrot.slane %v1547, 4
    %v2311 = vmax.f32 %v1547, %v2310
    %v2312 = vrot.slane %v2311, 2
    %v2313 = vmax.f32 %v2311, %v2312
    %v2314 = vrot.slane %v2313, 1
    %v2315 = vmax.f32 %v2313, %v2314
    %vm2444 = vcmask 1041409
    %v2445 = vsel %vm2444, %v1559, %v1553
    %vm2446 = vcmask 1042434
    %v2447 = vsel %vm2446, %v1565, %v2445
    %vm2448 = vcmask 1043459
    %v2449 = vsel %vm2448, %v1571, %v2447
    %vm2450 = vcmask 1044484
    %v2451 = vsel %vm2450, %v1577, %v2449
    %vm2452 = vcmask 1045509
    %v2453 = vsel %vm2452, %v1583, %v2451
    %vm2454 = vcmask 1046534
    %v2455 = vsel %vm2454, %v1589, %v2453
    %vm2456 = vcmask 1047559
    %v2457 = vsel %vm2456, %v1595, %v2455
    %v2458 = vsel %vm2444, %v1607, %v1601
    %v2459 = vsel %vm2446, %v1613, %v2458
    %v2460 = vsel %vm2448, %v1619, %v2459
    %v2461 = vsel %vm2450, %v1625, %v2460
    %v2462 = vsel %vm2452, %v1631, %v2461
    %v2463 = vsel %vm2454, %v1637, %v2462
    %v2464 = vsel %vm2456, %v1643, %v2463
    %v2465 = vsel %vm2444, %v1655, %v1649
    %v2466 = vsel %vm2446, %v1661, %v2465
    %v2467 = vsel %vm2448, %v1667, %v2466
    %v2468 = vsel %vm2450, %v1673, %v2467
    %v2469 = vsel %vm2452, %v1679, %v2468
    %v2470 = vsel %vm2454, %v1685, %v2469
    %v2471 = vsel %vm2456, %v1691, %v2470
    %v2472 = vsel %vm2444, %v1703, %v1697
    %v2473 = vsel %vm2446, %v1709, %v2472
    %v2474 = vsel %vm2448, %v1715, %v2473
    %v2475 = vsel %vm2450, %v1721, %v2474
    %v2476 = vsel %vm2452, %v1727, %v2475
    %v2477 = vsel %vm2454, %v1733, %v2476
    %v2478 = vsel %vm2456, %v1739, %v2477
    %v2479 = vsel %vm2444, %v1751, %v1745
    %v2480 = vsel %vm2446, %v1757, %v2479
    %v2481 = vsel %vm2448, %v1763, %v2480
    %v2482 = vsel %vm2450, %v1769, %v2481
    %v2483 = vsel %vm2452, %v1775, %v2482
    %v2484 = vsel %vm2454, %v1781, %v2483
    %v2485 = vsel %vm2456, %v1787, %v2484
    %v2486 = vsel %vm2444, %v1799, %v1793
    %v2487 = vsel %vm2446, %v1805, %v2486
    %v2488 = vsel %vm2448, %v1811, %v2487
    %v2489 = vsel %vm2450, %v1817, %v2488
    %v2490 = vsel %vm2452, %v1823, %v2489
    %v2491 = vsel %vm2454, %v1829, %v2490
    %v2492 = vsel %vm2456, %v1835, %v2491
    %v2493 = vsel %vm2444, %v1847, %v1841
    %v2494 = vsel %vm2446, %v1853, %v2493
    %v2495 = vsel %vm2448, %v1859, %v2494
    %v2496 = vsel %vm2450, %v1865, %v2495
    %v2497 = vsel %vm2452, %v1871, %v2496
    %v2498 = vsel %vm2454, %v1877, %v2497
    %v2499 = vsel %vm2456, %v1883, %v2498
    %v2500 = vsel %vm2444, %v1895, %v1889
    %v2501 = vsel %vm2446, %v1901, %v2500
    %v2502 = vsel %vm2448, %v1907, %v2501
    %v2503 = vsel %vm2450, %v1913, %v2502
    %v2504 = vsel %vm2452, %v1919, %v2503
    %v2505 = vsel %vm2454, %v1925, %v2504
    %v2506 = vsel %vm2456, %v1931, %v2505
    %v2507 = vsel %vm2444, %v1943, %v1937
    %v2508 = vsel %vm2446, %v1949, %v2507
    %v2509 = vsel %vm2448, %v1955, %v2508
    %v2510 = vsel %vm2450, %v1961, %v2509
    %v2511 = vsel %vm2452, %v1967, %v2510
    %v2512 = vsel %vm2454, %v1973, %v2511
    %v2513 = vsel %vm2456, %v1979, %v2512
    %v2514 = vsel %vm2444, %v1991, %v1985
    %v2515 = vsel %vm2446, %v1997, %v2514
    %v2516 = vsel %vm2448, %v2003, %v2515
    %v2517 = vsel %vm2450, %v2009, %v2516
    %v2518 = vsel %vm2452, %v2015, %v2517
    %v2519 = vsel %vm2454, %v2021, %v2518
    %v2520 = vsel %vm2456, %v2027, %v2519
    %v2521 = vsel %vm2444, %v2039, %v2033
    %v2522 = vsel %vm2446, %v2045, %v2521
    %v2523 = vsel %vm2448, %v2051, %v2522
    %v2524 = vsel %vm2450, %v2057, %v2523
    %v2525 = vsel %vm2452, %v2063, %v2524
    %v2526 = vsel %vm2454, %v2069, %v2525
    %v2527 = vsel %vm2456, %v2075, %v2526
    %v2528 = vsel %vm2444, %v2087, %v2081
    %v2529 = vsel %vm2446, %v2093, %v2528
    %v2530 = vsel %vm2448, %v2099, %v2529
    %v2531 = vsel %vm2450, %v2105, %v2530
    %v2532 = vsel %vm2452, %v2111, %v2531
    %v2533 = vsel %vm2454, %v2117, %v2532
    %v2534 = vsel %vm2456, %v2123, %v2533
    %v2535 = vsel %vm2444, %v2135, %v2129
    %v2536 = vsel %vm2446, %v2141, %v2535
    %v2537 = vsel %vm2448, %v2147, %v2536
    %v2538 = vsel %vm2450, %v2153, %v2537
    %v2539 = vsel %vm2452, %v2159, %v2538
    %v2540 = vsel %vm2454, %v2165, %v2539
    %v2541 = vsel %vm2456, %v2171, %v2540
    %v2542 = vsel %vm2444, %v2183, %v2177
    %v2543 = vsel %vm2446, %v2189, %v2542
    %v2544 = vsel %vm2448, %v2195, %v2543
    %v2545 = vsel %vm2450, %v2201, %v2544
    %v2546 = vsel %vm2452, %v2207, %v2545
    %v2547 = vsel %vm2454, %v2213, %v2546
    %v2548 = vsel %vm2456, %v2219, %v2547
    %v2549 = vsel %vm2444, %v2231, %v2225
    %v2550 = vsel %vm2446, %v2237, %v2549
    %v2551 = vsel %vm2448, %v2243, %v2550
    %v2552 = vsel %vm2450, %v2249, %v2551
    %v2553 = vsel %vm2452, %v2255, %v2552
    %v2554 = vsel %vm2454, %v2261, %v2553
    %v2555 = vsel %vm2456, %v2267, %v2554
    %v2556 = vsel %vm2444, %v2279, %v2273
    %v2557 = vsel %vm2446, %v2285, %v2556
    %v2558 = vsel %vm2448, %v2291, %v2557
    %v2559 = vsel %vm2450, %v2297, %v2558
    %v2560 = vsel %vm2452, %v2303, %v2559
    %v2561 = vsel %vm2454, %v2309, %v2560
    %v2562 = vsel %vm2456, %v2315, %v2561
    %2579 = vst [vmem:[#allocation2] sm:$0xff] %v2457
    %2580 = vst [vmem:[#allocation2 + $0x8] sm:$0xff] %v2464
    %2581 = vst [vmem:[#allocation2 + $0x10] sm:$0xff] %v2471
    %2582 = vst [vmem:[#allocation2 + $0x18] sm:$0xff] %v2478
    %2583 = vst [vmem:[#allocation2 + $0x20] sm:$0xff] %v2485
    %2584 = vst [vmem:[#allocation2 + $0x28] sm:$0xff] %v2492
    %2585 = vst [vmem:[#allocation2 + $0x30] sm:$0xff] %v2499
    %2586 = vst [vmem:[#allocation2 + $0x38] sm:$0xff] %v2506
    %2587 = vst [vmem:[#allocation2 + $0x40] sm:$0xff] %v2513
    %2588 = vst [vmem:[#allocation2 + $0x48] sm:$0xff] %v2520
    %2589 = vst [vmem:[#allocation2 + $0x50] sm:$0xff] %v2527
    %2590 = vst [vmem:[#allocation2 + $0x58] sm:$0xff] %v2534
    %2591 = vst [vmem:[#allocation2 + $0x60] sm:$0xff] %v2541
    %2592 = vst [vmem:[#allocation2 + $0x68] sm:$0xff] %v2548
    %2593 = vst [vmem:[#allocation2 + $0x70] sm:$0xff] %v2555
    %2594 = vst [vmem:[#allocation2 + $0x78] sm:$0xff] %v2562
    // Predicated region
    $region22: #{conv_layer_forward.3} parent=1 // pred_check
      _
    $region23: #{conv_layer_forward.3} parent=1 // pred_check_branch
      %2596 = sbr.rel (0) target = $region25
    $region24: #{conv_layer_forward.3} parent=1 // pred_region
      %s2598 = ssub.s32 2048, 2048
      %2599 = vsyncadd [#allocation3], %s2598
      %s2600 = sshll.u32 [#allocation2], 4
      %s2601 = int_to_ptr.vmem [resolvable:$true] %s2600
      %2606 = dma.vmem_to_hbm [thread:$0]  %s2601, 2048, %s5, [#allocation3], 128, 128, 8
    $region25: #{conv_layer_forward.3} parent=1 // pred_fallthru
      _
    // Predicated region
    $region26: #{conv_layer_forward.3} parent=1 // pred_check
      _
    $region27: #{conv_layer_forward.3} parent=1 // pred_check_branch
      %2608 = sbr.rel (0) target = $region29
    $region28: #{conv_layer_forward.3} parent=1 // pred_region
      %2609 = dma.done [#allocation3], 2048
    $region29: #{conv_layer_forward.3} parent=1 // pred_fallthru
      _
    %2610 = vsyncpa [#allocation3], 1

</llo_original>
